<compile_context>
chip_gen: v7x
topology: tpu7x:2x2x1
jax: 0.10.0
libtpu: 0.0.40
codegen_flags: <defaults>
</compile_context>

<pallas_src>
import functools

import numpy as np
import jax
import jax.numpy as jnp
from jax import lax
from jax.experimental import pallas as pl
from jax.experimental.pallas import tpu as pltpu

C_LIGHT = 3e8
SUB = 8  # sublane height of the vreg-resident accumulator sub-tile


# -----------------------------------------------------------------------------
# Deterministic construction of the RSD buffers (mirrors RSDBase.__init__).
# -----------------------------------------------------------------------------
def _gaussian_window(M, std):
    # scipy.signal.gaussian equivalent
    n = np.arange(M)
    return np.exp(-0.5 * ((n - (M - 1) / 2.0) / std) ** 2)


def build_rsd_buffers(t, d, h, w, wall_size=2.0, bin_len=0.05, zmin=0.0,
                      zmax=2.0, scale_coef=1.0, n_cycles=4, ratio=0.1):
    assert t % 2 == 0
    bin_resolution = bin_len / C_LIGHT
    sampling_freq = 1.0 / bin_resolution
    wall_spacing = wall_size / h
    lambda_limit = 2.0 * wall_spacing
    wavelength = scale_coef * lambda_limit

    # _define_wave
    samples = round(n_cycles * wavelength / bin_len)
    ncyc = samples * bin_len / wavelength
    idx = np.arange(samples) + 1
    sinusoid = np.exp(1j * 2 * np.pi * ncyc * idx / samples)
    win = _gaussian_window(samples, (samples - 1) / 2.0 * 0.3)
    wave = sinusoid * win
    if len(wave) < t:
        wave = np.pad(wave, (0, t - len(wave)))

    fwave = np.abs(np.fft.fft(wave) / t)[: len(wave) // 2 + 1]
    coef_ratio = fwave / np.max(fwave)
    freq_idx = np.where(coef_ratio > ratio)[0]
    assert freq_idx.max() < t // 2 + 1, "kept frequency exceeds rfft bins"
    freqs = sampling_freq * freq_idx / t
    omegas = 2 * np.pi * freqs
    coefs = fwave[freq_idx]

    zdim = np.linspace(zmin, zmax, d + 1)
    zdim = (zdim[:-1] + zdim[1:]) / 2.0

    # _define_rsd
    width = wall_size / 2.0
    ydim = np.linspace(width, -width, h + 1)
    xdim = np.linspace(-width, width, w + 1)
    ydim = (ydim[:-1] + ydim[1:]) / 2.0
    xdim = (xdim[:-1] + xdim[1:]) / 2.0
    zg, yg, xg = np.meshgrid(zdim, ydim, xdim, indexing="ij")
    dg = np.sqrt(xg ** 2 + yg ** 2 + zg ** 2).reshape(1, d, h, w)
    om = omegas.reshape(-1, 1, 1, 1)
    rsd = np.exp(1j * om / C_LIGHT * dg) / dg                    # (NF, d, h, w)
    rsd = np.pad(rsd, ((0, 0), (0, 0), (0, h), (0, w)))          # (NF, d, 2h, 2w)
    frsd = np.fft.fft2(rsd).astype(np.complex64)

    tgrid = (zdim / C_LIGHT).reshape(1, -1, 1, 1)
    phase = np.exp(1j * om * tgrid).astype(np.complex64)         # (NF, d, 1, 1)

    return (freq_idx.astype(np.int32),
            coefs.astype(np.float32),
            frsd,
            phase)


# -----------------------------------------------------------------------------
# Generation-aware VMEM budgeting.
#   v7x-class parts have 64 MiB of VMEM per core (shared pressure with two
#   active TensorCores) -> keep the working set around ~20 MiB / limit 28 MiB.
#   v5e / v6e have 128 MiB -> larger tiles amortize per-step overhead better.
# -----------------------------------------------------------------------------
def _vmem_budget():
    phys = None
    try:
        info = pltpu.get_tpu_info()
        phys = getattr(info, "vmem_capacity_bytes", None)
    except Exception:
        phys = None
    if not phys:
        phys = 128 * 1024 * 1024
    if phys <= 64 * 1024 * 1024:
        return 20 * 1024 * 1024, 28 * 1024 * 1024     # (budget, vmem_limit)
    return 40 * 1024 * 1024, 64 * 1024 * 1024


def _pick_freq_sum_tiles(P, d, B, NF, budget_bytes):
    """Pick (TP, TD) so the double-buffered working set fits the VMEM budget
    and the grid has >= 2 programs (v7x megacore) whenever the shape allows."""
    # Lane tile: >=512-wide tiles sit near the HBM roofline.
    TP = P
    for cand in (1024, 512):
        if P > cand and P % cand == 0:
            TP = cand
            break

    def step_bytes(td, tp):
        # double-buffered f32 blocks: sr/si (B,NF,tp), wr/wi (NF,td,tp),
        # out_r/out_i (B,td,tp)
        return 2 * 4 * (2 * B * NF * tp + 2 * NF * td * tp + 2 * B * td * tp)

    # Depth tile: full d if it fits, else the largest multiple-of-8 divisor
    # that keeps the working set within the budget.
    TD = d
    if step_bytes(TD, TP) > budget_bytes:
        divs = [c for c in range(8, d, 8) if d % c == 0]
        fit = [c for c in divs if step_bytes(c, TP) <= budget_bytes]
        if fit:
            TD = max(fit)
        elif divs:
            TD = min(divs)

    # Megacore: guarantee >= 2 programs so a "parallel" axis can be split
    # across the two TensorCores on v7x.  Prefer splitting the lane axis
    # (duplicates no HBM traffic), then the depth axis.
    if (P // TP) * (d // TD) == 1:
        if P >= 256 and (P // 2) % 128 == 0:
            TP = P // 2
        elif d >= 16 and TD % 16 == 0:
            TD = TD // 2
    return TP, TD


def _pick_plane_tile(d, HW, budget_bytes):
    """Depth tile for the maxnorm passes: 3 f32 planes, double-buffered."""
    def bytes_for(td):
        return 3 * 2 * td * HW * 4
    if bytes_for(d) <= budget_bytes:
        return d
    divs = [c for c in range(8, d, 8) if d % c == 0]
    fit = [c for c in divs if bytes_for(c) <= budget_bytes]
    if fit:
        return max(fit)
    if divs:
        return min(divs)
    return d


# -----------------------------------------------------------------------------
# Pallas kernels
# -----------------------------------------------------------------------------
def freq_sum_kernel(sr_ref, si_ref, wr_ref, wi_ref, or_ref, oi_ref):
    """fvol[b, dd, :] = sum_f fsrc[b, f, :] * W[f, dd, :] (complex, split re/im).

    Block views:
      sr/si : (B, NF, TP)   -- source spectrum, resident across depth tiles
      wr/wi : (NF, TD, TP)  -- precomputed phase*frsd, streamed from HBM once
      or/oi : (B, TD, TP)

    The accumulators are (SUB=8, TP) slabs that stay vreg-resident across the
    whole frequency loop: each output vreg is stored exactly once (instead of
    loaded+stored once per frequency), so the VALU / HBM roofline binds
    instead of the vector-store slot.
    """
    bsz, nf, tp = sr_ref.shape
    td = wr_ref.shape[1]
    n_full = td // SUB
    rem = td - n_full * SUB

    def accumulate(b, row, rows):
        re = jnp.zeros((rows, tp), jnp.float32)
        im = jnp.zeros((rows, tp), jnp.float32)
        # Static unroll over kept frequencies (NF is small and static); the
        # serial dependence through (re, im) keeps per-f temporaries
        # short-lived, so vreg pressure stays ~16 acc vregs + a few temps.
        for f in range(nf):
            srf = sr_ref[b, pl.ds(f, 1), :]            # (1, tp), bcast over rows
            sif = si_ref[b, pl.ds(f, 1), :]
            wrf = wr_ref[f, pl.ds(row, rows), :]       # (rows, tp)
            wif = wi_ref[f, pl.ds(row, rows), :]
            re = re + srf * wrf - sif * wif
            im = im + srf * wif + sif * wrf
        or_ref[b, pl.ds(row, rows), :] = re            # one dense store per tile
        oi_ref[b, pl.ds(row, rows), :] = im

    def body_b(b, carry):
        if n_full > 0:
            def body_s(s, c2):
                accumulate(b, pl.multiple_of(s * SUB, SUB), SUB)
                return c2
            lax.fori_loop(0, n_full, body_s, 0)
        if rem > 0:
            accumulate(b, n_full * SUB, rem)
        return carry

    # B = bs*c is small and static -> unrolled batch loop (LLO visibility).
    lax.fori_loop(0, bsz, body_b, 0, unroll=True)


def max_sq_kernel(tr_ref, ti_ref, msq_ref):
    """Pass 1 of maxnorm: per-channel max of |tvol|^2, accumulated over the
    d-tiled 'arbitrary' grid axis into a resident (1,1,1) output block."""
    dt = pl.program_id(1)
    tr = tr_ref[...]
    ti = ti_ref[...]
    m = jnp.max(tr * tr + ti * ti, axis=(0, 1, 2), keepdims=True)   # (1,1,1)

    @pl.when(dt == 0)
    def _():
        msq_ref[...] = m

    @pl.when(dt != 0)
    def _():
        msq_ref[...] = jnp.maximum(msq_ref[...], m)


def scale_kernel(tr_ref, ti_ref, msq_ref, o_ref, *, use_sqrt):
    """Pass 2 of maxnorm: |.| (optionally squared) / max, exact reciprocal."""
    tr = tr_ref[...]
    ti = ti_ref[...]
    sq = tr * tr + ti * ti
    msq = msq_ref[...]                                  # (1,1,1) max of sq
    if use_sqrt:
        mag = jnp.sqrt(sq)
        denom = jnp.sqrt(msq)                           # sqrt is monotone: == max(|.|)
    else:
        mag = sq
        denom = msq
    inv = 1.0 / jnp.maximum(denom, 1e-12)               # exact; one scalar per block
    o_ref[...] = mag * inv


# -----------------------------------------------------------------------------
# Forward pass (JAX glue + Pallas hot paths)
# -----------------------------------------------------------------------------
def rsd_forward(x, freq_idx, coefs, w_real, w_imag, d, sqrt=True):
    bs, c, t, h, w = x.shape
    B = bs * c
    P = 4 * h * w
    HW = h * w

    budget, vmem_limit = _vmem_budget()

    # --- time -> frequency domain (XLA glue; no Pallas FFT on TPU) ---
    tdata = x.reshape(B, t, h, w)
    fdata = jnp.fft.rfft(tdata, axis=1)                      # (B, t//2+1, h, w)
    fdata = jnp.take(fdata, freq_idx, axis=1)                # (B, NF, h, w)
    phasor = coefs[None, :, None, None].astype(jnp.complex64) * fdata
    phasor = jnp.pad(phasor, ((0, 0), (0, 0), (0, h), (0, w)))
    fsrc = jnp.fft.fft2(phasor)                              # (B, NF, 2h, 2w)
    NF = fsrc.shape[1]

    sr = jnp.real(fsrc).reshape(B, NF, P).astype(jnp.float32)
    si = jnp.imag(fsrc).reshape(B, NF, P).astype(jnp.float32)

    TP, TD = _pick_freq_sum_tiles(P, d, B, NF, budget)
    assert P % TP == 0 and d % TD == 0
    n_p = P // TP
    n_d = d // TD

    # --- frequency-domain multiply + sum over frequencies (Pallas) ---
    # grid = (lane tiles, depth tiles); depth is the inner axis so the source
    # spectrum stays resident across depth tiles -> every operand is DMA'd
    # exactly once.  Both axes are "parallel" (no cross-step accumulation), so
    # v7x megacore can shard either one.
    fvol_r, fvol_i = pl.pallas_call(
        freq_sum_kernel,
        out_shape=(jax.ShapeDtypeStruct((B, d, P), jnp.float32),
                   jax.ShapeDtypeStruct((B, d, P), jnp.float32)),
        grid=(n_p, n_d),
        in_specs=[pl.BlockSpec((B, NF, TP), lambda p, dd: (0, 0, p)),
                  pl.BlockSpec((B, NF, TP), lambda p, dd: (0, 0, p)),
                  pl.BlockSpec((NF, TD, TP), lambda p, dd: (0, dd, p)),
                  pl.BlockSpec((NF, TD, TP), lambda p, dd: (0, dd, p))],
        out_specs=(pl.BlockSpec((B, TD, TP), lambda p, dd: (0, dd, p)),
                   pl.BlockSpec((B, TD, TP), lambda p, dd: (0, dd, p))),
        compiler_params=pltpu.CompilerParams(
            dimension_semantics=("parallel", "parallel"),
            vmem_limit_bytes=vmem_limit),
    )(sr, si, w_real, w_imag)

    fvol = (fvol_r + 1j * fvol_i).reshape(B, d, 2 * h, 2 * w)

    # --- frequency -> space domain (XLA glue) ---
    tvol = jnp.fft.ifft2(fvol)
    tvol = tvol[:, :, h // 2:h + h // 2, w // 2:w + w // 2]   # (B, d, h, w)
    tr = jnp.real(tvol).astype(jnp.float32).reshape(B, d, HW)
    ti = jnp.imag(tvol).astype(jnp.float32).reshape(B, d, HW)

    # --- |.| + per-channel max-norm (Pallas), d-tiled two-pass ---
    mn_budget = min(12 * 1024 * 1024, budget)
    mn_limit = min(32 * 1024 * 1024, vmem_limit)
    TDN = _pick_plane_tile(d, HW, mn_budget)
    assert d % TDN == 0
    n_dt = d // TDN

    msq = pl.pallas_call(
        max_sq_kernel,
        out_shape=jax.ShapeDtypeStruct((B, 1, 1), jnp.float32),
        grid=(B, n_dt),
        in_specs=[pl.BlockSpec((1, TDN, HW), lambda b, dt: (b, dt, 0)),
                  pl.BlockSpec((1, TDN, HW), lambda b, dt: (b, dt, 0))],
        out_specs=pl.BlockSpec((1, 1, 1), lambda b, dt: (b, 0, 0)),
        compiler_params=pltpu.CompilerParams(
            dimension_semantics=("parallel", "arbitrary"),
            vmem_limit_bytes=mn_limit),
    )(tr, ti)

    out = pl.pallas_call(
        functools.partial(scale_kernel, use_sqrt=sqrt),
        out_shape=jax.ShapeDtypeStruct((B, d, HW), jnp.float32),
        grid=(B, n_dt),
        in_specs=[pl.BlockSpec((1, TDN, HW), lambda b, dt: (b, dt, 0)),
                  pl.BlockSpec((1, TDN, HW), lambda b, dt: (b, dt, 0)),
                  pl.BlockSpec((1, 1, 1), lambda b, dt: (b, 0, 0))],
        out_specs=pl.BlockSpec((1, TDN, HW), lambda b, dt: (b, dt, 0)),
        compiler_params=pltpu.CompilerParams(
            dimension_semantics=("parallel", "parallel"),
            vmem_limit_bytes=mn_limit),
    )(tr, ti, msq)

    # activation is 'linear' (identity) in the default config
    return out.reshape(bs, c, d, h, w)


# Pure-JAX reference (mirrors the PyTorch forward) for correctness checking.
def rsd_forward_ref(x, freq_idx, coefs, frsd, phase, d, sqrt=True):
    bs, c, t, h, w = x.shape
    B = bs * c
    tdata = x.reshape(B, t, h, w)
    fdata = jnp.fft.rfft(tdata, axis=1)
    fdata = jnp.take(fdata, freq_idx, axis=1)
    phasor = coefs[None, :, None, None].astype(jnp.complex64) * fdata
    phasor = jnp.pad(phasor, ((0, 0), (0, 0), (0, h), (0, w)))
    fsrc = jnp.fft.fft2(phasor)
    fdst = fsrc[:, :, None] * frsd[None]
    fdst = phase[None] * fdst
    fvol = jnp.sum(fdst, axis=1)
    tvol = jnp.fft.ifft2(fvol)
    tvol = tvol[:, :, h // 2:h + h // 2, w // 2:w + w // 2]
    tvol = jnp.abs(tvol)
    if not sqrt:
        tvol = tvol ** 2
    xo = tvol.reshape(bs, c, d, h, w).astype(jnp.float32)
    denom = jnp.max(jnp.abs(xo), axis=(-3, -2, -1), keepdims=True)
    return xo / jnp.maximum(denom, 1e-12)


if __name__ == "__main__":
    # Small, module-consistent config.
    bs, c = 2, 2               # in_plane = 2
    t, d, h, w = 32, 8, 16, 16
    bin_len = 0.05             # keeps the sample wave shorter than t

    freq_idx_np, coefs_np, frsd_np, phase_np = build_rsd_buffers(
        t, d, h, w, wall_size=2.0, bin_len=bin_len, zmin=0.0, zmax=2.0,
        scale_coef=1.0, n_cycles=4, ratio=0.1)

    NF = freq_idx_np.shape[0]
    P = 4 * h * w

    # Precompute the complex weights W[f, dd, :] = phase[f, dd] * frsd[f, dd, :]
    # in (NF, d, P) layout split into real/imag planes.
    W = (phase_np * frsd_np).astype(np.complex64)             # (NF, d, 2h, 2w)
    W = W.reshape(NF, d, P)
    w_real = jnp.asarray(np.ascontiguousarray(np.real(W)), dtype=jnp.float32)
    w_imag = jnp.asarray(np.ascontiguousarray(np.imag(W)), dtype=jnp.float32)

    freq_idx = jnp.asarray(freq_idx_np)
    coefs = jnp.asarray(coefs_np)
    frsd = jnp.asarray(frsd_np)
    phase = jnp.asarray(phase_np)

    key = jax.random.PRNGKey(0)
    x = jax.random.normal(key, (bs, c, t, h, w), dtype=jnp.float32)

    out = rsd_forward(x, freq_idx, coefs, w_real, w_imag, d, sqrt=True)
    out = jax.block_until_ready(out)

    ref = jax.block_until_ready(
        rsd_forward_ref(x, freq_idx, coefs, frsd, phase, d, sqrt=True))

    assert out.shape == (bs, c, d, h, w)
    assert np.allclose(np.asarray(out), np.asarray(ref), rtol=1e-3, atol=2e-3), \
        "Pallas RSD output mismatch vs reference"

    print("KERNEL_OK")
</pallas_src>

<mosaic_0001>
module attributes {stable_mosaic.version = 11 : i64} {
  func.func @freq_sum_kernel(%arg0: i32, %arg1: i32, %arg2: memref<4x8x512xf32, #tpu.memory_space<vmem>>, %arg3: memref<4x8x512xf32, #tpu.memory_space<vmem>>, %arg4: memref<8x8x512xf32, #tpu.memory_space<vmem>>, %arg5: memref<8x8x512xf32, #tpu.memory_space<vmem>>, %arg6: memref<4x8x512xf32, #tpu.memory_space<vmem>>, %arg7: memref<4x8x512xf32, #tpu.memory_space<vmem>>) attributes {dimension_semantics = [#tpu.dimension_semantics<parallel>, #tpu.dimension_semantics<parallel>], iteration_bounds = array<i64: 2, 1>, scalar_prefetch = 0 : i64, scratch_operands = 0 : i64, tpu.core_type = #tpu.core_type<tc>, window_params = [{transform_indices = @transform_0, window_bounds = array<i64: 4, 8, 512>}, {transform_indices = @transform_1, window_bounds = array<i64: 4, 8, 512>}, {transform_indices = @transform_2, window_bounds = array<i64: 8, 8, 512>}, {transform_indices = @transform_3, window_bounds = array<i64: 8, 8, 512>}, {transform_indices = @transform_4, window_bounds = array<i64: 4, 8, 512>}, {transform_indices = @transform_5, window_bounds = array<i64: 4, 8, 512>}]} {
    %c0_i32 = arith.constant 0 : i32
    %c0_i32_0 = arith.constant 0 : i32
    %c8_i32 = arith.constant 8 : i32
    %0 = arith.muli %c0_i32_0, %c8_i32 : i32
    %1 = tpu.assume_multiple %0, 8 : i32
    %cst = arith.constant 0.000000e+00 : f32
    %2 = vector.broadcast %cst : f32 to vector<8x512xf32>
    %cst_1 = arith.constant 0.000000e+00 : f32
    %3 = vector.broadcast %cst_1 : f32 to vector<8x512xf32>
    %4 = arith.index_cast %c0_i32 : i32 to index
    %c0 = arith.constant 0 : index
    %c0_2 = arith.constant 0 : index
    %5 = vector.load %arg2[%4, %c0, %c0_2] : memref<4x8x512xf32, #tpu.memory_space<vmem>>, vector<1x1x512xf32>
    %6 = vector.shape_cast %5 : vector<1x1x512xf32> to vector<1x512xf32>
    %7 = arith.index_cast %c0_i32 : i32 to index
    %c0_3 = arith.constant 0 : index
    %c0_4 = arith.constant 0 : index
    %8 = vector.load %arg3[%7, %c0_3, %c0_4] : memref<4x8x512xf32, #tpu.memory_space<vmem>>, vector<1x1x512xf32>
    %9 = vector.shape_cast %8 : vector<1x1x512xf32> to vector<1x512xf32>
    %c0_5 = arith.constant 0 : index
    %10 = arith.index_cast %1 : i32 to index
    %c0_6 = arith.constant 0 : index
    %11 = vector.load %arg4[%c0_5, %10, %c0_6] : memref<8x8x512xf32, #tpu.memory_space<vmem>>, vector<1x8x512xf32>
    %12 = vector.shape_cast %11 : vector<1x8x512xf32> to vector<8x512xf32>
    %c0_7 = arith.constant 0 : index
    %13 = arith.index_cast %1 : i32 to index
    %c0_8 = arith.constant 0 : index
    %14 = vector.load %arg5[%c0_7, %13, %c0_8] : memref<8x8x512xf32, #tpu.memory_space<vmem>>, vector<1x8x512xf32>
    %15 = vector.shape_cast %14 : vector<1x8x512xf32> to vector<8x512xf32>
    %16 = vector.broadcast %6 : vector<1x512xf32> to vector<8x512xf32>
    %17 = arith.mulf %16, %12 : vector<8x512xf32>
    %18 = arith.addf %2, %17 : vector<8x512xf32>
    %19 = vector.broadcast %9 : vector<1x512xf32> to vector<8x512xf32>
    %20 = arith.mulf %19, %15 : vector<8x512xf32>
    %21 = arith.subf %18, %20 : vector<8x512xf32>
    %22 = vector.broadcast %6 : vector<1x512xf32> to vector<8x512xf32>
    %23 = arith.mulf %22, %15 : vector<8x512xf32>
    %24 = arith.addf %3, %23 : vector<8x512xf32>
    %25 = vector.broadcast %9 : vector<1x512xf32> to vector<8x512xf32>
    %26 = arith.mulf %25, %12 : vector<8x512xf32>
    %27 = arith.addf %24, %26 : vector<8x512xf32>
    %28 = arith.index_cast %c0_i32 : i32 to index
    %c1 = arith.constant 1 : index
    %c0_9 = arith.constant 0 : index
    %29 = vector.load %arg2[%28, %c1, %c0_9] : memref<4x8x512xf32, #tpu.memory_space<vmem>>, vector<1x1x512xf32>
    %30 = vector.shape_cast %29 : vector<1x1x512xf32> to vector<1x512xf32>
    %31 = arith.index_cast %c0_i32 : i32 to index
    %c1_10 = arith.constant 1 : index
    %c0_11 = arith.constant 0 : index
    %32 = vector.load %arg3[%31, %c1_10, %c0_11] : memref<4x8x512xf32, #tpu.memory_space<vmem>>, vector<1x1x512xf32>
    %33 = vector.shape_cast %32 : vector<1x1x512xf32> to vector<1x512xf32>
    %c1_12 = arith.constant 1 : index
    %34 = arith.index_cast %1 : i32 to index
    %c0_13 = arith.constant 0 : index
    %35 = vector.load %arg4[%c1_12, %34, %c0_13] : memref<8x8x512xf32, #tpu.memory_space<vmem>>, vector<1x8x512xf32>
    %36 = vector.shape_cast %35 : vector<1x8x512xf32> to vector<8x512xf32>
    %c1_14 = arith.constant 1 : index
    %37 = arith.index_cast %1 : i32 to index
    %c0_15 = arith.constant 0 : index
    %38 = vector.load %arg5[%c1_14, %37, %c0_15] : memref<8x8x512xf32, #tpu.memory_space<vmem>>, vector<1x8x512xf32>
    %39 = vector.shape_cast %38 : vector<1x8x512xf32> to vector<8x512xf32>
    %40 = vector.broadcast %30 : vector<1x512xf32> to vector<8x512xf32>
    %41 = arith.mulf %40, %36 : vector<8x512xf32>
    %42 = arith.addf %21, %41 : vector<8x512xf32>
    %43 = vector.broadcast %33 : vector<1x512xf32> to vector<8x512xf32>
    %44 = arith.mulf %43, %39 : vector<8x512xf32>
    %45 = arith.subf %42, %44 : vector<8x512xf32>
    %46 = vector.broadcast %30 : vector<1x512xf32> to vector<8x512xf32>
    %47 = arith.mulf %46, %39 : vector<8x512xf32>
    %48 = arith.addf %27, %47 : vector<8x512xf32>
    %49 = vector.broadcast %33 : vector<1x512xf32> to vector<8x512xf32>
    %50 = arith.mulf %49, %36 : vector<8x512xf32>
    %51 = arith.addf %48, %50 : vector<8x512xf32>
    %52 = arith.index_cast %c0_i32 : i32 to index
    %c2 = arith.constant 2 : index
    %c0_16 = arith.constant 0 : index
    %53 = vector.load %arg2[%52, %c2, %c0_16] : memref<4x8x512xf32, #tpu.memory_space<vmem>>, vector<1x1x512xf32>
    %54 = vector.shape_cast %53 : vector<1x1x512xf32> to vector<1x512xf32>
    %55 = arith.index_cast %c0_i32 : i32 to index
    %c2_17 = arith.constant 2 : index
    %c0_18 = arith.constant 0 : index
    %56 = vector.load %arg3[%55, %c2_17, %c0_18] : memref<4x8x512xf32, #tpu.memory_space<vmem>>, vector<1x1x512xf32>
    %57 = vector.shape_cast %56 : vector<1x1x512xf32> to vector<1x512xf32>
    %c2_19 = arith.constant 2 : index
    %58 = arith.index_cast %1 : i32 to index
    %c0_20 = arith.constant 0 : index
    %59 = vector.load %arg4[%c2_19, %58, %c0_20] : memref<8x8x512xf32, #tpu.memory_space<vmem>>, vector<1x8x512xf32>
    %60 = vector.shape_cast %59 : vector<1x8x512xf32> to vector<8x512xf32>
    %c2_21 = arith.constant 2 : index
    %61 = arith.index_cast %1 : i32 to index
    %c0_22 = arith.constant 0 : index
    %62 = vector.load %arg5[%c2_21, %61, %c0_22] : memref<8x8x512xf32, #tpu.memory_space<vmem>>, vector<1x8x512xf32>
    %63 = vector.shape_cast %62 : vector<1x8x512xf32> to vector<8x512xf32>
    %64 = vector.broadcast %54 : vector<1x512xf32> to vector<8x512xf32>
    %65 = arith.mulf %64, %60 : vector<8x512xf32>
    %66 = arith.addf %45, %65 : vector<8x512xf32>
    %67 = vector.broadcast %57 : vector<1x512xf32> to vector<8x512xf32>
    %68 = arith.mulf %67, %63 : vector<8x512xf32>
    %69 = arith.subf %66, %68 : vector<8x512xf32>
    %70 = vector.broadcast %54 : vector<1x512xf32> to vector<8x512xf32>
    %71 = arith.mulf %70, %63 : vector<8x512xf32>
    %72 = arith.addf %51, %71 : vector<8x512xf32>
    %73 = vector.broadcast %57 : vector<1x512xf32> to vector<8x512xf32>
    %74 = arith.mulf %73, %60 : vector<8x512xf32>
    %75 = arith.addf %72, %74 : vector<8x512xf32>
    %76 = arith.index_cast %c0_i32 : i32 to index
    %c3 = arith.constant 3 : index
    %c0_23 = arith.constant 0 : index
    %77 = vector.load %arg2[%76, %c3, %c0_23] : memref<4x8x512xf32, #tpu.memory_space<vmem>>, vector<1x1x512xf32>
    %78 = vector.shape_cast %77 : vector<1x1x512xf32> to vector<1x512xf32>
    %79 = arith.index_cast %c0_i32 : i32 to index
    %c3_24 = arith.constant 3 : index
    %c0_25 = arith.constant 0 : index
    %80 = vector.load %arg3[%79, %c3_24, %c0_25] : memref<4x8x512xf32, #tpu.memory_space<vmem>>, vector<1x1x512xf32>
    %81 = vector.shape_cast %80 : vector<1x1x512xf32> to vector<1x512xf32>
    %c3_26 = arith.constant 3 : index
    %82 = arith.index_cast %1 : i32 to index
    %c0_27 = arith.constant 0 : index
    %83 = vector.load %arg4[%c3_26, %82, %c0_27] : memref<8x8x512xf32, #tpu.memory_space<vmem>>, vector<1x8x512xf32>
    %84 = vector.shape_cast %83 : vector<1x8x512xf32> to vector<8x512xf32>
    %c3_28 = arith.constant 3 : index
    %85 = arith.index_cast %1 : i32 to index
    %c0_29 = arith.constant 0 : index
    %86 = vector.load %arg5[%c3_28, %85, %c0_29] : memref<8x8x512xf32, #tpu.memory_space<vmem>>, vector<1x8x512xf32>
    %87 = vector.shape_cast %86 : vector<1x8x512xf32> to vector<8x512xf32>
    %88 = vector.broadcast %78 : vector<1x512xf32> to vector<8x512xf32>
    %89 = arith.mulf %88, %84 : vector<8x512xf32>
    %90 = arith.addf %69, %89 : vector<8x512xf32>
    %91 = vector.broadcast %81 : vector<1x512xf32> to vector<8x512xf32>
    %92 = arith.mulf %91, %87 : vector<8x512xf32>
    %93 = arith.subf %90, %92 : vector<8x512xf32>
    %94 = vector.broadcast %78 : vector<1x512xf32> to vector<8x512xf32>
    %95 = arith.mulf %94, %87 : vector<8x512xf32>
    %96 = arith.addf %75, %95 : vector<8x512xf32>
    %97 = vector.broadcast %81 : vector<1x512xf32> to vector<8x512xf32>
    %98 = arith.mulf %97, %84 : vector<8x512xf32>
    %99 = arith.addf %96, %98 : vector<8x512xf32>
    %100 = arith.index_cast %c0_i32 : i32 to index
    %c4 = arith.constant 4 : index
    %c0_30 = arith.constant 0 : index
    %101 = vector.load %arg2[%100, %c4, %c0_30] : memref<4x8x512xf32, #tpu.memory_space<vmem>>, vector<1x1x512xf32>
    %102 = vector.shape_cast %101 : vector<1x1x512xf32> to vector<1x512xf32>
    %103 = arith.index_cast %c0_i32 : i32 to index
    %c4_31 = arith.constant 4 : index
    %c0_32 = arith.constant 0 : index
    %104 = vector.load %arg3[%103, %c4_31, %c0_32] : memref<4x8x512xf32, #tpu.memory_space<vmem>>, vector<1x1x512xf32>
    %105 = vector.shape_cast %104 : vector<1x1x512xf32> to vector<1x512xf32>
    %c4_33 = arith.constant 4 : index
    %106 = arith.index_cast %1 : i32 to index
    %c0_34 = arith.constant 0 : index
    %107 = vector.load %arg4[%c4_33, %106, %c0_34] : memref<8x8x512xf32, #tpu.memory_space<vmem>>, vector<1x8x512xf32>
    %108 = vector.shape_cast %107 : vector<1x8x512xf32> to vector<8x512xf32>
    %c4_35 = arith.constant 4 : index
    %109 = arith.index_cast %1 : i32 to index
    %c0_36 = arith.constant 0 : index
    %110 = vector.load %arg5[%c4_35, %109, %c0_36] : memref<8x8x512xf32, #tpu.memory_space<vmem>>, vector<1x8x512xf32>
    %111 = vector.shape_cast %110 : vector<1x8x512xf32> to vector<8x512xf32>
    %112 = vector.broadcast %102 : vector<1x512xf32> to vector<8x512xf32>
    %113 = arith.mulf %112, %108 : vector<8x512xf32>
    %114 = arith.addf %93, %113 : vector<8x512xf32>
    %115 = vector.broadcast %105 : vector<1x512xf32> to vector<8x512xf32>
    %116 = arith.mulf %115, %111 : vector<8x512xf32>
    %117 = arith.subf %114, %116 : vector<8x512xf32>
    %118 = vector.broadcast %102 : vector<1x512xf32> to vector<8x512xf32>
    %119 = arith.mulf %118, %111 : vector<8x512xf32>
    %120 = arith.addf %99, %119 : vector<8x512xf32>
    %121 = vector.broadcast %105 : vector<1x512xf32> to vector<8x512xf32>
    %122 = arith.mulf %121, %108 : vector<8x512xf32>
    %123 = arith.addf %120, %122 : vector<8x512xf32>
    %124 = arith.index_cast %c0_i32 : i32 to index
    %c5 = arith.constant 5 : index
    %c0_37 = arith.constant 0 : index
    %125 = vector.load %arg2[%124, %c5, %c0_37] : memref<4x8x512xf32, #tpu.memory_space<vmem>>, vector<1x1x512xf32>
    %126 = vector.shape_cast %125 : vector<1x1x512xf32> to vector<1x512xf32>
    %127 = arith.index_cast %c0_i32 : i32 to index
    %c5_38 = arith.constant 5 : index
    %c0_39 = arith.constant 0 : index
    %128 = vector.load %arg3[%127, %c5_38, %c0_39] : memref<4x8x512xf32, #tpu.memory_space<vmem>>, vector<1x1x512xf32>
    %129 = vector.shape_cast %128 : vector<1x1x512xf32> to vector<1x512xf32>
    %c5_40 = arith.constant 5 : index
    %130 = arith.index_cast %1 : i32 to index
    %c0_41 = arith.constant 0 : index
    %131 = vector.load %arg4[%c5_40, %130, %c0_41] : memref<8x8x512xf32, #tpu.memory_space<vmem>>, vector<1x8x512xf32>
    %132 = vector.shape_cast %131 : vector<1x8x512xf32> to vector<8x512xf32>
    %c5_42 = arith.constant 5 : index
    %133 = arith.index_cast %1 : i32 to index
    %c0_43 = arith.constant 0 : index
    %134 = vector.load %arg5[%c5_42, %133, %c0_43] : memref<8x8x512xf32, #tpu.memory_space<vmem>>, vector<1x8x512xf32>
    %135 = vector.shape_cast %134 : vector<1x8x512xf32> to vector<8x512xf32>
    %136 = vector.broadcast %126 : vector<1x512xf32> to vector<8x512xf32>
    %137 = arith.mulf %136, %132 : vector<8x512xf32>
    %138 = arith.addf %117, %137 : vector<8x512xf32>
    %139 = vector.broadcast %129 : vector<1x512xf32> to vector<8x512xf32>
    %140 = arith.mulf %139, %135 : vector<8x512xf32>
    %141 = arith.subf %138, %140 : vector<8x512xf32>
    %142 = vector.broadcast %126 : vector<1x512xf32> to vector<8x512xf32>
    %143 = arith.mulf %142, %135 : vector<8x512xf32>
    %144 = arith.addf %123, %143 : vector<8x512xf32>
    %145 = vector.broadcast %129 : vector<1x512xf32> to vector<8x512xf32>
    %146 = arith.mulf %145, %132 : vector<8x512xf32>
    %147 = arith.addf %144, %146 : vector<8x512xf32>
    %148 = arith.index_cast %c0_i32 : i32 to index
    %c6 = arith.constant 6 : index
    %c0_44 = arith.constant 0 : index
    %149 = vector.load %arg2[%148, %c6, %c0_44] : memref<4x8x512xf32, #tpu.memory_space<vmem>>, vector<1x1x512xf32>
    %150 = vector.shape_cast %149 : vector<1x1x512xf32> to vector<1x512xf32>
    %151 = arith.index_cast %c0_i32 : i32 to index
    %c6_45 = arith.constant 6 : index
    %c0_46 = arith.constant 0 : index
    %152 = vector.load %arg3[%151, %c6_45, %c0_46] : memref<4x8x512xf32, #tpu.memory_space<vmem>>, vector<1x1x512xf32>
    %153 = vector.shape_cast %152 : vector<1x1x512xf32> to vector<1x512xf32>
    %c6_47 = arith.constant 6 : index
    %154 = arith.index_cast %1 : i32 to index
    %c0_48 = arith.constant 0 : index
    %155 = vector.load %arg4[%c6_47, %154, %c0_48] : memref<8x8x512xf32, #tpu.memory_space<vmem>>, vector<1x8x512xf32>
    %156 = vector.shape_cast %155 : vector<1x8x512xf32> to vector<8x512xf32>
    %c6_49 = arith.constant 6 : index
    %157 = arith.index_cast %1 : i32 to index
    %c0_50 = arith.constant 0 : index
    %158 = vector.load %arg5[%c6_49, %157, %c0_50] : memref<8x8x512xf32, #tpu.memory_space<vmem>>, vector<1x8x512xf32>
    %159 = vector.shape_cast %158 : vector<1x8x512xf32> to vector<8x512xf32>
    %160 = vector.broadcast %150 : vector<1x512xf32> to vector<8x512xf32>
    %161 = arith.mulf %160, %156 : vector<8x512xf32>
    %162 = arith.addf %141, %161 : vector<8x512xf32>
    %163 = vector.broadcast %153 : vector<1x512xf32> to vector<8x512xf32>
    %164 = arith.mulf %163, %159 : vector<8x512xf32>
    %165 = arith.subf %162, %164 : vector<8x512xf32>
    %166 = vector.broadcast %150 : vector<1x512xf32> to vector<8x512xf32>
    %167 = arith.mulf %166, %159 : vector<8x512xf32>
    %168 = arith.addf %147, %167 : vector<8x512xf32>
    %169 = vector.broadcast %153 : vector<1x512xf32> to vector<8x512xf32>
    %170 = arith.mulf %169, %156 : vector<8x512xf32>
    %171 = arith.addf %168, %170 : vector<8x512xf32>
    %172 = arith.index_cast %c0_i32 : i32 to index
    %c7 = arith.constant 7 : index
    %c0_51 = arith.constant 0 : index
    %173 = vector.load %arg2[%172, %c7, %c0_51] : memref<4x8x512xf32, #tpu.memory_space<vmem>>, vector<1x1x512xf32>
    %174 = vector.shape_cast %173 : vector<1x1x512xf32> to vector<1x512xf32>
    %175 = arith.index_cast %c0_i32 : i32 to index
    %c7_52 = arith.constant 7 : index
    %c0_53 = arith.constant 0 : index
    %176 = vector.load %arg3[%175, %c7_52, %c0_53] : memref<4x8x512xf32, #tpu.memory_space<vmem>>, vector<1x1x512xf32>
    %177 = vector.shape_cast %176 : vector<1x1x512xf32> to vector<1x512xf32>
    %c7_54 = arith.constant 7 : index
    %178 = arith.index_cast %1 : i32 to index
    %c0_55 = arith.constant 0 : index
    %179 = vector.load %arg4[%c7_54, %178, %c0_55] : memref<8x8x512xf32, #tpu.memory_space<vmem>>, vector<1x8x512xf32>
    %180 = vector.shape_cast %179 : vector<1x8x512xf32> to vector<8x512xf32>
    %c7_56 = arith.constant 7 : index
    %181 = arith.index_cast %1 : i32 to index
    %c0_57 = arith.constant 0 : index
    %182 = vector.load %arg5[%c7_56, %181, %c0_57] : memref<8x8x512xf32, #tpu.memory_space<vmem>>, vector<1x8x512xf32>
    %183 = vector.shape_cast %182 : vector<1x8x512xf32> to vector<8x512xf32>
    %184 = vector.broadcast %174 : vector<1x512xf32> to vector<8x512xf32>
    %185 = arith.mulf %184, %180 : vector<8x512xf32>
    %186 = arith.addf %165, %185 : vector<8x512xf32>
    %187 = vector.broadcast %177 : vector<1x512xf32> to vector<8x512xf32>
    %188 = arith.mulf %187, %183 : vector<8x512xf32>
    %189 = arith.subf %186, %188 : vector<8x512xf32>
    %190 = vector.broadcast %174 : vector<1x512xf32> to vector<8x512xf32>
    %191 = arith.mulf %190, %183 : vector<8x512xf32>
    %192 = arith.addf %171, %191 : vector<8x512xf32>
    %193 = vector.broadcast %177 : vector<1x512xf32> to vector<8x512xf32>
    %194 = arith.mulf %193, %180 : vector<8x512xf32>
    %195 = arith.addf %192, %194 : vector<8x512xf32>
    %196 = arith.index_cast %c0_i32 : i32 to index
    %197 = arith.index_cast %1 : i32 to index
    %c0_58 = arith.constant 0 : index
    %198 = vector.load %arg6[%196, %197, %c0_58] : memref<4x8x512xf32, #tpu.memory_space<vmem>>, vector<1x8x512xf32>
    %199 = vector.shape_cast %198 : vector<1x8x512xf32> to vector<8x512xf32>
    %200 = vector.shape_cast %189 : vector<8x512xf32> to vector<1x8x512xf32>
    tpu.vector_store %arg6[%196, %197, %c0_58], %200 {strides = array<i32>} : memref<4x8x512xf32, #tpu.memory_space<vmem>>, vector<1x8x512xf32>,
    %201 = arith.index_cast %c0_i32 : i32 to index
    %202 = arith.index_cast %1 : i32 to index
    %c0_59 = arith.constant 0 : index
    %203 = vector.load %arg7[%201, %202, %c0_59] : memref<4x8x512xf32, #tpu.memory_space<vmem>>, vector<1x8x512xf32>
    %204 = vector.shape_cast %203 : vector<1x8x512xf32> to vector<8x512xf32>
    %205 = vector.shape_cast %195 : vector<8x512xf32> to vector<1x8x512xf32>
    tpu.vector_store %arg7[%201, %202, %c0_59], %205 {strides = array<i32>} : memref<4x8x512xf32, #tpu.memory_space<vmem>>, vector<1x8x512xf32>,
    %c1_i32 = arith.constant 1 : i32
    %c1_i32_60 = arith.constant 1 : i32
    %c0_i32_61 = arith.constant 0 : i32
    %c8_i32_62 = arith.constant 8 : i32
    %206 = arith.muli %c0_i32_61, %c8_i32_62 : i32
    %207 = tpu.assume_multiple %206, 8 : i32
    %cst_63 = arith.constant 0.000000e+00 : f32
    %208 = vector.broadcast %cst_63 : f32 to vector<8x512xf32>
    %cst_64 = arith.constant 0.000000e+00 : f32
    %209 = vector.broadcast %cst_64 : f32 to vector<8x512xf32>
    %210 = arith.index_cast %c1_i32_60 : i32 to index
    %c0_65 = arith.constant 0 : index
    %c0_66 = arith.constant 0 : index
    %211 = vector.load %arg2[%210, %c0_65, %c0_66] : memref<4x8x512xf32, #tpu.memory_space<vmem>>, vector<1x1x512xf32>
    %212 = vector.shape_cast %211 : vector<1x1x512xf32> to vector<1x512xf32>
    %213 = arith.index_cast %c1_i32_60 : i32 to index
    %c0_67 = arith.constant 0 : index
    %c0_68 = arith.constant 0 : index
    %214 = vector.load %arg3[%213, %c0_67, %c0_68] : memref<4x8x512xf32, #tpu.memory_space<vmem>>, vector<1x1x512xf32>
    %215 = vector.shape_cast %214 : vector<1x1x512xf32> to vector<1x512xf32>
    %c0_69 = arith.constant 0 : index
    %216 = arith.index_cast %207 : i32 to index
    %c0_70 = arith.constant 0 : index
    %217 = vector.load %arg4[%c0_69, %216, %c0_70] : memref<8x8x512xf32, #tpu.memory_space<vmem>>, vector<1x8x512xf32>
    %218 = vector.shape_cast %217 : vector<1x8x512xf32> to vector<8x512xf32>
    %c0_71 = arith.constant 0 : index
    %219 = arith.index_cast %207 : i32 to index
    %c0_72 = arith.constant 0 : index
    %220 = vector.load %arg5[%c0_71, %219, %c0_72] : memref<8x8x512xf32, #tpu.memory_space<vmem>>, vector<1x8x512xf32>
    %221 = vector.shape_cast %220 : vector<1x8x512xf32> to vector<8x512xf32>
    %222 = vector.broadcast %212 : vector<1x512xf32> to vector<8x512xf32>
    %223 = arith.mulf %222, %218 : vector<8x512xf32>
    %224 = arith.addf %208, %223 : vector<8x512xf32>
    %225 = vector.broadcast %215 : vector<1x512xf32> to vector<8x512xf32>
    %226 = arith.mulf %225, %221 : vector<8x512xf32>
    %227 = arith.subf %224, %226 : vector<8x512xf32>
    %228 = vector.broadcast %212 : vector<1x512xf32> to vector<8x512xf32>
    %229 = arith.mulf %228, %221 : vector<8x512xf32>
    %230 = arith.addf %209, %229 : vector<8x512xf32>
    %231 = vector.broadcast %215 : vector<1x512xf32> to vector<8x512xf32>
    %232 = arith.mulf %231, %218 : vector<8x512xf32>
    %233 = arith.addf %230, %232 : vector<8x512xf32>
    %234 = arith.index_cast %c1_i32_60 : i32 to index
    %c1_73 = arith.constant 1 : index
    %c0_74 = arith.constant 0 : index
    %235 = vector.load %arg2[%234, %c1_73, %c0_74] : memref<4x8x512xf32, #tpu.memory_space<vmem>>, vector<1x1x512xf32>
    %236 = vector.shape_cast %235 : vector<1x1x512xf32> to vector<1x512xf32>
    %237 = arith.index_cast %c1_i32_60 : i32 to index
    %c1_75 = arith.constant 1 : index
    %c0_76 = arith.constant 0 : index
    %238 = vector.load %arg3[%237, %c1_75, %c0_76] : memref<4x8x512xf32, #tpu.memory_space<vmem>>, vector<1x1x512xf32>
    %239 = vector.shape_cast %238 : vector<1x1x512xf32> to vector<1x512xf32>
    %c1_77 = arith.constant 1 : index
    %240 = arith.index_cast %207 : i32 to index
    %c0_78 = arith.constant 0 : index
    %241 = vector.load %arg4[%c1_77, %240, %c0_78] : memref<8x8x512xf32, #tpu.memory_space<vmem>>, vector<1x8x512xf32>
    %242 = vector.shape_cast %241 : vector<1x8x512xf32> to vector<8x512xf32>
    %c1_79 = arith.constant 1 : index
    %243 = arith.index_cast %207 : i32 to index
    %c0_80 = arith.constant 0 : index
    %244 = vector.load %arg5[%c1_79, %243, %c0_80] : memref<8x8x512xf32, #tpu.memory_space<vmem>>, vector<1x8x512xf32>
    %245 = vector.shape_cast %244 : vector<1x8x512xf32> to vector<8x512xf32>
    %246 = vector.broadcast %236 : vector<1x512xf32> to vector<8x512xf32>
    %247 = arith.mulf %246, %242 : vector<8x512xf32>
    %248 = arith.addf %227, %247 : vector<8x512xf32>
    %249 = vector.broadcast %239 : vector<1x512xf32> to vector<8x512xf32>
    %250 = arith.mulf %249, %245 : vector<8x512xf32>
    %251 = arith.subf %248, %250 : vector<8x512xf32>
    %252 = vector.broadcast %236 : vector<1x512xf32> to vector<8x512xf32>
    %253 = arith.mulf %252, %245 : vector<8x512xf32>
    %254 = arith.addf %233, %253 : vector<8x512xf32>
    %255 = vector.broadcast %239 : vector<1x512xf32> to vector<8x512xf32>
    %256 = arith.mulf %255, %242 : vector<8x512xf32>
    %257 = arith.addf %254, %256 : vector<8x512xf32>
    %258 = arith.index_cast %c1_i32_60 : i32 to index
    %c2_81 = arith.constant 2 : index
    %c0_82 = arith.constant 0 : index
    %259 = vector.load %arg2[%258, %c2_81, %c0_82] : memref<4x8x512xf32, #tpu.memory_space<vmem>>, vector<1x1x512xf32>
    %260 = vector.shape_cast %259 : vector<1x1x512xf32> to vector<1x512xf32>
    %261 = arith.index_cast %c1_i32_60 : i32 to index
    %c2_83 = arith.constant 2 : index
    %c0_84 = arith.constant 0 : index
    %262 = vector.load %arg3[%261, %c2_83, %c0_84] : memref<4x8x512xf32, #tpu.memory_space<vmem>>, vector<1x1x512xf32>
    %263 = vector.shape_cast %262 : vector<1x1x512xf32> to vector<1x512xf32>
    %c2_85 = arith.constant 2 : index
    %264 = arith.index_cast %207 : i32 to index
    %c0_86 = arith.constant 0 : index
    %265 = vector.load %arg4[%c2_85, %264, %c0_86] : memref<8x8x512xf32, #tpu.memory_space<vmem>>, vector<1x8x512xf32>
    %266 = vector.shape_cast %265 : vector<1x8x512xf32> to vector<8x512xf32>
    %c2_87 = arith.constant 2 : index
    %267 = arith.index_cast %207 : i32 to index
    %c0_88 = arith.constant 0 : index
    %268 = vector.load %arg5[%c2_87, %267, %c0_88] : memref<8x8x512xf32, #tpu.memory_space<vmem>>, vector<1x8x512xf32>
    %269 = vector.shape_cast %268 : vector<1x8x512xf32> to vector<8x512xf32>
    %270 = vector.broadcast %260 : vector<1x512xf32> to vector<8x512xf32>
    %271 = arith.mulf %270, %266 : vector<8x512xf32>
    %272 = arith.addf %251, %271 : vector<8x512xf32>
    %273 = vector.broadcast %263 : vector<1x512xf32> to vector<8x512xf32>
    %274 = arith.mulf %273, %269 : vector<8x512xf32>
    %275 = arith.subf %272, %274 : vector<8x512xf32>
    %276 = vector.broadcast %260 : vector<1x512xf32> to vector<8x512xf32>
    %277 = arith.mulf %276, %269 : vector<8x512xf32>
    %278 = arith.addf %257, %277 : vector<8x512xf32>
    %279 = vector.broadcast %263 : vector<1x512xf32> to vector<8x512xf32>
    %280 = arith.mulf %279, %266 : vector<8x512xf32>
    %281 = arith.addf %278, %280 : vector<8x512xf32>
    %282 = arith.index_cast %c1_i32_60 : i32 to index
    %c3_89 = arith.constant 3 : index
    %c0_90 = arith.constant 0 : index
    %283 = vector.load %arg2[%282, %c3_89, %c0_90] : memref<4x8x512xf32, #tpu.memory_space<vmem>>, vector<1x1x512xf32>
    %284 = vector.shape_cast %283 : vector<1x1x512xf32> to vector<1x512xf32>
    %285 = arith.index_cast %c1_i32_60 : i32 to index
    %c3_91 = arith.constant 3 : index
    %c0_92 = arith.constant 0 : index
    %286 = vector.load %arg3[%285, %c3_91, %c0_92] : memref<4x8x512xf32, #tpu.memory_space<vmem>>, vector<1x1x512xf32>
    %287 = vector.shape_cast %286 : vector<1x1x512xf32> to vector<1x512xf32>
    %c3_93 = arith.constant 3 : index
    %288 = arith.index_cast %207 : i32 to index
    %c0_94 = arith.constant 0 : index
    %289 = vector.load %arg4[%c3_93, %288, %c0_94] : memref<8x8x512xf32, #tpu.memory_space<vmem>>, vector<1x8x512xf32>
    %290 = vector.shape_cast %289 : vector<1x8x512xf32> to vector<8x512xf32>
    %c3_95 = arith.constant 3 : index
    %291 = arith.index_cast %207 : i32 to index
    %c0_96 = arith.constant 0 : index
    %292 = vector.load %arg5[%c3_95, %291, %c0_96] : memref<8x8x512xf32, #tpu.memory_space<vmem>>, vector<1x8x512xf32>
    %293 = vector.shape_cast %292 : vector<1x8x512xf32> to vector<8x512xf32>
    %294 = vector.broadcast %284 : vector<1x512xf32> to vector<8x512xf32>
    %295 = arith.mulf %294, %290 : vector<8x512xf32>
    %296 = arith.addf %275, %295 : vector<8x512xf32>
    %297 = vector.broadcast %287 : vector<1x512xf32> to vector<8x512xf32>
    %298 = arith.mulf %297, %293 : vector<8x512xf32>
    %299 = arith.subf %296, %298 : vector<8x512xf32>
    %300 = vector.broadcast %284 : vector<1x512xf32> to vector<8x512xf32>
    %301 = arith.mulf %300, %293 : vector<8x512xf32>
    %302 = arith.addf %281, %301 : vector<8x512xf32>
    %303 = vector.broadcast %287 : vector<1x512xf32> to vector<8x512xf32>
    %304 = arith.mulf %303, %290 : vector<8x512xf32>
    %305 = arith.addf %302, %304 : vector<8x512xf32>
    %306 = arith.index_cast %c1_i32_60 : i32 to index
    %c4_97 = arith.constant 4 : index
    %c0_98 = arith.constant 0 : index
    %307 = vector.load %arg2[%306, %c4_97, %c0_98] : memref<4x8x512xf32, #tpu.memory_space<vmem>>, vector<1x1x512xf32>
    %308 = vector.shape_cast %307 : vector<1x1x512xf32> to vector<1x512xf32>
    %309 = arith.index_cast %c1_i32_60 : i32 to index
    %c4_99 = arith.constant 4 : index
    %c0_100 = arith.constant 0 : index
    %310 = vector.load %arg3[%309, %c4_99, %c0_100] : memref<4x8x512xf32, #tpu.memory_space<vmem>>, vector<1x1x512xf32>
    %311 = vector.shape_cast %310 : vector<1x1x512xf32> to vector<1x512xf32>
    %c4_101 = arith.constant 4 : index
    %312 = arith.index_cast %207 : i32 to index
    %c0_102 = arith.constant 0 : index
    %313 = vector.load %arg4[%c4_101, %312, %c0_102] : memref<8x8x512xf32, #tpu.memory_space<vmem>>, vector<1x8x512xf32>
    %314 = vector.shape_cast %313 : vector<1x8x512xf32> to vector<8x512xf32>
    %c4_103 = arith.constant 4 : index
    %315 = arith.index_cast %207 : i32 to index
    %c0_104 = arith.constant 0 : index
    %316 = vector.load %arg5[%c4_103, %315, %c0_104] : memref<8x8x512xf32, #tpu.memory_space<vmem>>, vector<1x8x512xf32>
    %317 = vector.shape_cast %316 : vector<1x8x512xf32> to vector<8x512xf32>
    %318 = vector.broadcast %308 : vector<1x512xf32> to vector<8x512xf32>
    %319 = arith.mulf %318, %314 : vector<8x512xf32>
    %320 = arith.addf %299, %319 : vector<8x512xf32>
    %321 = vector.broadcast %311 : vector<1x512xf32> to vector<8x512xf32>
    %322 = arith.mulf %321, %317 : vector<8x512xf32>
    %323 = arith.subf %320, %322 : vector<8x512xf32>
    %324 = vector.broadcast %308 : vector<1x512xf32> to vector<8x512xf32>
    %325 = arith.mulf %324, %317 : vector<8x512xf32>
    %326 = arith.addf %305, %325 : vector<8x512xf32>
    %327 = vector.broadcast %311 : vector<1x512xf32> to vector<8x512xf32>
    %328 = arith.mulf %327, %314 : vector<8x512xf32>
    %329 = arith.addf %326, %328 : vector<8x512xf32>
    %330 = arith.index_cast %c1_i32_60 : i32 to index
    %c5_105 = arith.constant 5 : index
    %c0_106 = arith.constant 0 : index
    %331 = vector.load %arg2[%330, %c5_105, %c0_106] : memref<4x8x512xf32, #tpu.memory_space<vmem>>, vector<1x1x512xf32>
    %332 = vector.shape_cast %331 : vector<1x1x512xf32> to vector<1x512xf32>
    %333 = arith.index_cast %c1_i32_60 : i32 to index
    %c5_107 = arith.constant 5 : index
    %c0_108 = arith.constant 0 : index
    %334 = vector.load %arg3[%333, %c5_107, %c0_108] : memref<4x8x512xf32, #tpu.memory_space<vmem>>, vector<1x1x512xf32>
    %335 = vector.shape_cast %334 : vector<1x1x512xf32> to vector<1x512xf32>
    %c5_109 = arith.constant 5 : index
    %336 = arith.index_cast %207 : i32 to index
    %c0_110 = arith.constant 0 : index
    %337 = vector.load %arg4[%c5_109, %336, %c0_110] : memref<8x8x512xf32, #tpu.memory_space<vmem>>, vector<1x8x512xf32>
    %338 = vector.shape_cast %337 : vector<1x8x512xf32> to vector<8x512xf32>
    %c5_111 = arith.constant 5 : index
    %339 = arith.index_cast %207 : i32 to index
    %c0_112 = arith.constant 0 : index
    %340 = vector.load %arg5[%c5_111, %339, %c0_112] : memref<8x8x512xf32, #tpu.memory_space<vmem>>, vector<1x8x512xf32>
    %341 = vector.shape_cast %340 : vector<1x8x512xf32> to vector<8x512xf32>
    %342 = vector.broadcast %332 : vector<1x512xf32> to vector<8x512xf32>
    %343 = arith.mulf %342, %338 : vector<8x512xf32>
    %344 = arith.addf %323, %343 : vector<8x512xf32>
    %345 = vector.broadcast %335 : vector<1x512xf32> to vector<8x512xf32>
    %346 = arith.mulf %345, %341 : vector<8x512xf32>
    %347 = arith.subf %344, %346 : vector<8x512xf32>
    %348 = vector.broadcast %332 : vector<1x512xf32> to vector<8x512xf32>
    %349 = arith.mulf %348, %341 : vector<8x512xf32>
    %350 = arith.addf %329, %349 : vector<8x512xf32>
    %351 = vector.broadcast %335 : vector<1x512xf32> to vector<8x512xf32>
    %352 = arith.mulf %351, %338 : vector<8x512xf32>
    %353 = arith.addf %350, %352 : vector<8x512xf32>
    %354 = arith.index_cast %c1_i32_60 : i32 to index
    %c6_113 = arith.constant 6 : index
    %c0_114 = arith.constant 0 : index
    %355 = vector.load %arg2[%354, %c6_113, %c0_114] : memref<4x8x512xf32, #tpu.memory_space<vmem>>, vector<1x1x512xf32>
    %356 = vector.shape_cast %355 : vector<1x1x512xf32> to vector<1x512xf32>
    %357 = arith.index_cast %c1_i32_60 : i32 to index
    %c6_115 = arith.constant 6 : index
    %c0_116 = arith.constant 0 : index
    %358 = vector.load %arg3[%357, %c6_115, %c0_116] : memref<4x8x512xf32, #tpu.memory_space<vmem>>, vector<1x1x512xf32>
    %359 = vector.shape_cast %358 : vector<1x1x512xf32> to vector<1x512xf32>
    %c6_117 = arith.constant 6 : index
    %360 = arith.index_cast %207 : i32 to index
    %c0_118 = arith.constant 0 : index
    %361 = vector.load %arg4[%c6_117, %360, %c0_118] : memref<8x8x512xf32, #tpu.memory_space<vmem>>, vector<1x8x512xf32>
    %362 = vector.shape_cast %361 : vector<1x8x512xf32> to vector<8x512xf32>
    %c6_119 = arith.constant 6 : index
    %363 = arith.index_cast %207 : i32 to index
    %c0_120 = arith.constant 0 : index
    %364 = vector.load %arg5[%c6_119, %363, %c0_120] : memref<8x8x512xf32, #tpu.memory_space<vmem>>, vector<1x8x512xf32>
    %365 = vector.shape_cast %364 : vector<1x8x512xf32> to vector<8x512xf32>
    %366 = vector.broadcast %356 : vector<1x512xf32> to vector<8x512xf32>
    %367 = arith.mulf %366, %362 : vector<8x512xf32>
    %368 = arith.addf %347, %367 : vector<8x512xf32>
    %369 = vector.broadcast %359 : vector<1x512xf32> to vector<8x512xf32>
    %370 = arith.mulf %369, %365 : vector<8x512xf32>
    %371 = arith.subf %368, %370 : vector<8x512xf32>
    %372 = vector.broadcast %356 : vector<1x512xf32> to vector<8x512xf32>
    %373 = arith.mulf %372, %365 : vector<8x512xf32>
    %374 = arith.addf %353, %373 : vector<8x512xf32>
    %375 = vector.broadcast %359 : vector<1x512xf32> to vector<8x512xf32>
    %376 = arith.mulf %375, %362 : vector<8x512xf32>
    %377 = arith.addf %374, %376 : vector<8x512xf32>
    %378 = arith.index_cast %c1_i32_60 : i32 to index
    %c7_121 = arith.constant 7 : index
    %c0_122 = arith.constant 0 : index
    %379 = vector.load %arg2[%378, %c7_121, %c0_122] : memref<4x8x512xf32, #tpu.memory_space<vmem>>, vector<1x1x512xf32>
    %380 = vector.shape_cast %379 : vector<1x1x512xf32> to vector<1x512xf32>
    %381 = arith.index_cast %c1_i32_60 : i32 to index
    %c7_123 = arith.constant 7 : index
    %c0_124 = arith.constant 0 : index
    %382 = vector.load %arg3[%381, %c7_123, %c0_124] : memref<4x8x512xf32, #tpu.memory_space<vmem>>, vector<1x1x512xf32>
    %383 = vector.shape_cast %382 : vector<1x1x512xf32> to vector<1x512xf32>
    %c7_125 = arith.constant 7 : index
    %384 = arith.index_cast %207 : i32 to index
    %c0_126 = arith.constant 0 : index
    %385 = vector.load %arg4[%c7_125, %384, %c0_126] : memref<8x8x512xf32, #tpu.memory_space<vmem>>, vector<1x8x512xf32>
    %386 = vector.shape_cast %385 : vector<1x8x512xf32> to vector<8x512xf32>
    %c7_127 = arith.constant 7 : index
    %387 = arith.index_cast %207 : i32 to index
    %c0_128 = arith.constant 0 : index
    %388 = vector.load %arg5[%c7_127, %387, %c0_128] : memref<8x8x512xf32, #tpu.memory_space<vmem>>, vector<1x8x512xf32>
    %389 = vector.shape_cast %388 : vector<1x8x512xf32> to vector<8x512xf32>
    %390 = vector.broadcast %380 : vector<1x512xf32> to vector<8x512xf32>
    %391 = arith.mulf %390, %386 : vector<8x512xf32>
    %392 = arith.addf %371, %391 : vector<8x512xf32>
    %393 = vector.broadcast %383 : vector<1x512xf32> to vector<8x512xf32>
    %394 = arith.mulf %393, %389 : vector<8x512xf32>
    %395 = arith.subf %392, %394 : vector<8x512xf32>
    %396 = vector.broadcast %380 : vector<1x512xf32> to vector<8x512xf32>
    %397 = arith.mulf %396, %389 : vector<8x512xf32>
    %398 = arith.addf %377, %397 : vector<8x512xf32>
    %399 = vector.broadcast %383 : vector<1x512xf32> to vector<8x512xf32>
    %400 = arith.mulf %399, %386 : vector<8x512xf32>
    %401 = arith.addf %398, %400 : vector<8x512xf32>
    %402 = arith.index_cast %c1_i32_60 : i32 to index
    %403 = arith.index_cast %207 : i32 to index
    %c0_129 = arith.constant 0 : index
    %404 = vector.load %arg6[%402, %403, %c0_129] : memref<4x8x512xf32, #tpu.memory_space<vmem>>, vector<1x8x512xf32>
    %405 = vector.shape_cast %404 : vector<1x8x512xf32> to vector<8x512xf32>
    %406 = vector.shape_cast %395 : vector<8x512xf32> to vector<1x8x512xf32>
    tpu.vector_store %arg6[%402, %403, %c0_129], %406 {strides = array<i32>} : memref<4x8x512xf32, #tpu.memory_space<vmem>>, vector<1x8x512xf32>,
    %407 = arith.index_cast %c1_i32_60 : i32 to index
    %408 = arith.index_cast %207 : i32 to index
    %c0_130 = arith.constant 0 : index
    %409 = vector.load %arg7[%407, %408, %c0_130] : memref<4x8x512xf32, #tpu.memory_space<vmem>>, vector<1x8x512xf32>
    %410 = vector.shape_cast %409 : vector<1x8x512xf32> to vector<8x512xf32>
    %411 = vector.shape_cast %401 : vector<8x512xf32> to vector<1x8x512xf32>
    tpu.vector_store %arg7[%407, %408, %c0_130], %411 {strides = array<i32>} : memref<4x8x512xf32, #tpu.memory_space<vmem>>, vector<1x8x512xf32>,
    %c1_i32_131 = arith.constant 1 : i32
    %c2_i32 = arith.constant 2 : i32
    %c0_i32_132 = arith.constant 0 : i32
    %c8_i32_133 = arith.constant 8 : i32
    %412 = arith.muli %c0_i32_132, %c8_i32_133 : i32
    %413 = tpu.assume_multiple %412, 8 : i32
    %cst_134 = arith.constant 0.000000e+00 : f32
    %414 = vector.broadcast %cst_134 : f32 to vector<8x512xf32>
    %cst_135 = arith.constant 0.000000e+00 : f32
    %415 = vector.broadcast %cst_135 : f32 to vector<8x512xf32>
    %416 = arith.index_cast %c2_i32 : i32 to index
    %c0_136 = arith.constant 0 : index
    %c0_137 = arith.constant 0 : index
    %417 = vector.load %arg2[%416, %c0_136, %c0_137] : memref<4x8x512xf32, #tpu.memory_space<vmem>>, vector<1x1x512xf32>
    %418 = vector.shape_cast %417 : vector<1x1x512xf32> to vector<1x512xf32>
    %419 = arith.index_cast %c2_i32 : i32 to index
    %c0_138 = arith.constant 0 : index
    %c0_139 = arith.constant 0 : index
    %420 = vector.load %arg3[%419, %c0_138, %c0_139] : memref<4x8x512xf32, #tpu.memory_space<vmem>>, vector<1x1x512xf32>
    %421 = vector.shape_cast %420 : vector<1x1x512xf32> to vector<1x512xf32>
    %c0_140 = arith.constant 0 : index
    %422 = arith.index_cast %413 : i32 to index
    %c0_141 = arith.constant 0 : index
    %423 = vector.load %arg4[%c0_140, %422, %c0_141] : memref<8x8x512xf32, #tpu.memory_space<vmem>>, vector<1x8x512xf32>
    %424 = vector.shape_cast %423 : vector<1x8x512xf32> to vector<8x512xf32>
    %c0_142 = arith.constant 0 : index
    %425 = arith.index_cast %413 : i32 to index
    %c0_143 = arith.constant 0 : index
    %426 = vector.load %arg5[%c0_142, %425, %c0_143] : memref<8x8x512xf32, #tpu.memory_space<vmem>>, vector<1x8x512xf32>
    %427 = vector.shape_cast %426 : vector<1x8x512xf32> to vector<8x512xf32>
    %428 = vector.broadcast %418 : vector<1x512xf32> to vector<8x512xf32>
    %429 = arith.mulf %428, %424 : vector<8x512xf32>
    %430 = arith.addf %414, %429 : vector<8x512xf32>
    %431 = vector.broadcast %421 : vector<1x512xf32> to vector<8x512xf32>
    %432 = arith.mulf %431, %427 : vector<8x512xf32>
    %433 = arith.subf %430, %432 : vector<8x512xf32>
    %434 = vector.broadcast %418 : vector<1x512xf32> to vector<8x512xf32>
    %435 = arith.mulf %434, %427 : vector<8x512xf32>
    %436 = arith.addf %415, %435 : vector<8x512xf32>
    %437 = vector.broadcast %421 : vector<1x512xf32> to vector<8x512xf32>
    %438 = arith.mulf %437, %424 : vector<8x512xf32>
    %439 = arith.addf %436, %438 : vector<8x512xf32>
    %440 = arith.index_cast %c2_i32 : i32 to index
    %c1_144 = arith.constant 1 : index
    %c0_145 = arith.constant 0 : index
    %441 = vector.load %arg2[%440, %c1_144, %c0_145] : memref<4x8x512xf32, #tpu.memory_space<vmem>>, vector<1x1x512xf32>
    %442 = vector.shape_cast %441 : vector<1x1x512xf32> to vector<1x512xf32>
    %443 = arith.index_cast %c2_i32 : i32 to index
    %c1_146 = arith.constant 1 : index
    %c0_147 = arith.constant 0 : index
    %444 = vector.load %arg3[%443, %c1_146, %c0_147] : memref<4x8x512xf32, #tpu.memory_space<vmem>>, vector<1x1x512xf32>
    %445 = vector.shape_cast %444 : vector<1x1x512xf32> to vector<1x512xf32>
    %c1_148 = arith.constant 1 : index
    %446 = arith.index_cast %413 : i32 to index
    %c0_149 = arith.constant 0 : index
    %447 = vector.load %arg4[%c1_148, %446, %c0_149] : memref<8x8x512xf32, #tpu.memory_space<vmem>>, vector<1x8x512xf32>
    %448 = vector.shape_cast %447 : vector<1x8x512xf32> to vector<8x512xf32>
    %c1_150 = arith.constant 1 : index
    %449 = arith.index_cast %413 : i32 to index
    %c0_151 = arith.constant 0 : index
    %450 = vector.load %arg5[%c1_150, %449, %c0_151] : memref<8x8x512xf32, #tpu.memory_space<vmem>>, vector<1x8x512xf32>
    %451 = vector.shape_cast %450 : vector<1x8x512xf32> to vector<8x512xf32>
    %452 = vector.broadcast %442 : vector<1x512xf32> to vector<8x512xf32>
    %453 = arith.mulf %452, %448 : vector<8x512xf32>
    %454 = arith.addf %433, %453 : vector<8x512xf32>
    %455 = vector.broadcast %445 : vector<1x512xf32> to vector<8x512xf32>
    %456 = arith.mulf %455, %451 : vector<8x512xf32>
    %457 = arith.subf %454, %456 : vector<8x512xf32>
    %458 = vector.broadcast %442 : vector<1x512xf32> to vector<8x512xf32>
    %459 = arith.mulf %458, %451 : vector<8x512xf32>
    %460 = arith.addf %439, %459 : vector<8x512xf32>
    %461 = vector.broadcast %445 : vector<1x512xf32> to vector<8x512xf32>
    %462 = arith.mulf %461, %448 : vector<8x512xf32>
    %463 = arith.addf %460, %462 : vector<8x512xf32>
    %464 = arith.index_cast %c2_i32 : i32 to index
    %c2_152 = arith.constant 2 : index
    %c0_153 = arith.constant 0 : index
    %465 = vector.load %arg2[%464, %c2_152, %c0_153] : memref<4x8x512xf32, #tpu.memory_space<vmem>>, vector<1x1x512xf32>
    %466 = vector.shape_cast %465 : vector<1x1x512xf32> to vector<1x512xf32>
    %467 = arith.index_cast %c2_i32 : i32 to index
    %c2_154 = arith.constant 2 : index
    %c0_155 = arith.constant 0 : index
    %468 = vector.load %arg3[%467, %c2_154, %c0_155] : memref<4x8x512xf32, #tpu.memory_space<vmem>>, vector<1x1x512xf32>
    %469 = vector.shape_cast %468 : vector<1x1x512xf32> to vector<1x512xf32>
    %c2_156 = arith.constant 2 : index
    %470 = arith.index_cast %413 : i32 to index
    %c0_157 = arith.constant 0 : index
    %471 = vector.load %arg4[%c2_156, %470, %c0_157] : memref<8x8x512xf32, #tpu.memory_space<vmem>>, vector<1x8x512xf32>
    %472 = vector.shape_cast %471 : vector<1x8x512xf32> to vector<8x512xf32>
    %c2_158 = arith.constant 2 : index
    %473 = arith.index_cast %413 : i32 to index
    %c0_159 = arith.constant 0 : index
    %474 = vector.load %arg5[%c2_158, %473, %c0_159] : memref<8x8x512xf32, #tpu.memory_space<vmem>>, vector<1x8x512xf32>
    %475 = vector.shape_cast %474 : vector<1x8x512xf32> to vector<8x512xf32>
    %476 = vector.broadcast %466 : vector<1x512xf32> to vector<8x512xf32>
    %477 = arith.mulf %476, %472 : vector<8x512xf32>
    %478 = arith.addf %457, %477 : vector<8x512xf32>
    %479 = vector.broadcast %469 : vector<1x512xf32> to vector<8x512xf32>
    %480 = arith.mulf %479, %475 : vector<8x512xf32>
    %481 = arith.subf %478, %480 : vector<8x512xf32>
    %482 = vector.broadcast %466 : vector<1x512xf32> to vector<8x512xf32>
    %483 = arith.mulf %482, %475 : vector<8x512xf32>
    %484 = arith.addf %463, %483 : vector<8x512xf32>
    %485 = vector.broadcast %469 : vector<1x512xf32> to vector<8x512xf32>
    %486 = arith.mulf %485, %472 : vector<8x512xf32>
    %487 = arith.addf %484, %486 : vector<8x512xf32>
    %488 = arith.index_cast %c2_i32 : i32 to index
    %c3_160 = arith.constant 3 : index
    %c0_161 = arith.constant 0 : index
    %489 = vector.load %arg2[%488, %c3_160, %c0_161] : memref<4x8x512xf32, #tpu.memory_space<vmem>>, vector<1x1x512xf32>
    %490 = vector.shape_cast %489 : vector<1x1x512xf32> to vector<1x512xf32>
    %491 = arith.index_cast %c2_i32 : i32 to index
    %c3_162 = arith.constant 3 : index
    %c0_163 = arith.constant 0 : index
    %492 = vector.load %arg3[%491, %c3_162, %c0_163] : memref<4x8x512xf32, #tpu.memory_space<vmem>>, vector<1x1x512xf32>
    %493 = vector.shape_cast %492 : vector<1x1x512xf32> to vector<1x512xf32>
    %c3_164 = arith.constant 3 : index
    %494 = arith.index_cast %413 : i32 to index
    %c0_165 = arith.constant 0 : index
    %495 = vector.load %arg4[%c3_164, %494, %c0_165] : memref<8x8x512xf32, #tpu.memory_space<vmem>>, vector<1x8x512xf32>
    %496 = vector.shape_cast %495 : vector<1x8x512xf32> to vector<8x512xf32>
    %c3_166 = arith.constant 3 : index
    %497 = arith.index_cast %413 : i32 to index
    %c0_167 = arith.constant 0 : index
    %498 = vector.load %arg5[%c3_166, %497, %c0_167] : memref<8x8x512xf32, #tpu.memory_space<vmem>>, vector<1x8x512xf32>
    %499 = vector.shape_cast %498 : vector<1x8x512xf32> to vector<8x512xf32>
    %500 = vector.broadcast %490 : vector<1x512xf32> to vector<8x512xf32>
    %501 = arith.mulf %500, %496 : vector<8x512xf32>
    %502 = arith.addf %481, %501 : vector<8x512xf32>
    %503 = vector.broadcast %493 : vector<1x512xf32> to vector<8x512xf32>
    %504 = arith.mulf %503, %499 : vector<8x512xf32>
    %505 = arith.subf %502, %504 : vector<8x512xf32>
    %506 = vector.broadcast %490 : vector<1x512xf32> to vector<8x512xf32>
    %507 = arith.mulf %506, %499 : vector<8x512xf32>
    %508 = arith.addf %487, %507 : vector<8x512xf32>
    %509 = vector.broadcast %493 : vector<1x512xf32> to vector<8x512xf32>
    %510 = arith.mulf %509, %496 : vector<8x512xf32>
    %511 = arith.addf %508, %510 : vector<8x512xf32>
    %512 = arith.index_cast %c2_i32 : i32 to index
    %c4_168 = arith.constant 4 : index
    %c0_169 = arith.constant 0 : index
    %513 = vector.load %arg2[%512, %c4_168, %c0_169] : memref<4x8x512xf32, #tpu.memory_space<vmem>>, vector<1x1x512xf32>
    %514 = vector.shape_cast %513 : vector<1x1x512xf32> to vector<1x512xf32>
    %515 = arith.index_cast %c2_i32 : i32 to index
    %c4_170 = arith.constant 4 : index
    %c0_171 = arith.constant 0 : index
    %516 = vector.load %arg3[%515, %c4_170, %c0_171] : memref<4x8x512xf32, #tpu.memory_space<vmem>>, vector<1x1x512xf32>
    %517 = vector.shape_cast %516 : vector<1x1x512xf32> to vector<1x512xf32>
    %c4_172 = arith.constant 4 : index
    %518 = arith.index_cast %413 : i32 to index
    %c0_173 = arith.constant 0 : index
    %519 = vector.load %arg4[%c4_172, %518, %c0_173] : memref<8x8x512xf32, #tpu.memory_space<vmem>>, vector<1x8x512xf32>
    %520 = vector.shape_cast %519 : vector<1x8x512xf32> to vector<8x512xf32>
    %c4_174 = arith.constant 4 : index
    %521 = arith.index_cast %413 : i32 to index
    %c0_175 = arith.constant 0 : index
    %522 = vector.load %arg5[%c4_174, %521, %c0_175] : memref<8x8x512xf32, #tpu.memory_space<vmem>>, vector<1x8x512xf32>
    %523 = vector.shape_cast %522 : vector<1x8x512xf32> to vector<8x512xf32>
    %524 = vector.broadcast %514 : vector<1x512xf32> to vector<8x512xf32>
    %525 = arith.mulf %524, %520 : vector<8x512xf32>
    %526 = arith.addf %505, %525 : vector<8x512xf32>
    %527 = vector.broadcast %517 : vector<1x512xf32> to vector<8x512xf32>
    %528 = arith.mulf %527, %523 : vector<8x512xf32>
    %529 = arith.subf %526, %528 : vector<8x512xf32>
    %530 = vector.broadcast %514 : vector<1x512xf32> to vector<8x512xf32>
    %531 = arith.mulf %530, %523 : vector<8x512xf32>
    %532 = arith.addf %511, %531 : vector<8x512xf32>
    %533 = vector.broadcast %517 : vector<1x512xf32> to vector<8x512xf32>
    %534 = arith.mulf %533, %520 : vector<8x512xf32>
    %535 = arith.addf %532, %534 : vector<8x512xf32>
    %536 = arith.index_cast %c2_i32 : i32 to index
    %c5_176 = arith.constant 5 : index
    %c0_177 = arith.constant 0 : index
    %537 = vector.load %arg2[%536, %c5_176, %c0_177] : memref<4x8x512xf32, #tpu.memory_space<vmem>>, vector<1x1x512xf32>
    %538 = vector.shape_cast %537 : vector<1x1x512xf32> to vector<1x512xf32>
    %539 = arith.index_cast %c2_i32 : i32 to index
    %c5_178 = arith.constant 5 : index
    %c0_179 = arith.constant 0 : index
    %540 = vector.load %arg3[%539, %c5_178, %c0_179] : memref<4x8x512xf32, #tpu.memory_space<vmem>>, vector<1x1x512xf32>
    %541 = vector.shape_cast %540 : vector<1x1x512xf32> to vector<1x512xf32>
    %c5_180 = arith.constant 5 : index
    %542 = arith.index_cast %413 : i32 to index
    %c0_181 = arith.constant 0 : index
    %543 = vector.load %arg4[%c5_180, %542, %c0_181] : memref<8x8x512xf32, #tpu.memory_space<vmem>>, vector<1x8x512xf32>
    %544 = vector.shape_cast %543 : vector<1x8x512xf32> to vector<8x512xf32>
    %c5_182 = arith.constant 5 : index
    %545 = arith.index_cast %413 : i32 to index
    %c0_183 = arith.constant 0 : index
    %546 = vector.load %arg5[%c5_182, %545, %c0_183] : memref<8x8x512xf32, #tpu.memory_space<vmem>>, vector<1x8x512xf32>
    %547 = vector.shape_cast %546 : vector<1x8x512xf32> to vector<8x512xf32>
    %548 = vector.broadcast %538 : vector<1x512xf32> to vector<8x512xf32>
    %549 = arith.mulf %548, %544 : vector<8x512xf32>
    %550 = arith.addf %529, %549 : vector<8x512xf32>
    %551 = vector.broadcast %541 : vector<1x512xf32> to vector<8x512xf32>
    %552 = arith.mulf %551, %547 : vector<8x512xf32>
    %553 = arith.subf %550, %552 : vector<8x512xf32>
    %554 = vector.broadcast %538 : vector<1x512xf32> to vector<8x512xf32>
    %555 = arith.mulf %554, %547 : vector<8x512xf32>
    %556 = arith.addf %535, %555 : vector<8x512xf32>
    %557 = vector.broadcast %541 : vector<1x512xf32> to vector<8x512xf32>
    %558 = arith.mulf %557, %544 : vector<8x512xf32>
    %559 = arith.addf %556, %558 : vector<8x512xf32>
    %560 = arith.index_cast %c2_i32 : i32 to index
    %c6_184 = arith.constant 6 : index
    %c0_185 = arith.constant 0 : index
    %561 = vector.load %arg2[%560, %c6_184, %c0_185] : memref<4x8x512xf32, #tpu.memory_space<vmem>>, vector<1x1x512xf32>
    %562 = vector.shape_cast %561 : vector<1x1x512xf32> to vector<1x512xf32>
    %563 = arith.index_cast %c2_i32 : i32 to index
    %c6_186 = arith.constant 6 : index
    %c0_187 = arith.constant 0 : index
    %564 = vector.load %arg3[%563, %c6_186, %c0_187] : memref<4x8x512xf32, #tpu.memory_space<vmem>>, vector<1x1x512xf32>
    %565 = vector.shape_cast %564 : vector<1x1x512xf32> to vector<1x512xf32>
    %c6_188 = arith.constant 6 : index
    %566 = arith.index_cast %413 : i32 to index
    %c0_189 = arith.constant 0 : index
    %567 = vector.load %arg4[%c6_188, %566, %c0_189] : memref<8x8x512xf32, #tpu.memory_space<vmem>>, vector<1x8x512xf32>
    %568 = vector.shape_cast %567 : vector<1x8x512xf32> to vector<8x512xf32>
    %c6_190 = arith.constant 6 : index
    %569 = arith.index_cast %413 : i32 to index
    %c0_191 = arith.constant 0 : index
    %570 = vector.load %arg5[%c6_190, %569, %c0_191] : memref<8x8x512xf32, #tpu.memory_space<vmem>>, vector<1x8x512xf32>
    %571 = vector.shape_cast %570 : vector<1x8x512xf32> to vector<8x512xf32>
    %572 = vector.broadcast %562 : vector<1x512xf32> to vector<8x512xf32>
    %573 = arith.mulf %572, %568 : vector<8x512xf32>
    %574 = arith.addf %553, %573 : vector<8x512xf32>
    %575 = vector.broadcast %565 : vector<1x512xf32> to vector<8x512xf32>
    %576 = arith.mulf %575, %571 : vector<8x512xf32>
    %577 = arith.subf %574, %576 : vector<8x512xf32>
    %578 = vector.broadcast %562 : vector<1x512xf32> to vector<8x512xf32>
    %579 = arith.mulf %578, %571 : vector<8x512xf32>
    %580 = arith.addf %559, %579 : vector<8x512xf32>
    %581 = vector.broadcast %565 : vector<1x512xf32> to vector<8x512xf32>
    %582 = arith.mulf %581, %568 : vector<8x512xf32>
    %583 = arith.addf %580, %582 : vector<8x512xf32>
    %584 = arith.index_cast %c2_i32 : i32 to index
    %c7_192 = arith.constant 7 : index
    %c0_193 = arith.constant 0 : index
    %585 = vector.load %arg2[%584, %c7_192, %c0_193] : memref<4x8x512xf32, #tpu.memory_space<vmem>>, vector<1x1x512xf32>
    %586 = vector.shape_cast %585 : vector<1x1x512xf32> to vector<1x512xf32>
    %587 = arith.index_cast %c2_i32 : i32 to index
    %c7_194 = arith.constant 7 : index
    %c0_195 = arith.constant 0 : index
    %588 = vector.load %arg3[%587, %c7_194, %c0_195] : memref<4x8x512xf32, #tpu.memory_space<vmem>>, vector<1x1x512xf32>
    %589 = vector.shape_cast %588 : vector<1x1x512xf32> to vector<1x512xf32>
    %c7_196 = arith.constant 7 : index
    %590 = arith.index_cast %413 : i32 to index
    %c0_197 = arith.constant 0 : index
    %591 = vector.load %arg4[%c7_196, %590, %c0_197] : memref<8x8x512xf32, #tpu.memory_space<vmem>>, vector<1x8x512xf32>
    %592 = vector.shape_cast %591 : vector<1x8x512xf32> to vector<8x512xf32>
    %c7_198 = arith.constant 7 : index
    %593 = arith.index_cast %413 : i32 to index
    %c0_199 = arith.constant 0 : index
    %594 = vector.load %arg5[%c7_198, %593, %c0_199] : memref<8x8x512xf32, #tpu.memory_space<vmem>>, vector<1x8x512xf32>
    %595 = vector.shape_cast %594 : vector<1x8x512xf32> to vector<8x512xf32>
    %596 = vector.broadcast %586 : vector<1x512xf32> to vector<8x512xf32>
    %597 = arith.mulf %596, %592 : vector<8x512xf32>
    %598 = arith.addf %577, %597 : vector<8x512xf32>
    %599 = vector.broadcast %589 : vector<1x512xf32> to vector<8x512xf32>
    %600 = arith.mulf %599, %595 : vector<8x512xf32>
    %601 = arith.subf %598, %600 : vector<8x512xf32>
    %602 = vector.broadcast %586 : vector<1x512xf32> to vector<8x512xf32>
    %603 = arith.mulf %602, %595 : vector<8x512xf32>
    %604 = arith.addf %583, %603 : vector<8x512xf32>
    %605 = vector.broadcast %589 : vector<1x512xf32> to vector<8x512xf32>
    %606 = arith.mulf %605, %592 : vector<8x512xf32>
    %607 = arith.addf %604, %606 : vector<8x512xf32>
    %608 = arith.index_cast %c2_i32 : i32 to index
    %609 = arith.index_cast %413 : i32 to index
    %c0_200 = arith.constant 0 : index
    %610 = vector.load %arg6[%608, %609, %c0_200] : memref<4x8x512xf32, #tpu.memory_space<vmem>>, vector<1x8x512xf32>
    %611 = vector.shape_cast %610 : vector<1x8x512xf32> to vector<8x512xf32>
    %612 = vector.shape_cast %601 : vector<8x512xf32> to vector<1x8x512xf32>
    tpu.vector_store %arg6[%608, %609, %c0_200], %612 {strides = array<i32>} : memref<4x8x512xf32, #tpu.memory_space<vmem>>, vector<1x8x512xf32>,
    %613 = arith.index_cast %c2_i32 : i32 to index
    %614 = arith.index_cast %413 : i32 to index
    %c0_201 = arith.constant 0 : index
    %615 = vector.load %arg7[%613, %614, %c0_201] : memref<4x8x512xf32, #tpu.memory_space<vmem>>, vector<1x8x512xf32>
    %616 = vector.shape_cast %615 : vector<1x8x512xf32> to vector<8x512xf32>
    %617 = vector.shape_cast %607 : vector<8x512xf32> to vector<1x8x512xf32>
    tpu.vector_store %arg7[%613, %614, %c0_201], %617 {strides = array<i32>} : memref<4x8x512xf32, #tpu.memory_space<vmem>>, vector<1x8x512xf32>,
    %c1_i32_202 = arith.constant 1 : i32
    %c3_i32 = arith.constant 3 : i32
    %c0_i32_203 = arith.constant 0 : i32
    %c8_i32_204 = arith.constant 8 : i32
    %618 = arith.muli %c0_i32_203, %c8_i32_204 : i32
    %619 = tpu.assume_multiple %618, 8 : i32
    %cst_205 = arith.constant 0.000000e+00 : f32
    %620 = vector.broadcast %cst_205 : f32 to vector<8x512xf32>
    %cst_206 = arith.constant 0.000000e+00 : f32
    %621 = vector.broadcast %cst_206 : f32 to vector<8x512xf32>
    %622 = arith.index_cast %c3_i32 : i32 to index
    %c0_207 = arith.constant 0 : index
    %c0_208 = arith.constant 0 : index
    %623 = vector.load %arg2[%622, %c0_207, %c0_208] : memref<4x8x512xf32, #tpu.memory_space<vmem>>, vector<1x1x512xf32>
    %624 = vector.shape_cast %623 : vector<1x1x512xf32> to vector<1x512xf32>
    %625 = arith.index_cast %c3_i32 : i32 to index
    %c0_209 = arith.constant 0 : index
    %c0_210 = arith.constant 0 : index
    %626 = vector.load %arg3[%625, %c0_209, %c0_210] : memref<4x8x512xf32, #tpu.memory_space<vmem>>, vector<1x1x512xf32>
    %627 = vector.shape_cast %626 : vector<1x1x512xf32> to vector<1x512xf32>
    %c0_211 = arith.constant 0 : index
    %628 = arith.index_cast %619 : i32 to index
    %c0_212 = arith.constant 0 : index
    %629 = vector.load %arg4[%c0_211, %628, %c0_212] : memref<8x8x512xf32, #tpu.memory_space<vmem>>, vector<1x8x512xf32>
    %630 = vector.shape_cast %629 : vector<1x8x512xf32> to vector<8x512xf32>
    %c0_213 = arith.constant 0 : index
    %631 = arith.index_cast %619 : i32 to index
    %c0_214 = arith.constant 0 : index
    %632 = vector.load %arg5[%c0_213, %631, %c0_214] : memref<8x8x512xf32, #tpu.memory_space<vmem>>, vector<1x8x512xf32>
    %633 = vector.shape_cast %632 : vector<1x8x512xf32> to vector<8x512xf32>
    %634 = vector.broadcast %624 : vector<1x512xf32> to vector<8x512xf32>
    %635 = arith.mulf %634, %630 : vector<8x512xf32>
    %636 = arith.addf %620, %635 : vector<8x512xf32>
    %637 = vector.broadcast %627 : vector<1x512xf32> to vector<8x512xf32>
    %638 = arith.mulf %637, %633 : vector<8x512xf32>
    %639 = arith.subf %636, %638 : vector<8x512xf32>
    %640 = vector.broadcast %624 : vector<1x512xf32> to vector<8x512xf32>
    %641 = arith.mulf %640, %633 : vector<8x512xf32>
    %642 = arith.addf %621, %641 : vector<8x512xf32>
    %643 = vector.broadcast %627 : vector<1x512xf32> to vector<8x512xf32>
    %644 = arith.mulf %643, %630 : vector<8x512xf32>
    %645 = arith.addf %642, %644 : vector<8x512xf32>
    %646 = arith.index_cast %c3_i32 : i32 to index
    %c1_215 = arith.constant 1 : index
    %c0_216 = arith.constant 0 : index
    %647 = vector.load %arg2[%646, %c1_215, %c0_216] : memref<4x8x512xf32, #tpu.memory_space<vmem>>, vector<1x1x512xf32>
    %648 = vector.shape_cast %647 : vector<1x1x512xf32> to vector<1x512xf32>
    %649 = arith.index_cast %c3_i32 : i32 to index
    %c1_217 = arith.constant 1 : index
    %c0_218 = arith.constant 0 : index
    %650 = vector.load %arg3[%649, %c1_217, %c0_218] : memref<4x8x512xf32, #tpu.memory_space<vmem>>, vector<1x1x512xf32>
    %651 = vector.shape_cast %650 : vector<1x1x512xf32> to vector<1x512xf32>
    %c1_219 = arith.constant 1 : index
    %652 = arith.index_cast %619 : i32 to index
    %c0_220 = arith.constant 0 : index
    %653 = vector.load %arg4[%c1_219, %652, %c0_220] : memref<8x8x512xf32, #tpu.memory_space<vmem>>, vector<1x8x512xf32>
    %654 = vector.shape_cast %653 : vector<1x8x512xf32> to vector<8x512xf32>
    %c1_221 = arith.constant 1 : index
    %655 = arith.index_cast %619 : i32 to index
    %c0_222 = arith.constant 0 : index
    %656 = vector.load %arg5[%c1_221, %655, %c0_222] : memref<8x8x512xf32, #tpu.memory_space<vmem>>, vector<1x8x512xf32>
    %657 = vector.shape_cast %656 : vector<1x8x512xf32> to vector<8x512xf32>
    %658 = vector.broadcast %648 : vector<1x512xf32> to vector<8x512xf32>
    %659 = arith.mulf %658, %654 : vector<8x512xf32>
    %660 = arith.addf %639, %659 : vector<8x512xf32>
    %661 = vector.broadcast %651 : vector<1x512xf32> to vector<8x512xf32>
    %662 = arith.mulf %661, %657 : vector<8x512xf32>
    %663 = arith.subf %660, %662 : vector<8x512xf32>
    %664 = vector.broadcast %648 : vector<1x512xf32> to vector<8x512xf32>
    %665 = arith.mulf %664, %657 : vector<8x512xf32>
    %666 = arith.addf %645, %665 : vector<8x512xf32>
    %667 = vector.broadcast %651 : vector<1x512xf32> to vector<8x512xf32>
    %668 = arith.mulf %667, %654 : vector<8x512xf32>
    %669 = arith.addf %666, %668 : vector<8x512xf32>
    %670 = arith.index_cast %c3_i32 : i32 to index
    %c2_223 = arith.constant 2 : index
    %c0_224 = arith.constant 0 : index
    %671 = vector.load %arg2[%670, %c2_223, %c0_224] : memref<4x8x512xf32, #tpu.memory_space<vmem>>, vector<1x1x512xf32>
    %672 = vector.shape_cast %671 : vector<1x1x512xf32> to vector<1x512xf32>
    %673 = arith.index_cast %c3_i32 : i32 to index
    %c2_225 = arith.constant 2 : index
    %c0_226 = arith.constant 0 : index
    %674 = vector.load %arg3[%673, %c2_225, %c0_226] : memref<4x8x512xf32, #tpu.memory_space<vmem>>, vector<1x1x512xf32>
    %675 = vector.shape_cast %674 : vector<1x1x512xf32> to vector<1x512xf32>
    %c2_227 = arith.constant 2 : index
    %676 = arith.index_cast %619 : i32 to index
    %c0_228 = arith.constant 0 : index
    %677 = vector.load %arg4[%c2_227, %676, %c0_228] : memref<8x8x512xf32, #tpu.memory_space<vmem>>, vector<1x8x512xf32>
    %678 = vector.shape_cast %677 : vector<1x8x512xf32> to vector<8x512xf32>
    %c2_229 = arith.constant 2 : index
    %679 = arith.index_cast %619 : i32 to index
    %c0_230 = arith.constant 0 : index
    %680 = vector.load %arg5[%c2_229, %679, %c0_230] : memref<8x8x512xf32, #tpu.memory_space<vmem>>, vector<1x8x512xf32>
    %681 = vector.shape_cast %680 : vector<1x8x512xf32> to vector<8x512xf32>
    %682 = vector.broadcast %672 : vector<1x512xf32> to vector<8x512xf32>
    %683 = arith.mulf %682, %678 : vector<8x512xf32>
    %684 = arith.addf %663, %683 : vector<8x512xf32>
    %685 = vector.broadcast %675 : vector<1x512xf32> to vector<8x512xf32>
    %686 = arith.mulf %685, %681 : vector<8x512xf32>
    %687 = arith.subf %684, %686 : vector<8x512xf32>
    %688 = vector.broadcast %672 : vector<1x512xf32> to vector<8x512xf32>
    %689 = arith.mulf %688, %681 : vector<8x512xf32>
    %690 = arith.addf %669, %689 : vector<8x512xf32>
    %691 = vector.broadcast %675 : vector<1x512xf32> to vector<8x512xf32>
    %692 = arith.mulf %691, %678 : vector<8x512xf32>
    %693 = arith.addf %690, %692 : vector<8x512xf32>
    %694 = arith.index_cast %c3_i32 : i32 to index
    %c3_231 = arith.constant 3 : index
    %c0_232 = arith.constant 0 : index
    %695 = vector.load %arg2[%694, %c3_231, %c0_232] : memref<4x8x512xf32, #tpu.memory_space<vmem>>, vector<1x1x512xf32>
    %696 = vector.shape_cast %695 : vector<1x1x512xf32> to vector<1x512xf32>
    %697 = arith.index_cast %c3_i32 : i32 to index
    %c3_233 = arith.constant 3 : index
    %c0_234 = arith.constant 0 : index
    %698 = vector.load %arg3[%697, %c3_233, %c0_234] : memref<4x8x512xf32, #tpu.memory_space<vmem>>, vector<1x1x512xf32>
    %699 = vector.shape_cast %698 : vector<1x1x512xf32> to vector<1x512xf32>
    %c3_235 = arith.constant 3 : index
    %700 = arith.index_cast %619 : i32 to index
    %c0_236 = arith.constant 0 : index
    %701 = vector.load %arg4[%c3_235, %700, %c0_236] : memref<8x8x512xf32, #tpu.memory_space<vmem>>, vector<1x8x512xf32>
    %702 = vector.shape_cast %701 : vector<1x8x512xf32> to vector<8x512xf32>
    %c3_237 = arith.constant 3 : index
    %703 = arith.index_cast %619 : i32 to index
    %c0_238 = arith.constant 0 : index
    %704 = vector.load %arg5[%c3_237, %703, %c0_238] : memref<8x8x512xf32, #tpu.memory_space<vmem>>, vector<1x8x512xf32>
    %705 = vector.shape_cast %704 : vector<1x8x512xf32> to vector<8x512xf32>
    %706 = vector.broadcast %696 : vector<1x512xf32> to vector<8x512xf32>
    %707 = arith.mulf %706, %702 : vector<8x512xf32>
    %708 = arith.addf %687, %707 : vector<8x512xf32>
    %709 = vector.broadcast %699 : vector<1x512xf32> to vector<8x512xf32>
    %710 = arith.mulf %709, %705 : vector<8x512xf32>
    %711 = arith.subf %708, %710 : vector<8x512xf32>
    %712 = vector.broadcast %696 : vector<1x512xf32> to vector<8x512xf32>
    %713 = arith.mulf %712, %705 : vector<8x512xf32>
    %714 = arith.addf %693, %713 : vector<8x512xf32>
    %715 = vector.broadcast %699 : vector<1x512xf32> to vector<8x512xf32>
    %716 = arith.mulf %715, %702 : vector<8x512xf32>
    %717 = arith.addf %714, %716 : vector<8x512xf32>
    %718 = arith.index_cast %c3_i32 : i32 to index
    %c4_239 = arith.constant 4 : index
    %c0_240 = arith.constant 0 : index
    %719 = vector.load %arg2[%718, %c4_239, %c0_240] : memref<4x8x512xf32, #tpu.memory_space<vmem>>, vector<1x1x512xf32>
    %720 = vector.shape_cast %719 : vector<1x1x512xf32> to vector<1x512xf32>
    %721 = arith.index_cast %c3_i32 : i32 to index
    %c4_241 = arith.constant 4 : index
    %c0_242 = arith.constant 0 : index
    %722 = vector.load %arg3[%721, %c4_241, %c0_242] : memref<4x8x512xf32, #tpu.memory_space<vmem>>, vector<1x1x512xf32>
    %723 = vector.shape_cast %722 : vector<1x1x512xf32> to vector<1x512xf32>
    %c4_243 = arith.constant 4 : index
    %724 = arith.index_cast %619 : i32 to index
    %c0_244 = arith.constant 0 : index
    %725 = vector.load %arg4[%c4_243, %724, %c0_244] : memref<8x8x512xf32, #tpu.memory_space<vmem>>, vector<1x8x512xf32>
    %726 = vector.shape_cast %725 : vector<1x8x512xf32> to vector<8x512xf32>
    %c4_245 = arith.constant 4 : index
    %727 = arith.index_cast %619 : i32 to index
    %c0_246 = arith.constant 0 : index
    %728 = vector.load %arg5[%c4_245, %727, %c0_246] : memref<8x8x512xf32, #tpu.memory_space<vmem>>, vector<1x8x512xf32>
    %729 = vector.shape_cast %728 : vector<1x8x512xf32> to vector<8x512xf32>
    %730 = vector.broadcast %720 : vector<1x512xf32> to vector<8x512xf32>
    %731 = arith.mulf %730, %726 : vector<8x512xf32>
    %732 = arith.addf %711, %731 : vector<8x512xf32>
    %733 = vector.broadcast %723 : vector<1x512xf32> to vector<8x512xf32>
    %734 = arith.mulf %733, %729 : vector<8x512xf32>
    %735 = arith.subf %732, %734 : vector<8x512xf32>
    %736 = vector.broadcast %720 : vector<1x512xf32> to vector<8x512xf32>
    %737 = arith.mulf %736, %729 : vector<8x512xf32>
    %738 = arith.addf %717, %737 : vector<8x512xf32>
    %739 = vector.broadcast %723 : vector<1x512xf32> to vector<8x512xf32>
    %740 = arith.mulf %739, %726 : vector<8x512xf32>
    %741 = arith.addf %738, %740 : vector<8x512xf32>
    %742 = arith.index_cast %c3_i32 : i32 to index
    %c5_247 = arith.constant 5 : index
    %c0_248 = arith.constant 0 : index
    %743 = vector.load %arg2[%742, %c5_247, %c0_248] : memref<4x8x512xf32, #tpu.memory_space<vmem>>, vector<1x1x512xf32>
    %744 = vector.shape_cast %743 : vector<1x1x512xf32> to vector<1x512xf32>
    %745 = arith.index_cast %c3_i32 : i32 to index
    %c5_249 = arith.constant 5 : index
    %c0_250 = arith.constant 0 : index
    %746 = vector.load %arg3[%745, %c5_249, %c0_250] : memref<4x8x512xf32, #tpu.memory_space<vmem>>, vector<1x1x512xf32>
    %747 = vector.shape_cast %746 : vector<1x1x512xf32> to vector<1x512xf32>
    %c5_251 = arith.constant 5 : index
    %748 = arith.index_cast %619 : i32 to index
    %c0_252 = arith.constant 0 : index
    %749 = vector.load %arg4[%c5_251, %748, %c0_252] : memref<8x8x512xf32, #tpu.memory_space<vmem>>, vector<1x8x512xf32>
    %750 = vector.shape_cast %749 : vector<1x8x512xf32> to vector<8x512xf32>
    %c5_253 = arith.constant 5 : index
    %751 = arith.index_cast %619 : i32 to index
    %c0_254 = arith.constant 0 : index
    %752 = vector.load %arg5[%c5_253, %751, %c0_254] : memref<8x8x512xf32, #tpu.memory_space<vmem>>, vector<1x8x512xf32>
    %753 = vector.shape_cast %752 : vector<1x8x512xf32> to vector<8x512xf32>
    %754 = vector.broadcast %744 : vector<1x512xf32> to vector<8x512xf32>
    %755 = arith.mulf %754, %750 : vector<8x512xf32>
    %756 = arith.addf %735, %755 : vector<8x512xf32>
    %757 = vector.broadcast %747 : vector<1x512xf32> to vector<8x512xf32>
    %758 = arith.mulf %757, %753 : vector<8x512xf32>
    %759 = arith.subf %756, %758 : vector<8x512xf32>
    %760 = vector.broadcast %744 : vector<1x512xf32> to vector<8x512xf32>
    %761 = arith.mulf %760, %753 : vector<8x512xf32>
    %762 = arith.addf %741, %761 : vector<8x512xf32>
    %763 = vector.broadcast %747 : vector<1x512xf32> to vector<8x512xf32>
    %764 = arith.mulf %763, %750 : vector<8x512xf32>
    %765 = arith.addf %762, %764 : vector<8x512xf32>
    %766 = arith.index_cast %c3_i32 : i32 to index
    %c6_255 = arith.constant 6 : index
    %c0_256 = arith.constant 0 : index
    %767 = vector.load %arg2[%766, %c6_255, %c0_256] : memref<4x8x512xf32, #tpu.memory_space<vmem>>, vector<1x1x512xf32>
    %768 = vector.shape_cast %767 : vector<1x1x512xf32> to vector<1x512xf32>
    %769 = arith.index_cast %c3_i32 : i32 to index
    %c6_257 = arith.constant 6 : index
    %c0_258 = arith.constant 0 : index
    %770 = vector.load %arg3[%769, %c6_257, %c0_258] : memref<4x8x512xf32, #tpu.memory_space<vmem>>, vector<1x1x512xf32>
    %771 = vector.shape_cast %770 : vector<1x1x512xf32> to vector<1x512xf32>
    %c6_259 = arith.constant 6 : index
    %772 = arith.index_cast %619 : i32 to index
    %c0_260 = arith.constant 0 : index
    %773 = vector.load %arg4[%c6_259, %772, %c0_260] : memref<8x8x512xf32, #tpu.memory_space<vmem>>, vector<1x8x512xf32>
    %774 = vector.shape_cast %773 : vector<1x8x512xf32> to vector<8x512xf32>
    %c6_261 = arith.constant 6 : index
    %775 = arith.index_cast %619 : i32 to index
    %c0_262 = arith.constant 0 : index
    %776 = vector.load %arg5[%c6_261, %775, %c0_262] : memref<8x8x512xf32, #tpu.memory_space<vmem>>, vector<1x8x512xf32>
    %777 = vector.shape_cast %776 : vector<1x8x512xf32> to vector<8x512xf32>
    %778 = vector.broadcast %768 : vector<1x512xf32> to vector<8x512xf32>
    %779 = arith.mulf %778, %774 : vector<8x512xf32>
    %780 = arith.addf %759, %779 : vector<8x512xf32>
    %781 = vector.broadcast %771 : vector<1x512xf32> to vector<8x512xf32>
    %782 = arith.mulf %781, %777 : vector<8x512xf32>
    %783 = arith.subf %780, %782 : vector<8x512xf32>
    %784 = vector.broadcast %768 : vector<1x512xf32> to vector<8x512xf32>
    %785 = arith.mulf %784, %777 : vector<8x512xf32>
    %786 = arith.addf %765, %785 : vector<8x512xf32>
    %787 = vector.broadcast %771 : vector<1x512xf32> to vector<8x512xf32>
    %788 = arith.mulf %787, %774 : vector<8x512xf32>
    %789 = arith.addf %786, %788 : vector<8x512xf32>
    %790 = arith.index_cast %c3_i32 : i32 to index
    %c7_263 = arith.constant 7 : index
    %c0_264 = arith.constant 0 : index
    %791 = vector.load %arg2[%790, %c7_263, %c0_264] : memref<4x8x512xf32, #tpu.memory_space<vmem>>, vector<1x1x512xf32>
    %792 = vector.shape_cast %791 : vector<1x1x512xf32> to vector<1x512xf32>
    %793 = arith.index_cast %c3_i32 : i32 to index
    %c7_265 = arith.constant 7 : index
    %c0_266 = arith.constant 0 : index
    %794 = vector.load %arg3[%793, %c7_265, %c0_266] : memref<4x8x512xf32, #tpu.memory_space<vmem>>, vector<1x1x512xf32>
    %795 = vector.shape_cast %794 : vector<1x1x512xf32> to vector<1x512xf32>
    %c7_267 = arith.constant 7 : index
    %796 = arith.index_cast %619 : i32 to index
    %c0_268 = arith.constant 0 : index
    %797 = vector.load %arg4[%c7_267, %796, %c0_268] : memref<8x8x512xf32, #tpu.memory_space<vmem>>, vector<1x8x512xf32>
    %798 = vector.shape_cast %797 : vector<1x8x512xf32> to vector<8x512xf32>
    %c7_269 = arith.constant 7 : index
    %799 = arith.index_cast %619 : i32 to index
    %c0_270 = arith.constant 0 : index
    %800 = vector.load %arg5[%c7_269, %799, %c0_270] : memref<8x8x512xf32, #tpu.memory_space<vmem>>, vector<1x8x512xf32>
    %801 = vector.shape_cast %800 : vector<1x8x512xf32> to vector<8x512xf32>
    %802 = vector.broadcast %792 : vector<1x512xf32> to vector<8x512xf32>
    %803 = arith.mulf %802, %798 : vector<8x512xf32>
    %804 = arith.addf %783, %803 : vector<8x512xf32>
    %805 = vector.broadcast %795 : vector<1x512xf32> to vector<8x512xf32>
    %806 = arith.mulf %805, %801 : vector<8x512xf32>
    %807 = arith.subf %804, %806 : vector<8x512xf32>
    %808 = vector.broadcast %792 : vector<1x512xf32> to vector<8x512xf32>
    %809 = arith.mulf %808, %801 : vector<8x512xf32>
    %810 = arith.addf %789, %809 : vector<8x512xf32>
    %811 = vector.broadcast %795 : vector<1x512xf32> to vector<8x512xf32>
    %812 = arith.mulf %811, %798 : vector<8x512xf32>
    %813 = arith.addf %810, %812 : vector<8x512xf32>
    %814 = arith.index_cast %c3_i32 : i32 to index
    %815 = arith.index_cast %619 : i32 to index
    %c0_271 = arith.constant 0 : index
    %816 = vector.load %arg6[%814, %815, %c0_271] : memref<4x8x512xf32, #tpu.memory_space<vmem>>, vector<1x8x512xf32>
    %817 = vector.shape_cast %816 : vector<1x8x512xf32> to vector<8x512xf32>
    %818 = vector.shape_cast %807 : vector<8x512xf32> to vector<1x8x512xf32>
    tpu.vector_store %arg6[%814, %815, %c0_271], %818 {strides = array<i32>} : memref<4x8x512xf32, #tpu.memory_space<vmem>>, vector<1x8x512xf32>,
    %819 = arith.index_cast %c3_i32 : i32 to index
    %820 = arith.index_cast %619 : i32 to index
    %c0_272 = arith.constant 0 : index
    %821 = vector.load %arg7[%819, %820, %c0_272] : memref<4x8x512xf32, #tpu.memory_space<vmem>>, vector<1x8x512xf32>
    %822 = vector.shape_cast %821 : vector<1x8x512xf32> to vector<8x512xf32>
    %823 = vector.shape_cast %813 : vector<8x512xf32> to vector<1x8x512xf32>
    tpu.vector_store %arg7[%819, %820, %c0_272], %823 {strides = array<i32>} : memref<4x8x512xf32, #tpu.memory_space<vmem>>, vector<1x8x512xf32>,
    %c1_i32_273 = arith.constant 1 : i32
    %c4_i32 = arith.constant 4 : i32
    return
  }
  func.func @transform_0(%arg0: i32, %arg1: i32) -> (i32, i32, i32) {
    %c0_i32 = arith.constant 0 : i32
    %c0_i32_0 = arith.constant 0 : i32
    %c0_i32_1 = arith.constant 0 : i32
    return %c0_i32, %c0_i32_0, %arg0 : i32, i32, i32
  }
  func.func @transform_1(%arg0: i32, %arg1: i32) -> (i32, i32, i32) {
    %c0_i32 = arith.constant 0 : i32
    %c0_i32_0 = arith.constant 0 : i32
    %c0_i32_1 = arith.constant 0 : i32
    return %c0_i32, %c0_i32_0, %arg0 : i32, i32, i32
  }
  func.func @transform_2(%arg0: i32, %arg1: i32) -> (i32, i32, i32) {
    %c0_i32 = arith.constant 0 : i32
    %c0_i32_0 = arith.constant 0 : i32
    return %c0_i32, %arg1, %arg0 : i32, i32, i32
  }
  func.func @transform_3(%arg0: i32, %arg1: i32) -> (i32, i32, i32) {
    %c0_i32 = arith.constant 0 : i32
    %c0_i32_0 = arith.constant 0 : i32
    return %c0_i32, %arg1, %arg0 : i32, i32, i32
  }
  func.func @transform_4(%arg0: i32, %arg1: i32) -> (i32, i32, i32) {
    %c0_i32 = arith.constant 0 : i32
    %c0_i32_0 = arith.constant 0 : i32
    return %c0_i32, %arg1, %arg0 : i32, i32, i32
  }
  func.func @transform_5(%arg0: i32, %arg1: i32) -> (i32, i32, i32) {
    %c0_i32 = arith.constant 0 : i32
    %c0_i32_0 = arith.constant 0 : i32
    return %c0_i32, %arg1, %arg0 : i32, i32, i32
  }
}

</mosaic_0001>

<llo_original>
// kernel: tpu_custom_call.1
$region0: #{tpu_custom_call.1}
  #allocation0 [shape = 'u32[]', space=smem, size = 0x4, offset = 0x4, fixed_abs, tag = 'smem constant byte address 0x4 - core index']
  #allocation1 [shape = 'u32[144,128]{1,0:T(1,128)}', space=vmem, size = 0x12000, scoped, tag = 'internal scratch']
  %s0 = inlined_call_operand.hbm [shape: f32[4,8,1024], index: 0, kind: input, shape index: {}]
  %s1 = inlined_call_operand.hbm [shape: f32[4,8,1024], index: 1, kind: input, shape index: {}]
  %s2 = inlined_call_operand.hbm [shape: f32[8,8,1024], index: 2, kind: input, shape index: {}]
  %s3 = inlined_call_operand.hbm [shape: f32[8,8,1024], index: 3, kind: input, shape index: {}]
  %s4 = inlined_call_operand.hbm [shape: f32[4,8,1024], index: 4, kind: output, shape index: {0}]
  %s5 = inlined_call_operand.hbm [shape: f32[4,8,1024], index: 5, kind: output, shape index: {1}]
  %6 = xla_tuple %s4, %s5
  %s7 = sld [smem:[#allocation0]]
  $region73: #{tpu_custom_call.1} parent=0
    _
  %s9 = ssub.s32 1, %s7
  %s10 = scalar_select 0, %s9, %s7
  $region1: #{tpu_custom_call.1} parent=0
    #allocation2 [shape = 'u8[131072]{0}', space=vmem, size = 0x20000, scoped, tag = 'input window, operand 0']
    #allocation3 [shape = 's32[2]{0}', space=sflag, size = 0x8, scoped, tag = 'scoped memory for tpu_custom_call.1']
    #allocation4 [shape = 's32[2]{0}', space=sflag, size = 0x8, scoped, tag = 'scoped memory for tpu_custom_call.1']
    #allocation5 [shape = 'u8[131072]{0}', space=vmem, size = 0x20000, scoped, tag = 'input window, operand 1']
    #allocation6 [shape = 's32[2]{0}', space=sflag, size = 0x8, scoped, tag = 'scoped memory for tpu_custom_call.1']
    #allocation7 [shape = 'u8[262144]{0}', space=vmem, size = 0x40000, scoped, tag = 'input window, operand 2']
    #allocation8 [shape = 'u8[262144]{0}', space=vmem, size = 0x40000, scoped, tag = 'input window, operand 3']
    #allocation9 [shape = 's32[2]{0}', space=sflag, size = 0x8, scoped, tag = 'scoped memory for tpu_custom_call.1']
    #allocation10 [shape = 'u8[131072]{0}', space=vmem, size = 0x20000, scoped, tag = 'output window, operand 0']
    #allocation11 [shape = 'u8[131072]{0}', space=vmem, size = 0x20000, scoped, tag = 'output window, operand 1']
    #allocation12 [shape = 's32[2]{0}', space=sflag, size = 0x8, scoped, tag = 'scoped memory for tpu_custom_call.1']
    %11 = vsyncpa [#allocation3], 0
    %s12 = scalar_lea.sflag [#allocation3], 1
    %13 = vsyncpa %s12, 0
    %14 = vsyncpa [#allocation6], 0
    %s15 = scalar_lea.sflag [#allocation6], 1
    %16 = vsyncpa %s15, 0
    %17 = vsyncpa [#allocation9], 0
    %s18 = scalar_lea.sflag [#allocation9], 1
    %19 = vsyncpa %s18, 0
    %20 = vsyncpa [#allocation4], 0
    %s21 = scalar_lea.sflag [#allocation4], 1
    %22 = vsyncpa %s21, 0
    %23 = vsyncpa [#allocation12], 0
    %s24 = scalar_lea.sflag [#allocation12], 1
    %25 = vsyncpa %s24, 0
    loop: start=0, step=1, limit=4
    $region2: #{tpu_custom_call.1} parent=1 // loop_pre_header
      _
    $region3: #{tpu_custom_call.1} parent=1 // loop_header
      %s27 = sphi 0, %s31
      %p28 = scmp.ge.s32.totalorder %s27, 4
      %s34 = sphi 0, %s46
      %s35 = sphi 0, %s42
      %s36 = sphi 0, %s34
      %s37 = sphi 0, %s35
      %s38 = sphi 0, %s36
      %s39 = sphi 0, %s37
      %s49 = sphi 0, %s51
      %s52 = sphi 0, %s49
      %s53 = sphi 0, %s52
      %s69 = sphi 0, %s53
      %s75 = sphi 0, %s77
      %s78 = sphi 0, %s75
      %s79 = sphi 0, %s78
      %s95 = sphi 0, %s79
      %s103 = sphi 0, %s105
      %s106 = sphi 0, %s103
      %s107 = sphi 0, %s106
      %s123 = sphi 0, %s107
      %s131 = sphi 0, %s133
      %s134 = sphi 0, %s131
      %s135 = sphi 0, %s134
      %s151 = sphi 0, %s135
      %s159 = sphi 0, %s161
      %s162 = sphi 0, %s159
      %s163 = sphi 0, %s162
      %s179 = sphi 0, %s163
      %s187 = sphi 0, %s189
      %s190 = sphi 0, %s187
      %s191 = sphi 0, %s190
      %s207 = sphi 0, %s191
    $region4: #{tpu_custom_call.1} parent=1 // loop_header_branch
      %30 = sbr.rel (%p28) target = $region8
    $region5: #{tpu_custom_call.1} parent=1 // loop_body
      %s32 = ssub.s32 %s27, 1
      %s33 = ssub.s32 %s27, 2
      %s40 = sadd.s32 1, %s35
      %p41 = scmp.ge.s32.totalorder %s40, 1
      %s42 = scalar_select %p41, 0, %s40
      %s43 = sadd.s32 1, %s34
      %s44 = scalar_select %p41, %s43, %s34
      %p45 = scmp.ge.s32.totalorder %s44, 2
      %s46 = scalar_select %p45, 0, %s44
      %s47 = ssub.s32 %s34, %s46
      %p48 = scmp.eq.s32.totalorder %s47, 0
      %s50 = sadd.s32 %s49, 1
      %s51 = scalar_select %p48, %s49, %s50
      %p54 = pneg %p48
      %p55 = scmp.eq.s32.totalorder %s27, 1
      %p56 = por %p54, %p55
      %p57 = scmp.ne.s32.totalorder %s49, %s52
      %p58 = scmp.eq.s32.totalorder %s27, 0
      %p59 = por %p57, %p58
      %p60 = scmp.ne.s32.totalorder %s49, %s52
      %p61 = scmp.eq.s32.totalorder %s32, 1
      %p62 = por %p60, %p61
      %p63 = scmp.ne.s32.totalorder %s52, %s53
      %p64 = scmp.eq.s32.totalorder %s32, 0
      %p65 = por %p63, %p64
      %p66 = scmp.ne.s32.totalorder %s52, %s53
      %p67 = scmp.eq.s32.totalorder %s33, 1
      %p68 = por %p66, %p67
      %p70 = scmp.ne.s32.totalorder %s53, %s69
      %p71 = scmp.eq.s32.totalorder %s33, 0
      %p72 = por %p70, %p71
      %s73 = ssub.s32 %s34, %s46
      %p74 = scmp.eq.s32.totalorder %s73, 0
      %s76 = sadd.s32 %s75, 1
      %s77 = scalar_select %p74, %s75, %s76
      %p80 = pneg %p74
      %p81 = scmp.eq.s32.totalorder %s27, 1
      %p82 = por %p80, %p81
      %p83 = scmp.ne.s32.totalorder %s75, %s78
      %p84 = scmp.eq.s32.totalorder %s27, 0
      %p85 = por %p83, %p84
      %p86 = scmp.ne.s32.totalorder %s75, %s78
      %p87 = scmp.eq.s32.totalorder %s32, 1
      %p88 = por %p86, %p87
      %p89 = scmp.ne.s32.totalorder %s78, %s79
      %p90 = scmp.eq.s32.totalorder %s32, 0
      %p91 = por %p89, %p90
      %p92 = scmp.ne.s32.totalorder %s78, %s79
      %p93 = scmp.eq.s32.totalorder %s33, 1
      %p94 = por %p92, %p93
      %p96 = scmp.ne.s32.totalorder %s79, %s95
      %p97 = scmp.eq.s32.totalorder %s33, 0
      %p98 = por %p96, %p97
      %s99 = ssub.s32 %s35, %s42
      %s100 = ssub.s32 %s34, %s46
      %s101 = sor.u32 %s99, %s100
      %p102 = scmp.eq.s32.totalorder %s101, 0
      %s104 = sadd.s32 %s103, 1
      %s105 = scalar_select %p102, %s103, %s104
      %p108 = pneg %p102
      %p109 = scmp.eq.s32.totalorder %s27, 1
      %p110 = por %p108, %p109
      %p111 = scmp.ne.s32.totalorder %s103, %s106
      %p112 = scmp.eq.s32.totalorder %s27, 0
      %p113 = por %p111, %p112
      %p114 = scmp.ne.s32.totalorder %s103, %s106
      %p115 = scmp.eq.s32.totalorder %s32, 1
      %p116 = por %p114, %p115
      %p117 = scmp.ne.s32.totalorder %s106, %s107
      %p118 = scmp.eq.s32.totalorder %s32, 0
      %p119 = por %p117, %p118
      %p120 = scmp.ne.s32.totalorder %s106, %s107
      %p121 = scmp.eq.s32.totalorder %s33, 1
      %p122 = por %p120, %p121
      %p124 = scmp.ne.s32.totalorder %s107, %s123
      %p125 = scmp.eq.s32.totalorder %s33, 0
      %p126 = por %p124, %p125
      %s127 = ssub.s32 %s35, %s42
      %s128 = ssub.s32 %s34, %s46
      %s129 = sor.u32 %s127, %s128
      %p130 = scmp.eq.s32.totalorder %s129, 0
      %s132 = sadd.s32 %s131, 1
      %s133 = scalar_select %p130, %s131, %s132
      %p136 = pneg %p130
      %p137 = scmp.eq.s32.totalorder %s27, 1
      %p138 = por %p136, %p137
      %p139 = scmp.ne.s32.totalorder %s131, %s134
      %p140 = scmp.eq.s32.totalorder %s27, 0
      %p141 = por %p139, %p140
      %p142 = scmp.ne.s32.totalorder %s131, %s134
      %p143 = scmp.eq.s32.totalorder %s32, 1
      %p144 = por %p142, %p143
      %p145 = scmp.ne.s32.totalorder %s134, %s135
      %p146 = scmp.eq.s32.totalorder %s32, 0
      %p147 = por %p145, %p146
      %p148 = scmp.ne.s32.totalorder %s134, %s135
      %p149 = scmp.eq.s32.totalorder %s33, 1
      %p150 = por %p148, %p149
      %p152 = scmp.ne.s32.totalorder %s135, %s151
      %p153 = scmp.eq.s32.totalorder %s33, 0
      %p154 = por %p152, %p153
      %s155 = ssub.s32 %s35, %s42
      %s156 = ssub.s32 %s34, %s46
      %s157 = sor.u32 %s155, %s156
      %p158 = scmp.eq.s32.totalorder %s157, 0
      %s160 = sadd.s32 %s159, 1
      %s161 = scalar_select %p158, %s159, %s160
      %p164 = pneg %p158
      %p165 = scmp.eq.s32.totalorder %s27, 1
      %p166 = por %p164, %p165
      %p167 = scmp.ne.s32.totalorder %s159, %s162
      %p168 = scmp.eq.s32.totalorder %s27, 0
      %p169 = por %p167, %p168
      %p170 = scmp.ne.s32.totalorder %s159, %s162
      %p171 = scmp.eq.s32.totalorder %s32, 1
      %p172 = por %p170, %p171
      %p173 = scmp.ne.s32.totalorder %s162, %s163
      %p174 = scmp.eq.s32.totalorder %s32, 0
      %p175 = por %p173, %p174
      %p176 = scmp.ne.s32.totalorder %s162, %s163
      %p177 = scmp.eq.s32.totalorder %s33, 1
      %p178 = por %p176, %p177
      %p180 = scmp.ne.s32.totalorder %s163, %s179
      %p181 = scmp.eq.s32.totalorder %s33, 0
      %p182 = por %p180, %p181
      %s183 = ssub.s32 %s35, %s42
      %s184 = ssub.s32 %s34, %s46
      %s185 = sor.u32 %s183, %s184
      %p186 = scmp.eq.s32.totalorder %s185, 0
      %s188 = sadd.s32 %s187, 1
      %s189 = scalar_select %p186, %s187, %s188
      %p192 = pneg %p186
      %p193 = scmp.eq.s32.totalorder %s27, 1
      %p194 = por %p192, %p193
      %p195 = scmp.ne.s32.totalorder %s187, %s190
      %p196 = scmp.eq.s32.totalorder %s27, 0
      %p197 = por %p195, %p196
      %p198 = scmp.ne.s32.totalorder %s187, %s190
      %p199 = scmp.eq.s32.totalorder %s32, 1
      %p200 = por %p198, %p199
      %p201 = scmp.ne.s32.totalorder %s190, %s191
      %p202 = scmp.eq.s32.totalorder %s32, 0
      %p203 = por %p201, %p202
      %p204 = scmp.ne.s32.totalorder %s190, %s191
      %p205 = scmp.eq.s32.totalorder %s33, 1
      %p206 = por %p204, %p205
      %p208 = scmp.ne.s32.totalorder %s191, %s207
      %p209 = scmp.eq.s32.totalorder %s33, 0
      %p210 = por %p208, %p209
      %p211 = scmp.le.s32.totalorder 1, %s27
      %p212 = scmp.lt.s32.totalorder %s27, 3
      %p213 = pnand %p211, %p212
      %p214 = pneg %p213
      // Predicated region
      $region9: #{tpu_custom_call.1} parent=5 // pred_check
        _
      $region10: #{tpu_custom_call.1} parent=5 // pred_check_branch
        %216 = sbr.rel (%p213) target = $region12
      $region11: #{tpu_custom_call.1} parent=5 // pred_region
        %s217 = ssub.s32 %s27, 1
      $region12: #{tpu_custom_call.1} parent=5 // pred_fallthru
        _
      %p218 = scmp.lt.s32.totalorder %s27, 2
      // Predicated region
      $region13: #{tpu_custom_call.1} parent=5 // pred_check
        %p219 = pneg %p218
      $region14: #{tpu_custom_call.1} parent=5 // pred_check_branch
        %221 = sbr.rel (%p219) target = $region16
      $region15: #{tpu_custom_call.1} parent=5 // pred_region
        // Predicated region
        $region17: #{tpu_custom_call.1} parent=15 // pred_check
          %p222 = pneg %p59
        $region18: #{tpu_custom_call.1} parent=15 // pred_check_branch
          %224 = sbr.rel (%p222) target = $region20
        $region19: #{tpu_custom_call.1} parent=15 // pred_region
          %s225 = sand.u32 %s49, 1
          %s226 = scalar_lea.sflag [#allocation3], %s225
          %s227 = sand.u32 %s49, 1
          %s228 = smul.addr %s227, 128
          %s229 = scalar_lea.vmem [#allocation2], %s228
          %s230 = smul.u32 4, %s34
          %s232 = ssub.s32 2048, 2048
          %233 = vsyncadd %s226, %s232
          %s234 = smul.addr %s230, 128
          %s235 = scalar_lea.hbm %s0, %s234
          %s236 = sshll.u32 %s229, 4
          %s237 = int_to_ptr.vmem [resolvable:$true] %s236
          %242 = dma.hbm_to_vmem [thread:$0]  %s235, 2048, %s237, %s226, 1024, 512, 32
        $region20: #{tpu_custom_call.1} parent=15 // pred_fallthru
          _
        // Predicated region
        $region21: #{tpu_custom_call.1} parent=15 // pred_check
          %p243 = pneg %p85
        $region22: #{tpu_custom_call.1} parent=15 // pred_check_branch
          %245 = sbr.rel (%p243) target = $region24
        $region23: #{tpu_custom_call.1} parent=15 // pred_region
          %s246 = sand.u32 %s27, 1
          %s247 = scalar_lea.sflag [#allocation6], %s246
          %s248 = sand.u32 %s75, 1
          %s249 = smul.addr %s248, 128
          %s250 = scalar_lea.vmem [#allocation5], %s249
          %s251 = smul.u32 4, %s34
          %s253 = ssub.s32 2048, 2048
          %254 = vsyncadd %s247, %s253
          %s255 = smul.addr %s251, 128
          %s256 = scalar_lea.hbm %s1, %s255
          %s257 = sshll.u32 %s250, 4
          %s258 = int_to_ptr.vmem [resolvable:$true] %s257
          %263 = dma.hbm_to_vmem [thread:$0]  %s256, 2048, %s258, %s247, 1024, 512, 32
        $region24: #{tpu_custom_call.1} parent=15 // pred_fallthru
          _
        // Predicated region
        $region25: #{tpu_custom_call.1} parent=15 // pred_check
          %p264 = pneg %p113
        $region26: #{tpu_custom_call.1} parent=15 // pred_check_branch
          %266 = sbr.rel (%p264) target = $region28
        $region27: #{tpu_custom_call.1} parent=15 // pred_region
          %s267 = sand.u32 %s27, 1
          %s268 = scalar_lea.sflag [#allocation6], %s267
          %s269 = sand.u32 %s103, 1
          %s270 = smul.addr %s269, 256
          %s271 = scalar_lea.vmem [#allocation7], %s270
          %s272 = smul.u32 4, %s34
          %s274 = ssub.s32 4096, 4096
          %275 = vsyncadd %s268, %s274
          %s276 = smul.addr %s35, 8
          %s277 = sadd.s32 %s272, %s276
          %s278 = smul.addr %s277, 128
          %s279 = scalar_lea.hbm %s2, %s278
          %s280 = sshll.u32 %s271, 4
          %s281 = int_to_ptr.vmem [resolvable:$true] %s280
          %286 = dma.hbm_to_vmem [thread:$0]  %s279, 4096, %s281, %s268, 1024, 512, 32
        $region28: #{tpu_custom_call.1} parent=15 // pred_fallthru
          _
        // Predicated region
        $region29: #{tpu_custom_call.1} parent=15 // pred_check
          %p287 = pneg %p141
        $region30: #{tpu_custom_call.1} parent=15 // pred_check_branch
          %289 = sbr.rel (%p287) target = $region32
        $region31: #{tpu_custom_call.1} parent=15 // pred_region
          %s290 = sand.u32 %s131, 1
          %s291 = scalar_lea.sflag [#allocation9], %s290
          %s292 = sand.u32 %s131, 1
          %s293 = smul.addr %s292, 256
          %s294 = scalar_lea.vmem [#allocation8], %s293
          %s295 = smul.u32 4, %s34
          %s297 = ssub.s32 4096, 4096
          %298 = vsyncadd %s291, %s297
          %s299 = smul.addr %s35, 8
          %s300 = sadd.s32 %s295, %s299
          %s301 = smul.addr %s300, 128
          %s302 = scalar_lea.hbm %s3, %s301
          %s303 = sshll.u32 %s294, 4
          %s304 = int_to_ptr.vmem [resolvable:$true] %s303
          %309 = dma.hbm_to_vmem [thread:$0]  %s302, 4096, %s304, %s291, 1024, 512, 32
        $region32: #{tpu_custom_call.1} parent=15 // pred_fallthru
          _
      $region16: #{tpu_custom_call.1} parent=5 // pred_fallthru
        _
      %p310 = scmp.le.s32.totalorder 1, %s27
      %p311 = scmp.lt.s32.totalorder %s27, 3
      %p312 = pnand %p310, %p311
      %p313 = pneg %p312
      // Predicated region
      $region33: #{tpu_custom_call.1} parent=5 // pred_check
        _
      $region34: #{tpu_custom_call.1} parent=5 // pred_check_branch
        %315 = sbr.rel (%p312) target = $region36
      $region35: #{tpu_custom_call.1} parent=5 // pred_region
        %s316 = ssub.s32 %s27, 1
        %s317 = sand.u32 %s52, 1
        %s318 = scalar_lea.sflag [#allocation3], %s317
        %s319 = sand.u32 %s52, 1
        %s320 = smul.addr %s319, 128
        %s321 = scalar_lea.vmem [#allocation2], %s320
        // Predicated region
        $region37: #{tpu_custom_call.1} parent=35 // pred_check
          %p322 = pneg %p65
        $region38: #{tpu_custom_call.1} parent=35 // pred_check_branch
          %324 = sbr.rel (%p322) target = $region40
        $region39: #{tpu_custom_call.1} parent=35 // pred_region
          %325 = dma.done %s318, 2048
        $region40: #{tpu_custom_call.1} parent=35 // pred_fallthru
          _
        %s326 = sand.u32 %s32, 1
        %s327 = scalar_lea.sflag [#allocation6], %s326
        %s328 = sand.u32 %s78, 1
        %s329 = smul.addr %s328, 128
        %s330 = scalar_lea.vmem [#allocation5], %s329
        // Predicated region
        $region41: #{tpu_custom_call.1} parent=35 // pred_check
          %p331 = pneg %p91
        $region42: #{tpu_custom_call.1} parent=35 // pred_check_branch
          %333 = sbr.rel (%p331) target = $region44
        $region43: #{tpu_custom_call.1} parent=35 // pred_region
          %334 = dma.done %s327, 2048
        $region44: #{tpu_custom_call.1} parent=35 // pred_fallthru
          _
        %s335 = sand.u32 %s32, 1
        %s336 = scalar_lea.sflag [#allocation6], %s335
        %s337 = sand.u32 %s106, 1
        %s338 = smul.addr %s337, 256
        %s339 = scalar_lea.vmem [#allocation7], %s338
        // Predicated region
        $region45: #{tpu_custom_call.1} parent=35 // pred_check
          %p340 = pneg %p119
        $region46: #{tpu_custom_call.1} parent=35 // pred_check_branch
          %342 = sbr.rel (%p340) target = $region48
        $region47: #{tpu_custom_call.1} parent=35 // pred_region
          %343 = dma.done %s336, 4096
        $region48: #{tpu_custom_call.1} parent=35 // pred_fallthru
          _
        %s344 = sand.u32 %s134, 1
        %s345 = scalar_lea.sflag [#allocation9], %s344
        %s346 = sand.u32 %s134, 1
        %s347 = smul.addr %s346, 256
        %s348 = scalar_lea.vmem [#allocation8], %s347
        // Predicated region
        $region49: #{tpu_custom_call.1} parent=35 // pred_check
          %p349 = pneg %p147
        $region50: #{tpu_custom_call.1} parent=35 // pred_check_branch
          %351 = sbr.rel (%p349) target = $region52
        $region51: #{tpu_custom_call.1} parent=35 // pred_region
          %352 = dma.done %s345, 4096
        $region52: #{tpu_custom_call.1} parent=35 // pred_fallthru
          _
        %s353 = sand.u32 %s52, 1
        %s354 = scalar_lea.sflag [#allocation3], %s353
        %s355 = sand.u32 %s52, 1
        %s356 = smul.addr %s355, 128
        %s357 = scalar_lea.vmem [#allocation2], %s356
        %p358 = pneg %p65
        %p359 = pneg %p62
        %s360 = sand.u32 %s32, 1
        %s361 = scalar_lea.sflag [#allocation6], %s360
        %s362 = sand.u32 %s78, 1
        %s363 = smul.addr %s362, 128
        %s364 = scalar_lea.vmem [#allocation5], %s363
        %p365 = pneg %p91
        %p366 = pneg %p88
        %s367 = sand.u32 %s32, 1
        %s368 = scalar_lea.sflag [#allocation6], %s367
        %s369 = sand.u32 %s106, 1
        %s370 = smul.addr %s369, 256
        %s371 = scalar_lea.vmem [#allocation7], %s370
        %p372 = pneg %p119
        %p373 = pneg %p116
        %s374 = sand.u32 %s134, 1
        %s375 = scalar_lea.sflag [#allocation9], %s374
        %s376 = sand.u32 %s134, 1
        %s377 = smul.addr %s376, 256
        %s378 = scalar_lea.vmem [#allocation8], %s377
        %p379 = pneg %p147
        %p380 = pneg %p144
        %p381 = pneg %p175
        %p382 = pneg %p172
        %s383 = sand.u32 %s162, 1
        %s384 = scalar_lea.sflag [#allocation4], %s383
        %s385 = sand.u32 %s162, 1
        %s386 = smul.addr %s385, 128
        %s387 = scalar_lea.vmem [#allocation10], %s386
        %p388 = pneg %p203
        %p389 = pneg %p200
        %s390 = sand.u32 %s190, 1
        %s391 = scalar_lea.sflag [#allocation12], %s390
        %s392 = sand.u32 %s190, 1
        %s393 = smul.addr %s392, 128
        %s394 = scalar_lea.vmem [#allocation11], %s393
        %s395 = smul.u32 4, %s36
        %s396 = smul.u32 4, %s36
        %s397 = smul.u32 4, %s36
        %s398 = smul.u32 4, %s36
        %s399 = smul.u32 4, %s36
        %s400 = smul.u32 4, %s36
        %v401 = vld [vmem:[%s321] ss:$8 sm:$0xf]
        %v402 = vld [vmem:[%s330] ss:$8 sm:$0xf]
        %s403 = smul.u32 0, 4
        %s404 = smul.addr %s403, 8
        %s405 = scalar_lea.vmem %s339, %s404 [#allocation7]
        %v406 = vld [vmem:[%s405] sm:$0xff]
        %v407 = vld [vmem:[%s405 + $0x8] sm:$0xff]
        %v408 = vld [vmem:[%s405 + $0x10] sm:$0xff]
        %v409 = vld [vmem:[%s405 + $0x18] sm:$0xff]
        %s410 = smul.addr %s403, 8
        %s411 = scalar_lea.vmem %s348, %s410 [#allocation8]
        %v412 = vld [vmem:[%s411] sm:$0xff]
        %v413 = vld [vmem:[%s411 + $0x8] sm:$0xff]
        %v414 = vld [vmem:[%s411 + $0x10] sm:$0xff]
        %v415 = vld [vmem:[%s411 + $0x18] sm:$0xff]
        %v417 = vlaneseq
        %v418 = vshrl.u32 %v417, 7
        %v419 = vsub.s32 0, %v418
        %v420 = vrot.slane %v401, %v419
        %v421 = vlaneseq
        %v422 = vshrl.u32 %v421, 7
        %v423 = vsub.s32 1, %v422
        %v424 = vrot.slane %v401, %v423
        %v425 = vlaneseq
        %v426 = vshrl.u32 %v425, 7
        %v427 = vsub.s32 2, %v426
        %v428 = vrot.slane %v401, %v427
        %v429 = vlaneseq
        %v430 = vshrl.u32 %v429, 7
        %v431 = vsub.s32 3, %v430
        %v432 = vrot.slane %v401, %v431
        %v437 = vmul.f32 %v420, %v406
        %v438 = vmul.f32 %v424, %v407
        %v439 = vmul.f32 %v428, %v408
        %v440 = vmul.f32 %v432, %v409
        %v441 = vadd.f32 %v437, 0.0
        %v442 = vadd.f32 %v438, 0.0
        %v443 = vadd.f32 %v439, 0.0
        %v444 = vadd.f32 %v440, 0.0
        %v446 = vlaneseq
        %v447 = vshrl.u32 %v446, 7
        %v448 = vsub.s32 0, %v447
        %v449 = vrot.slane %v402, %v448
        %v450 = vlaneseq
        %v451 = vshrl.u32 %v450, 7
        %v452 = vsub.s32 1, %v451
        %v453 = vrot.slane %v402, %v452
        %v454 = vlaneseq
        %v455 = vshrl.u32 %v454, 7
        %v456 = vsub.s32 2, %v455
        %v457 = vrot.slane %v402, %v456
        %v458 = vlaneseq
        %v459 = vshrl.u32 %v458, 7
        %v460 = vsub.s32 3, %v459
        %v461 = vrot.slane %v402, %v460
        %v466 = vmul.f32 %v449, %v412
        %v467 = vmul.f32 %v453, %v413
        %v468 = vmul.f32 %v457, %v414
        %v469 = vmul.f32 %v461, %v415
        %v470 = vsub.f32 %v441, %v466
        %v471 = vsub.f32 %v442, %v467
        %v472 = vsub.f32 %v443, %v468
        %v473 = vsub.f32 %v444, %v469
        %v474 = vmul.f32 %v420, %v412
        %v475 = vmul.f32 %v424, %v413
        %v476 = vmul.f32 %v428, %v414
        %v477 = vmul.f32 %v432, %v415
        %v478 = vadd.f32 %v474, 0.0
        %v479 = vadd.f32 %v475, 0.0
        %v480 = vadd.f32 %v476, 0.0
        %v481 = vadd.f32 %v477, 0.0
        %v482 = vmul.f32 %v449, %v406
        %v483 = vmul.f32 %v453, %v407
        %v484 = vmul.f32 %v457, %v408
        %v485 = vmul.f32 %v461, %v409
        %v486 = vadd.f32 %v478, %v482
        %v487 = vadd.f32 %v479, %v483
        %v488 = vadd.f32 %v480, %v484
        %v489 = vadd.f32 %v481, %v485
        %s490 = scalar_lea.vmem %s321, 1 [#allocation2]
        %v491 = vld [vmem:[%s490] ss:$8 sm:$0xf]
        %s492 = scalar_lea.vmem %s330, 1 [#allocation5]
        %v493 = vld [vmem:[%s492] ss:$8 sm:$0xf]
        %s494 = sadd.s32 %s403, 4
        %s495 = smul.addr %s494, 8
        %s496 = scalar_lea.vmem %s339, %s495 [#allocation7]
        %v497 = vld [vmem:[%s496] sm:$0xff]
        %v498 = vld [vmem:[%s496 + $0x8] sm:$0xff]
        %v499 = vld [vmem:[%s496 + $0x10] sm:$0xff]
        %v500 = vld [vmem:[%s496 + $0x18] sm:$0xff]
        %s501 = smul.addr %s494, 8
        %s502 = scalar_lea.vmem %s348, %s501 [#allocation8]
        %v503 = vld [vmem:[%s502] sm:$0xff]
        %v504 = vld [vmem:[%s502 + $0x8] sm:$0xff]
        %v505 = vld [vmem:[%s502 + $0x10] sm:$0xff]
        %v506 = vld [vmem:[%s502 + $0x18] sm:$0xff]
        %v508 = vlaneseq
        %v509 = vshrl.u32 %v508, 7
        %v510 = vsub.s32 0, %v509
        %v511 = vrot.slane %v491, %v510
        %v512 = vlaneseq
        %v513 = vshrl.u32 %v512, 7
        %v514 = vsub.s32 1, %v513
        %v515 = vrot.slane %v491, %v514
        %v516 = vlaneseq
        %v517 = vshrl.u32 %v516, 7
        %v518 = vsub.s32 2, %v517
        %v519 = vrot.slane %v491, %v518
        %v520 = vlaneseq
        %v521 = vshrl.u32 %v520, 7
        %v522 = vsub.s32 3, %v521
        %v523 = vrot.slane %v491, %v522
        %v528 = vmul.f32 %v511, %v497
        %v529 = vmul.f32 %v515, %v498
        %v530 = vmul.f32 %v519, %v499
        %v531 = vmul.f32 %v523, %v500
        %v532 = vadd.f32 %v470, %v528
        %v533 = vadd.f32 %v471, %v529
        %v534 = vadd.f32 %v472, %v530
        %v535 = vadd.f32 %v473, %v531
        %v537 = vlaneseq
        %v538 = vshrl.u32 %v537, 7
        %v539 = vsub.s32 0, %v538
        %v540 = vrot.slane %v493, %v539
        %v541 = vlaneseq
        %v542 = vshrl.u32 %v541, 7
        %v543 = vsub.s32 1, %v542
        %v544 = vrot.slane %v493, %v543
        %v545 = vlaneseq
        %v546 = vshrl.u32 %v545, 7
        %v547 = vsub.s32 2, %v546
        %v548 = vrot.slane %v493, %v547
        %v549 = vlaneseq
        %v550 = vshrl.u32 %v549, 7
        %v551 = vsub.s32 3, %v550
        %v552 = vrot.slane %v493, %v551
        %v557 = vmul.f32 %v540, %v503
        %v558 = vmul.f32 %v544, %v504
        %v559 = vmul.f32 %v548, %v505
        %v560 = vmul.f32 %v552, %v506
        %v561 = vsub.f32 %v532, %v557
        %v562 = vsub.f32 %v533, %v558
        %v563 = vsub.f32 %v534, %v559
        %v564 = vsub.f32 %v535, %v560
        %v565 = vmul.f32 %v511, %v503
        %v566 = vmul.f32 %v515, %v504
        %v567 = vmul.f32 %v519, %v505
        %v568 = vmul.f32 %v523, %v506
        %v569 = vadd.f32 %v486, %v565
        %v570 = vadd.f32 %v487, %v566
        %v571 = vadd.f32 %v488, %v567
        %v572 = vadd.f32 %v489, %v568
        %v573 = vmul.f32 %v540, %v497
        %v574 = vmul.f32 %v544, %v498
        %v575 = vmul.f32 %v548, %v499
        %v576 = vmul.f32 %v552, %v500
        %v577 = vadd.f32 %v569, %v573
        %v578 = vadd.f32 %v570, %v574
        %v579 = vadd.f32 %v571, %v575
        %v580 = vadd.f32 %v572, %v576
        %s581 = scalar_lea.vmem %s321, 2 [#allocation2]
        %v582 = vld [vmem:[%s581] ss:$8 sm:$0xf]
        %s583 = scalar_lea.vmem %s330, 2 [#allocation5]
        %v584 = vld [vmem:[%s583] ss:$8 sm:$0xf]
        %s585 = sadd.s32 %s403, 8
        %s586 = smul.addr %s585, 8
        %s587 = scalar_lea.vmem %s339, %s586 [#allocation7]
        %v588 = vld [vmem:[%s587] sm:$0xff]
        %v589 = vld [vmem:[%s587 + $0x8] sm:$0xff]
        %v590 = vld [vmem:[%s587 + $0x10] sm:$0xff]
        %v591 = vld [vmem:[%s587 + $0x18] sm:$0xff]
        %s592 = smul.addr %s585, 8
        %s593 = scalar_lea.vmem %s348, %s592 [#allocation8]
        %v594 = vld [vmem:[%s593] sm:$0xff]
        %v595 = vld [vmem:[%s593 + $0x8] sm:$0xff]
        %v596 = vld [vmem:[%s593 + $0x10] sm:$0xff]
        %v597 = vld [vmem:[%s593 + $0x18] sm:$0xff]
        %v599 = vlaneseq
        %v600 = vshrl.u32 %v599, 7
        %v601 = vsub.s32 0, %v600
        %v602 = vrot.slane %v582, %v601
        %v603 = vlaneseq
        %v604 = vshrl.u32 %v603, 7
        %v605 = vsub.s32 1, %v604
        %v606 = vrot.slane %v582, %v605
        %v607 = vlaneseq
        %v608 = vshrl.u32 %v607, 7
        %v609 = vsub.s32 2, %v608
        %v610 = vrot.slane %v582, %v609
        %v611 = vlaneseq
        %v612 = vshrl.u32 %v611, 7
        %v613 = vsub.s32 3, %v612
        %v614 = vrot.slane %v582, %v613
        %v619 = vmul.f32 %v602, %v588
        %v620 = vmul.f32 %v606, %v589
        %v621 = vmul.f32 %v610, %v590
        %v622 = vmul.f32 %v614, %v591
        %v623 = vadd.f32 %v561, %v619
        %v624 = vadd.f32 %v562, %v620
        %v625 = vadd.f32 %v563, %v621
        %v626 = vadd.f32 %v564, %v622
        %v628 = vlaneseq
        %v629 = vshrl.u32 %v628, 7
        %v630 = vsub.s32 0, %v629
        %v631 = vrot.slane %v584, %v630
        %v632 = vlaneseq
        %v633 = vshrl.u32 %v632, 7
        %v634 = vsub.s32 1, %v633
        %v635 = vrot.slane %v584, %v634
        %v636 = vlaneseq
        %v637 = vshrl.u32 %v636, 7
        %v638 = vsub.s32 2, %v637
        %v639 = vrot.slane %v584, %v638
        %v640 = vlaneseq
        %v641 = vshrl.u32 %v640, 7
        %v642 = vsub.s32 3, %v641
        %v643 = vrot.slane %v584, %v642
        %v648 = vmul.f32 %v631, %v594
        %v649 = vmul.f32 %v635, %v595
        %v650 = vmul.f32 %v639, %v596
        %v651 = vmul.f32 %v643, %v597
        %v652 = vsub.f32 %v623, %v648
        %v653 = vsub.f32 %v624, %v649
        %v654 = vsub.f32 %v625, %v650
        %v655 = vsub.f32 %v626, %v651
        %v656 = vmul.f32 %v602, %v594
        %v657 = vmul.f32 %v606, %v595
        %v658 = vmul.f32 %v610, %v596
        %v659 = vmul.f32 %v614, %v597
        %v660 = vadd.f32 %v577, %v656
        %v661 = vadd.f32 %v578, %v657
        %v662 = vadd.f32 %v579, %v658
        %v663 = vadd.f32 %v580, %v659
        %v664 = vmul.f32 %v631, %v588
        %v665 = vmul.f32 %v635, %v589
        %v666 = vmul.f32 %v639, %v590
        %v667 = vmul.f32 %v643, %v591
        %v668 = vadd.f32 %v660, %v664
        %v669 = vadd.f32 %v661, %v665
        %v670 = vadd.f32 %v662, %v666
        %v671 = vadd.f32 %v663, %v667
        %s672 = scalar_lea.vmem %s321, 3 [#allocation2]
        %v673 = vld [vmem:[%s672] ss:$8 sm:$0xf]
        %s674 = scalar_lea.vmem %s330, 3 [#allocation5]
        %v675 = vld [vmem:[%s674] ss:$8 sm:$0xf]
        %s676 = sadd.s32 %s403, 12
        %s677 = smul.addr %s676, 8
        %s678 = scalar_lea.vmem %s339, %s677 [#allocation7]
        %v679 = vld [vmem:[%s678] sm:$0xff]
        %v680 = vld [vmem:[%s678 + $0x8] sm:$0xff]
        %v681 = vld [vmem:[%s678 + $0x10] sm:$0xff]
        %v682 = vld [vmem:[%s678 + $0x18] sm:$0xff]
        %s683 = smul.addr %s676, 8
        %s684 = scalar_lea.vmem %s348, %s683 [#allocation8]
        %v685 = vld [vmem:[%s684] sm:$0xff]
        %v686 = vld [vmem:[%s684 + $0x8] sm:$0xff]
        %v687 = vld [vmem:[%s684 + $0x10] sm:$0xff]
        %v688 = vld [vmem:[%s684 + $0x18] sm:$0xff]
        %v690 = vlaneseq
        %v691 = vshrl.u32 %v690, 7
        %v692 = vsub.s32 0, %v691
        %v693 = vrot.slane %v673, %v692
        %v694 = vlaneseq
        %v695 = vshrl.u32 %v694, 7
        %v696 = vsub.s32 1, %v695
        %v697 = vrot.slane %v673, %v696
        %v698 = vlaneseq
        %v699 = vshrl.u32 %v698, 7
        %v700 = vsub.s32 2, %v699
        %v701 = vrot.slane %v673, %v700
        %v702 = vlaneseq
        %v703 = vshrl.u32 %v702, 7
        %v704 = vsub.s32 3, %v703
        %v705 = vrot.slane %v673, %v704
        %v710 = vmul.f32 %v693, %v679
        %v711 = vmul.f32 %v697, %v680
        %v712 = vmul.f32 %v701, %v681
        %v713 = vmul.f32 %v705, %v682
        %v714 = vadd.f32 %v652, %v710
        %v715 = vadd.f32 %v653, %v711
        %v716 = vadd.f32 %v654, %v712
        %v717 = vadd.f32 %v655, %v713
        %v719 = vlaneseq
        %v720 = vshrl.u32 %v719, 7
        %v721 = vsub.s32 0, %v720
        %v722 = vrot.slane %v675, %v721
        %v723 = vlaneseq
        %v724 = vshrl.u32 %v723, 7
        %v725 = vsub.s32 1, %v724
        %v726 = vrot.slane %v675, %v725
        %v727 = vlaneseq
        %v728 = vshrl.u32 %v727, 7
        %v729 = vsub.s32 2, %v728
        %v730 = vrot.slane %v675, %v729
        %v731 = vlaneseq
        %v732 = vshrl.u32 %v731, 7
        %v733 = vsub.s32 3, %v732
        %v734 = vrot.slane %v675, %v733
        %v739 = vmul.f32 %v722, %v685
        %v740 = vmul.f32 %v726, %v686
        %v741 = vmul.f32 %v730, %v687
        %v742 = vmul.f32 %v734, %v688
        %v743 = vsub.f32 %v714, %v739
        %v744 = vsub.f32 %v715, %v740
        %v745 = vsub.f32 %v716, %v741
        %v746 = vsub.f32 %v717, %v742
        %v747 = vmul.f32 %v693, %v685
        %v748 = vmul.f32 %v697, %v686
        %v749 = vmul.f32 %v701, %v687
        %v750 = vmul.f32 %v705, %v688
        %v751 = vadd.f32 %v668, %v747
        %v752 = vadd.f32 %v669, %v748
        %v753 = vadd.f32 %v670, %v749
        %v754 = vadd.f32 %v671, %v750
        %v755 = vmul.f32 %v722, %v679
        %v756 = vmul.f32 %v726, %v680
        %v757 = vmul.f32 %v730, %v681
        %v758 = vmul.f32 %v734, %v682
        %v759 = vadd.f32 %v751, %v755
        %v760 = vadd.f32 %v752, %v756
        %v761 = vadd.f32 %v753, %v757
        %v762 = vadd.f32 %v754, %v758
        %s763 = scalar_lea.vmem %s321, 4 [#allocation2]
        %v764 = vld [vmem:[%s763] ss:$8 sm:$0xf]
        %s765 = scalar_lea.vmem %s330, 4 [#allocation5]
        %v766 = vld [vmem:[%s765] ss:$8 sm:$0xf]
        %s767 = sadd.s32 %s403, 16
        %s768 = smul.addr %s767, 8
        %s769 = scalar_lea.vmem %s339, %s768 [#allocation7]
        %v770 = vld [vmem:[%s769] sm:$0xff]
        %v771 = vld [vmem:[%s769 + $0x8] sm:$0xff]
        %v772 = vld [vmem:[%s769 + $0x10] sm:$0xff]
        %v773 = vld [vmem:[%s769 + $0x18] sm:$0xff]
        %s774 = smul.addr %s767, 8
        %s775 = scalar_lea.vmem %s348, %s774 [#allocation8]
        %v776 = vld [vmem:[%s775] sm:$0xff]
        %v777 = vld [vmem:[%s775 + $0x8] sm:$0xff]
        %v778 = vld [vmem:[%s775 + $0x10] sm:$0xff]
        %v779 = vld [vmem:[%s775 + $0x18] sm:$0xff]
        %v781 = vlaneseq
        %v782 = vshrl.u32 %v781, 7
        %v783 = vsub.s32 0, %v782
        %v784 = vrot.slane %v764, %v783
        %v785 = vlaneseq
        %v786 = vshrl.u32 %v785, 7
        %v787 = vsub.s32 1, %v786
        %v788 = vrot.slane %v764, %v787
        %v789 = vlaneseq
        %v790 = vshrl.u32 %v789, 7
        %v791 = vsub.s32 2, %v790
        %v792 = vrot.slane %v764, %v791
        %v793 = vlaneseq
        %v794 = vshrl.u32 %v793, 7
        %v795 = vsub.s32 3, %v794
        %v796 = vrot.slane %v764, %v795
        %v801 = vmul.f32 %v784, %v770
        %v802 = vmul.f32 %v788, %v771
        %v803 = vmul.f32 %v792, %v772
        %v804 = vmul.f32 %v796, %v773
        %v805 = vadd.f32 %v743, %v801
        %v806 = vadd.f32 %v744, %v802
        %v807 = vadd.f32 %v745, %v803
        %v808 = vadd.f32 %v746, %v804
        %v810 = vlaneseq
        %v811 = vshrl.u32 %v810, 7
        %v812 = vsub.s32 0, %v811
        %v813 = vrot.slane %v766, %v812
        %v814 = vlaneseq
        %v815 = vshrl.u32 %v814, 7
        %v816 = vsub.s32 1, %v815
        %v817 = vrot.slane %v766, %v816
        %v818 = vlaneseq
        %v819 = vshrl.u32 %v818, 7
        %v820 = vsub.s32 2, %v819
        %v821 = vrot.slane %v766, %v820
        %v822 = vlaneseq
        %v823 = vshrl.u32 %v822, 7
        %v824 = vsub.s32 3, %v823
        %v825 = vrot.slane %v766, %v824
        %v830 = vmul.f32 %v813, %v776
        %v831 = vmul.f32 %v817, %v777
        %v832 = vmul.f32 %v821, %v778
        %v833 = vmul.f32 %v825, %v779
        %v834 = vsub.f32 %v805, %v830
        %v835 = vsub.f32 %v806, %v831
        %v836 = vsub.f32 %v807, %v832
        %v837 = vsub.f32 %v808, %v833
        %v838 = vmul.f32 %v784, %v776
        %v839 = vmul.f32 %v788, %v777
        %v840 = vmul.f32 %v792, %v778
        %v841 = vmul.f32 %v796, %v779
        %v842 = vadd.f32 %v759, %v838
        %v843 = vadd.f32 %v760, %v839
        %v844 = vadd.f32 %v761, %v840
        %v845 = vadd.f32 %v762, %v841
        %v846 = vmul.f32 %v813, %v770
        %v847 = vmul.f32 %v817, %v771
        %v848 = vmul.f32 %v821, %v772
        %v849 = vmul.f32 %v825, %v773
        %v850 = vadd.f32 %v842, %v846
        %v851 = vadd.f32 %v843, %v847
        %v852 = vadd.f32 %v844, %v848
        %v853 = vadd.f32 %v845, %v849
        %s854 = scalar_lea.vmem %s321, 5 [#allocation2]
        %v855 = vld [vmem:[%s854] ss:$8 sm:$0xf]
        %s856 = scalar_lea.vmem %s330, 5 [#allocation5]
        %v857 = vld [vmem:[%s856] ss:$8 sm:$0xf]
        %s858 = sadd.s32 %s403, 20
        %s859 = smul.addr %s858, 8
        %s860 = scalar_lea.vmem %s339, %s859 [#allocation7]
        %v861 = vld [vmem:[%s860] sm:$0xff]
        %v862 = vld [vmem:[%s860 + $0x8] sm:$0xff]
        %v863 = vld [vmem:[%s860 + $0x10] sm:$0xff]
        %v864 = vld [vmem:[%s860 + $0x18] sm:$0xff]
        %s865 = smul.addr %s858, 8
        %s866 = scalar_lea.vmem %s348, %s865 [#allocation8]
        %v867 = vld [vmem:[%s866] sm:$0xff]
        %v868 = vld [vmem:[%s866 + $0x8] sm:$0xff]
        %v869 = vld [vmem:[%s866 + $0x10] sm:$0xff]
        %v870 = vld [vmem:[%s866 + $0x18] sm:$0xff]
        %v872 = vlaneseq
        %v873 = vshrl.u32 %v872, 7
        %v874 = vsub.s32 0, %v873
        %v875 = vrot.slane %v855, %v874
        %v876 = vlaneseq
        %v877 = vshrl.u32 %v876, 7
        %v878 = vsub.s32 1, %v877
        %v879 = vrot.slane %v855, %v878
        %v880 = vlaneseq
        %v881 = vshrl.u32 %v880, 7
        %v882 = vsub.s32 2, %v881
        %v883 = vrot.slane %v855, %v882
        %v884 = vlaneseq
        %v885 = vshrl.u32 %v884, 7
        %v886 = vsub.s32 3, %v885
        %v887 = vrot.slane %v855, %v886
        %v892 = vmul.f32 %v875, %v861
        %v893 = vmul.f32 %v879, %v862
        %v894 = vmul.f32 %v883, %v863
        %v895 = vmul.f32 %v887, %v864
        %v896 = vadd.f32 %v834, %v892
        %v897 = vadd.f32 %v835, %v893
        %v898 = vadd.f32 %v836, %v894
        %v899 = vadd.f32 %v837, %v895
        %v901 = vlaneseq
        %v902 = vshrl.u32 %v901, 7
        %v903 = vsub.s32 0, %v902
        %v904 = vrot.slane %v857, %v903
        %v905 = vlaneseq
        %v906 = vshrl.u32 %v905, 7
        %v907 = vsub.s32 1, %v906
        %v908 = vrot.slane %v857, %v907
        %v909 = vlaneseq
        %v910 = vshrl.u32 %v909, 7
        %v911 = vsub.s32 2, %v910
        %v912 = vrot.slane %v857, %v911
        %v913 = vlaneseq
        %v914 = vshrl.u32 %v913, 7
        %v915 = vsub.s32 3, %v914
        %v916 = vrot.slane %v857, %v915
        %v921 = vmul.f32 %v904, %v867
        %v922 = vmul.f32 %v908, %v868
        %v923 = vmul.f32 %v912, %v869
        %v924 = vmul.f32 %v916, %v870
        %v925 = vsub.f32 %v896, %v921
        %v926 = vsub.f32 %v897, %v922
        %v927 = vsub.f32 %v898, %v923
        %v928 = vsub.f32 %v899, %v924
        %v929 = vmul.f32 %v875, %v867
        %v930 = vmul.f32 %v879, %v868
        %v931 = vmul.f32 %v883, %v869
        %v932 = vmul.f32 %v887, %v870
        %v933 = vadd.f32 %v850, %v929
        %v934 = vadd.f32 %v851, %v930
        %v935 = vadd.f32 %v852, %v931
        %v936 = vadd.f32 %v853, %v932
        %v937 = vmul.f32 %v904, %v861
        %v938 = vmul.f32 %v908, %v862
        %v939 = vmul.f32 %v912, %v863
        %v940 = vmul.f32 %v916, %v864
        %v941 = vadd.f32 %v933, %v937
        %v942 = vadd.f32 %v934, %v938
        %v943 = vadd.f32 %v935, %v939
        %v944 = vadd.f32 %v936, %v940
        %s945 = scalar_lea.vmem %s321, 6 [#allocation2]
        %v946 = vld [vmem:[%s945] ss:$8 sm:$0xf]
        %s947 = scalar_lea.vmem %s330, 6 [#allocation5]
        %v948 = vld [vmem:[%s947] ss:$8 sm:$0xf]
        %s949 = sadd.s32 %s403, 24
        %s950 = smul.addr %s949, 8
        %s951 = scalar_lea.vmem %s339, %s950 [#allocation7]
        %v952 = vld [vmem:[%s951] sm:$0xff]
        %v953 = vld [vmem:[%s951 + $0x8] sm:$0xff]
        %v954 = vld [vmem:[%s951 + $0x10] sm:$0xff]
        %v955 = vld [vmem:[%s951 + $0x18] sm:$0xff]
        %s956 = smul.addr %s949, 8
        %s957 = scalar_lea.vmem %s348, %s956 [#allocation8]
        %v958 = vld [vmem:[%s957] sm:$0xff]
        %v959 = vld [vmem:[%s957 + $0x8] sm:$0xff]
        %v960 = vld [vmem:[%s957 + $0x10] sm:$0xff]
        %v961 = vld [vmem:[%s957 + $0x18] sm:$0xff]
        %v963 = vlaneseq
        %v964 = vshrl.u32 %v963, 7
        %v965 = vsub.s32 0, %v964
        %v966 = vrot.slane %v946, %v965
        %v967 = vlaneseq
        %v968 = vshrl.u32 %v967, 7
        %v969 = vsub.s32 1, %v968
        %v970 = vrot.slane %v946, %v969
        %v971 = vlaneseq
        %v972 = vshrl.u32 %v971, 7
        %v973 = vsub.s32 2, %v972
        %v974 = vrot.slane %v946, %v973
        %v975 = vlaneseq
        %v976 = vshrl.u32 %v975, 7
        %v977 = vsub.s32 3, %v976
        %v978 = vrot.slane %v946, %v977
        %v983 = vmul.f32 %v966, %v952
        %v984 = vmul.f32 %v970, %v953
        %v985 = vmul.f32 %v974, %v954
        %v986 = vmul.f32 %v978, %v955
        %v987 = vadd.f32 %v925, %v983
        %v988 = vadd.f32 %v926, %v984
        %v989 = vadd.f32 %v927, %v985
        %v990 = vadd.f32 %v928, %v986
        %v992 = vlaneseq
        %v993 = vshrl.u32 %v992, 7
        %v994 = vsub.s32 0, %v993
        %v995 = vrot.slane %v948, %v994
        %v996 = vlaneseq
        %v997 = vshrl.u32 %v996, 7
        %v998 = vsub.s32 1, %v997
        %v999 = vrot.slane %v948, %v998
        %v1000 = vlaneseq
        %v1001 = vshrl.u32 %v1000, 7
        %v1002 = vsub.s32 2, %v1001
        %v1003 = vrot.slane %v948, %v1002
        %v1004 = vlaneseq
        %v1005 = vshrl.u32 %v1004, 7
        %v1006 = vsub.s32 3, %v1005
        %v1007 = vrot.slane %v948, %v1006
        %v1012 = vmul.f32 %v995, %v958
        %v1013 = vmul.f32 %v999, %v959
        %v1014 = vmul.f32 %v1003, %v960
        %v1015 = vmul.f32 %v1007, %v961
        %v1016 = vsub.f32 %v987, %v1012
        %v1017 = vsub.f32 %v988, %v1013
        %v1018 = vsub.f32 %v989, %v1014
        %v1019 = vsub.f32 %v990, %v1015
        %v1020 = vmul.f32 %v966, %v958
        %v1021 = vmul.f32 %v970, %v959
        %v1022 = vmul.f32 %v974, %v960
        %v1023 = vmul.f32 %v978, %v961
        %v1024 = vadd.f32 %v941, %v1020
        %v1025 = vadd.f32 %v942, %v1021
        %v1026 = vadd.f32 %v943, %v1022
        %v1027 = vadd.f32 %v944, %v1023
        %v1028 = vmul.f32 %v995, %v952
        %v1029 = vmul.f32 %v999, %v953
        %v1030 = vmul.f32 %v1003, %v954
        %v1031 = vmul.f32 %v1007, %v955
        %v1032 = vadd.f32 %v1024, %v1028
        %v1033 = vadd.f32 %v1025, %v1029
        %v1034 = vadd.f32 %v1026, %v1030
        %v1035 = vadd.f32 %v1027, %v1031
        %s1036 = scalar_lea.vmem %s321, 7 [#allocation2]
        %v1037 = vld [vmem:[%s1036] ss:$8 sm:$0xf]
        %s1038 = scalar_lea.vmem %s330, 7 [#allocation5]
        %v1039 = vld [vmem:[%s1038] ss:$8 sm:$0xf]
        %s1040 = sadd.s32 %s403, 28
        %s1041 = smul.addr %s1040, 8
        %s1042 = scalar_lea.vmem %s339, %s1041 [#allocation7]
        %v1043 = vld [vmem:[%s1042] sm:$0xff]
        %v1044 = vld [vmem:[%s1042 + $0x8] sm:$0xff]
        %v1045 = vld [vmem:[%s1042 + $0x10] sm:$0xff]
        %v1046 = vld [vmem:[%s1042 + $0x18] sm:$0xff]
        %s1047 = smul.addr %s1040, 8
        %s1048 = scalar_lea.vmem %s348, %s1047 [#allocation8]
        %v1049 = vld [vmem:[%s1048] sm:$0xff]
        %v1050 = vld [vmem:[%s1048 + $0x8] sm:$0xff]
        %v1051 = vld [vmem:[%s1048 + $0x10] sm:$0xff]
        %v1052 = vld [vmem:[%s1048 + $0x18] sm:$0xff]
        %v1054 = vlaneseq
        %v1055 = vshrl.u32 %v1054, 7
        %v1056 = vsub.s32 0, %v1055
        %v1057 = vrot.slane %v1037, %v1056
        %v1058 = vlaneseq
        %v1059 = vshrl.u32 %v1058, 7
        %v1060 = vsub.s32 1, %v1059
        %v1061 = vrot.slane %v1037, %v1060
        %v1062 = vlaneseq
        %v1063 = vshrl.u32 %v1062, 7
        %v1064 = vsub.s32 2, %v1063
        %v1065 = vrot.slane %v1037, %v1064
        %v1066 = vlaneseq
        %v1067 = vshrl.u32 %v1066, 7
        %v1068 = vsub.s32 3, %v1067
        %v1069 = vrot.slane %v1037, %v1068
        %v1074 = vmul.f32 %v1057, %v1043
        %v1075 = vmul.f32 %v1061, %v1044
        %v1076 = vmul.f32 %v1065, %v1045
        %v1077 = vmul.f32 %v1069, %v1046
        %v1078 = vadd.f32 %v1016, %v1074
        %v1079 = vadd.f32 %v1017, %v1075
        %v1080 = vadd.f32 %v1018, %v1076
        %v1081 = vadd.f32 %v1019, %v1077
        %v1083 = vlaneseq
        %v1084 = vshrl.u32 %v1083, 7
        %v1085 = vsub.s32 0, %v1084
        %v1086 = vrot.slane %v1039, %v1085
        %v1087 = vlaneseq
        %v1088 = vshrl.u32 %v1087, 7
        %v1089 = vsub.s32 1, %v1088
        %v1090 = vrot.slane %v1039, %v1089
        %v1091 = vlaneseq
        %v1092 = vshrl.u32 %v1091, 7
        %v1093 = vsub.s32 2, %v1092
        %v1094 = vrot.slane %v1039, %v1093
        %v1095 = vlaneseq
        %v1096 = vshrl.u32 %v1095, 7
        %v1097 = vsub.s32 3, %v1096
        %v1098 = vrot.slane %v1039, %v1097
        %v1103 = vmul.f32 %v1086, %v1049
        %v1104 = vmul.f32 %v1090, %v1050
        %v1105 = vmul.f32 %v1094, %v1051
        %v1106 = vmul.f32 %v1098, %v1052
        %v1107 = vsub.f32 %v1078, %v1103
        %v1108 = vsub.f32 %v1079, %v1104
        %v1109 = vsub.f32 %v1080, %v1105
        %v1110 = vsub.f32 %v1081, %v1106
        %v1111 = vmul.f32 %v1057, %v1049
        %v1112 = vmul.f32 %v1061, %v1050
        %v1113 = vmul.f32 %v1065, %v1051
        %v1114 = vmul.f32 %v1069, %v1052
        %v1115 = vadd.f32 %v1032, %v1111
        %v1116 = vadd.f32 %v1033, %v1112
        %v1117 = vadd.f32 %v1034, %v1113
        %v1118 = vadd.f32 %v1035, %v1114
        %v1119 = vmul.f32 %v1086, %v1043
        %v1120 = vmul.f32 %v1090, %v1044
        %v1121 = vmul.f32 %v1094, %v1045
        %v1122 = vmul.f32 %v1098, %v1046
        %v1123 = vadd.f32 %v1115, %v1119
        %v1124 = vadd.f32 %v1116, %v1120
        %v1125 = vadd.f32 %v1117, %v1121
        %v1126 = vadd.f32 %v1118, %v1122
        %s1127 = smul.addr %s403, 8
        %s1128 = scalar_lea.vmem %s387, %s1127 [#allocation10]
        %1129 = vst [vmem:[%s1128] sm:$0xff] %v1107
        %1130 = vst [vmem:[%s1128 + $0x8] sm:$0xff] %v1108
        %1131 = vst [vmem:[%s1128 + $0x10] sm:$0xff] %v1109
        %1132 = vst [vmem:[%s1128 + $0x18] sm:$0xff] %v1110
        %s1133 = smul.addr %s403, 8
        %s1134 = scalar_lea.vmem %s394, %s1133 [#allocation11]
        %1135 = vst [vmem:[%s1134] sm:$0xff] %v1123
        %1136 = vst [vmem:[%s1134 + $0x8] sm:$0xff] %v1124
        %1137 = vst [vmem:[%s1134 + $0x10] sm:$0xff] %v1125
        %1138 = vst [vmem:[%s1134 + $0x18] sm:$0xff] %v1126
        %s1139 = scalar_lea.vmem %s321, 32 [#allocation2]
        %v1140 = vld [vmem:[%s1139] ss:$8 sm:$0xf]
        %s1141 = scalar_lea.vmem %s330, 32 [#allocation5]
        %v1142 = vld [vmem:[%s1141] ss:$8 sm:$0xf]
        %v1143 = vld [vmem:[%s405] sm:$0xff]
        %v1144 = vld [vmem:[%s405 + $0x8] sm:$0xff]
        %v1145 = vld [vmem:[%s405 + $0x10] sm:$0xff]
        %v1146 = vld [vmem:[%s405 + $0x18] sm:$0xff]
        %v1147 = vld [vmem:[%s411] sm:$0xff]
        %v1148 = vld [vmem:[%s411 + $0x8] sm:$0xff]
        %v1149 = vld [vmem:[%s411 + $0x10] sm:$0xff]
        %v1150 = vld [vmem:[%s411 + $0x18] sm:$0xff]
        %v1152 = vlaneseq
        %v1153 = vshrl.u32 %v1152, 7
        %v1154 = vsub.s32 0, %v1153
        %v1155 = vrot.slane %v1140, %v1154
        %v1156 = vlaneseq
        %v1157 = vshrl.u32 %v1156, 7
        %v1158 = vsub.s32 1, %v1157
        %v1159 = vrot.slane %v1140, %v1158
        %v1160 = vlaneseq
        %v1161 = vshrl.u32 %v1160, 7
        %v1162 = vsub.s32 2, %v1161
        %v1163 = vrot.slane %v1140, %v1162
        %v1164 = vlaneseq
        %v1165 = vshrl.u32 %v1164, 7
        %v1166 = vsub.s32 3, %v1165
        %v1167 = vrot.slane %v1140, %v1166
        %v1172 = vmul.f32 %v1155, %v1143
        %v1173 = vmul.f32 %v1159, %v1144
        %v1174 = vmul.f32 %v1163, %v1145
        %v1175 = vmul.f32 %v1167, %v1146
        %v1176 = vadd.f32 %v1172, 0.0
        %v1177 = vadd.f32 %v1173, 0.0
        %v1178 = vadd.f32 %v1174, 0.0
        %v1179 = vadd.f32 %v1175, 0.0
        %v1181 = vlaneseq
        %v1182 = vshrl.u32 %v1181, 7
        %v1183 = vsub.s32 0, %v1182
        %v1184 = vrot.slane %v1142, %v1183
        %v1185 = vlaneseq
        %v1186 = vshrl.u32 %v1185, 7
        %v1187 = vsub.s32 1, %v1186
        %v1188 = vrot.slane %v1142, %v1187
        %v1189 = vlaneseq
        %v1190 = vshrl.u32 %v1189, 7
        %v1191 = vsub.s32 2, %v1190
        %v1192 = vrot.slane %v1142, %v1191
        %v1193 = vlaneseq
        %v1194 = vshrl.u32 %v1193, 7
        %v1195 = vsub.s32 3, %v1194
        %v1196 = vrot.slane %v1142, %v1195
        %v1201 = vmul.f32 %v1184, %v1147
        %v1202 = vmul.f32 %v1188, %v1148
        %v1203 = vmul.f32 %v1192, %v1149
        %v1204 = vmul.f32 %v1196, %v1150
        %v1205 = vsub.f32 %v1176, %v1201
        %v1206 = vsub.f32 %v1177, %v1202
        %v1207 = vsub.f32 %v1178, %v1203
        %v1208 = vsub.f32 %v1179, %v1204
        %v1209 = vmul.f32 %v1155, %v1147
        %v1210 = vmul.f32 %v1159, %v1148
        %v1211 = vmul.f32 %v1163, %v1149
        %v1212 = vmul.f32 %v1167, %v1150
        %v1213 = vadd.f32 %v1209, 0.0
        %v1214 = vadd.f32 %v1210, 0.0
        %v1215 = vadd.f32 %v1211, 0.0
        %v1216 = vadd.f32 %v1212, 0.0
        %v1217 = vmul.f32 %v1184, %v1143
        %v1218 = vmul.f32 %v1188, %v1144
        %v1219 = vmul.f32 %v1192, %v1145
        %v1220 = vmul.f32 %v1196, %v1146
        %v1221 = vadd.f32 %v1213, %v1217
        %v1222 = vadd.f32 %v1214, %v1218
        %v1223 = vadd.f32 %v1215, %v1219
        %v1224 = vadd.f32 %v1216, %v1220
        %s1225 = scalar_lea.vmem %s1139, 1 [#allocation2]
        %v1226 = vld [vmem:[%s1225] ss:$8 sm:$0xf]
        %s1227 = scalar_lea.vmem %s1141, 1 [#allocation5]
        %v1228 = vld [vmem:[%s1227] ss:$8 sm:$0xf]
        %v1229 = vld [vmem:[%s496] sm:$0xff]
        %v1230 = vld [vmem:[%s496 + $0x8] sm:$0xff]
        %v1231 = vld [vmem:[%s496 + $0x10] sm:$0xff]
        %v1232 = vld [vmem:[%s496 + $0x18] sm:$0xff]
        %v1233 = vld [vmem:[%s502] sm:$0xff]
        %v1234 = vld [vmem:[%s502 + $0x8] sm:$0xff]
        %v1235 = vld [vmem:[%s502 + $0x10] sm:$0xff]
        %v1236 = vld [vmem:[%s502 + $0x18] sm:$0xff]
        %v1238 = vlaneseq
        %v1239 = vshrl.u32 %v1238, 7
        %v1240 = vsub.s32 0, %v1239
        %v1241 = vrot.slane %v1226, %v1240
        %v1242 = vlaneseq
        %v1243 = vshrl.u32 %v1242, 7
        %v1244 = vsub.s32 1, %v1243
        %v1245 = vrot.slane %v1226, %v1244
        %v1246 = vlaneseq
        %v1247 = vshrl.u32 %v1246, 7
        %v1248 = vsub.s32 2, %v1247
        %v1249 = vrot.slane %v1226, %v1248
        %v1250 = vlaneseq
        %v1251 = vshrl.u32 %v1250, 7
        %v1252 = vsub.s32 3, %v1251
        %v1253 = vrot.slane %v1226, %v1252
        %v1258 = vmul.f32 %v1241, %v1229
        %v1259 = vmul.f32 %v1245, %v1230
        %v1260 = vmul.f32 %v1249, %v1231
        %v1261 = vmul.f32 %v1253, %v1232
        %v1262 = vadd.f32 %v1205, %v1258
        %v1263 = vadd.f32 %v1206, %v1259
        %v1264 = vadd.f32 %v1207, %v1260
        %v1265 = vadd.f32 %v1208, %v1261
        %v1267 = vlaneseq
        %v1268 = vshrl.u32 %v1267, 7
        %v1269 = vsub.s32 0, %v1268
        %v1270 = vrot.slane %v1228, %v1269
        %v1271 = vlaneseq
        %v1272 = vshrl.u32 %v1271, 7
        %v1273 = vsub.s32 1, %v1272
        %v1274 = vrot.slane %v1228, %v1273
        %v1275 = vlaneseq
        %v1276 = vshrl.u32 %v1275, 7
        %v1277 = vsub.s32 2, %v1276
        %v1278 = vrot.slane %v1228, %v1277
        %v1279 = vlaneseq
        %v1280 = vshrl.u32 %v1279, 7
        %v1281 = vsub.s32 3, %v1280
        %v1282 = vrot.slane %v1228, %v1281
        %v1287 = vmul.f32 %v1270, %v1233
        %v1288 = vmul.f32 %v1274, %v1234
        %v1289 = vmul.f32 %v1278, %v1235
        %v1290 = vmul.f32 %v1282, %v1236
        %v1291 = vsub.f32 %v1262, %v1287
        %v1292 = vsub.f32 %v1263, %v1288
        %v1293 = vsub.f32 %v1264, %v1289
        %v1294 = vsub.f32 %v1265, %v1290
        %v1295 = vmul.f32 %v1241, %v1233
        %v1296 = vmul.f32 %v1245, %v1234
        %v1297 = vmul.f32 %v1249, %v1235
        %v1298 = vmul.f32 %v1253, %v1236
        %v1299 = vadd.f32 %v1221, %v1295
        %v1300 = vadd.f32 %v1222, %v1296
        %v1301 = vadd.f32 %v1223, %v1297
        %v1302 = vadd.f32 %v1224, %v1298
        %v1303 = vmul.f32 %v1270, %v1229
        %v1304 = vmul.f32 %v1274, %v1230
        %v1305 = vmul.f32 %v1278, %v1231
        %v1306 = vmul.f32 %v1282, %v1232
        %v1307 = vadd.f32 %v1299, %v1303
        %v1308 = vadd.f32 %v1300, %v1304
        %v1309 = vadd.f32 %v1301, %v1305
        %v1310 = vadd.f32 %v1302, %v1306
        %s1311 = scalar_lea.vmem %s1139, 2 [#allocation2]
        %v1312 = vld [vmem:[%s1311] ss:$8 sm:$0xf]
        %s1313 = scalar_lea.vmem %s1141, 2 [#allocation5]
        %v1314 = vld [vmem:[%s1313] ss:$8 sm:$0xf]
        %v1315 = vld [vmem:[%s587] sm:$0xff]
        %v1316 = vld [vmem:[%s587 + $0x8] sm:$0xff]
        %v1317 = vld [vmem:[%s587 + $0x10] sm:$0xff]
        %v1318 = vld [vmem:[%s587 + $0x18] sm:$0xff]
        %v1319 = vld [vmem:[%s593] sm:$0xff]
        %v1320 = vld [vmem:[%s593 + $0x8] sm:$0xff]
        %v1321 = vld [vmem:[%s593 + $0x10] sm:$0xff]
        %v1322 = vld [vmem:[%s593 + $0x18] sm:$0xff]
        %v1324 = vlaneseq
        %v1325 = vshrl.u32 %v1324, 7
        %v1326 = vsub.s32 0, %v1325
        %v1327 = vrot.slane %v1312, %v1326
        %v1328 = vlaneseq
        %v1329 = vshrl.u32 %v1328, 7
        %v1330 = vsub.s32 1, %v1329
        %v1331 = vrot.slane %v1312, %v1330
        %v1332 = vlaneseq
        %v1333 = vshrl.u32 %v1332, 7
        %v1334 = vsub.s32 2, %v1333
        %v1335 = vrot.slane %v1312, %v1334
        %v1336 = vlaneseq
        %v1337 = vshrl.u32 %v1336, 7
        %v1338 = vsub.s32 3, %v1337
        %v1339 = vrot.slane %v1312, %v1338
        %v1344 = vmul.f32 %v1327, %v1315
        %v1345 = vmul.f32 %v1331, %v1316
        %v1346 = vmul.f32 %v1335, %v1317
        %v1347 = vmul.f32 %v1339, %v1318
        %v1348 = vadd.f32 %v1291, %v1344
        %v1349 = vadd.f32 %v1292, %v1345
        %v1350 = vadd.f32 %v1293, %v1346
        %v1351 = vadd.f32 %v1294, %v1347
        %v1353 = vlaneseq
        %v1354 = vshrl.u32 %v1353, 7
        %v1355 = vsub.s32 0, %v1354
        %v1356 = vrot.slane %v1314, %v1355
        %v1357 = vlaneseq
        %v1358 = vshrl.u32 %v1357, 7
        %v1359 = vsub.s32 1, %v1358
        %v1360 = vrot.slane %v1314, %v1359
        %v1361 = vlaneseq
        %v1362 = vshrl.u32 %v1361, 7
        %v1363 = vsub.s32 2, %v1362
        %v1364 = vrot.slane %v1314, %v1363
        %v1365 = vlaneseq
        %v1366 = vshrl.u32 %v1365, 7
        %v1367 = vsub.s32 3, %v1366
        %v1368 = vrot.slane %v1314, %v1367
        %v1373 = vmul.f32 %v1356, %v1319
        %v1374 = vmul.f32 %v1360, %v1320
        %v1375 = vmul.f32 %v1364, %v1321
        %v1376 = vmul.f32 %v1368, %v1322
        %v1377 = vsub.f32 %v1348, %v1373
        %v1378 = vsub.f32 %v1349, %v1374
        %v1379 = vsub.f32 %v1350, %v1375
        %v1380 = vsub.f32 %v1351, %v1376
        %v1381 = vmul.f32 %v1327, %v1319
        %v1382 = vmul.f32 %v1331, %v1320
        %v1383 = vmul.f32 %v1335, %v1321
        %v1384 = vmul.f32 %v1339, %v1322
        %v1385 = vadd.f32 %v1307, %v1381
        %v1386 = vadd.f32 %v1308, %v1382
        %v1387 = vadd.f32 %v1309, %v1383
        %v1388 = vadd.f32 %v1310, %v1384
        %v1389 = vmul.f32 %v1356, %v1315
        %v1390 = vmul.f32 %v1360, %v1316
        %v1391 = vmul.f32 %v1364, %v1317
        %v1392 = vmul.f32 %v1368, %v1318
        %v1393 = vadd.f32 %v1385, %v1389
        %v1394 = vadd.f32 %v1386, %v1390
        %v1395 = vadd.f32 %v1387, %v1391
        %v1396 = vadd.f32 %v1388, %v1392
        %s1397 = scalar_lea.vmem %s1139, 3 [#allocation2]
        %v1398 = vld [vmem:[%s1397] ss:$8 sm:$0xf]
        %s1399 = scalar_lea.vmem %s1141, 3 [#allocation5]
        %v1400 = vld [vmem:[%s1399] ss:$8 sm:$0xf]
        %v1401 = vld [vmem:[%s678] sm:$0xff]
        %v1402 = vld [vmem:[%s678 + $0x8] sm:$0xff]
        %v1403 = vld [vmem:[%s678 + $0x10] sm:$0xff]
        %v1404 = vld [vmem:[%s678 + $0x18] sm:$0xff]
        %v1405 = vld [vmem:[%s684] sm:$0xff]
        %v1406 = vld [vmem:[%s684 + $0x8] sm:$0xff]
        %v1407 = vld [vmem:[%s684 + $0x10] sm:$0xff]
        %v1408 = vld [vmem:[%s684 + $0x18] sm:$0xff]
        %v1410 = vlaneseq
        %v1411 = vshrl.u32 %v1410, 7
        %v1412 = vsub.s32 0, %v1411
        %v1413 = vrot.slane %v1398, %v1412
        %v1414 = vlaneseq
        %v1415 = vshrl.u32 %v1414, 7
        %v1416 = vsub.s32 1, %v1415
        %v1417 = vrot.slane %v1398, %v1416
        %v1418 = vlaneseq
        %v1419 = vshrl.u32 %v1418, 7
        %v1420 = vsub.s32 2, %v1419
        %v1421 = vrot.slane %v1398, %v1420
        %v1422 = vlaneseq
        %v1423 = vshrl.u32 %v1422, 7
        %v1424 = vsub.s32 3, %v1423
        %v1425 = vrot.slane %v1398, %v1424
        %v1430 = vmul.f32 %v1413, %v1401
        %v1431 = vmul.f32 %v1417, %v1402
        %v1432 = vmul.f32 %v1421, %v1403
        %v1433 = vmul.f32 %v1425, %v1404
        %v1434 = vadd.f32 %v1377, %v1430
        %v1435 = vadd.f32 %v1378, %v1431
        %v1436 = vadd.f32 %v1379, %v1432
        %v1437 = vadd.f32 %v1380, %v1433
        %v1439 = vlaneseq
        %v1440 = vshrl.u32 %v1439, 7
        %v1441 = vsub.s32 0, %v1440
        %v1442 = vrot.slane %v1400, %v1441
        %v1443 = vlaneseq
        %v1444 = vshrl.u32 %v1443, 7
        %v1445 = vsub.s32 1, %v1444
        %v1446 = vrot.slane %v1400, %v1445
        %v1447 = vlaneseq
        %v1448 = vshrl.u32 %v1447, 7
        %v1449 = vsub.s32 2, %v1448
        %v1450 = vrot.slane %v1400, %v1449
        %v1451 = vlaneseq
        %v1452 = vshrl.u32 %v1451, 7
        %v1453 = vsub.s32 3, %v1452
        %v1454 = vrot.slane %v1400, %v1453
        %v1459 = vmul.f32 %v1442, %v1405
        %v1460 = vmul.f32 %v1446, %v1406
        %v1461 = vmul.f32 %v1450, %v1407
        %v1462 = vmul.f32 %v1454, %v1408
        %v1463 = vsub.f32 %v1434, %v1459
        %v1464 = vsub.f32 %v1435, %v1460
        %v1465 = vsub.f32 %v1436, %v1461
        %v1466 = vsub.f32 %v1437, %v1462
        %v1467 = vmul.f32 %v1413, %v1405
        %v1468 = vmul.f32 %v1417, %v1406
        %v1469 = vmul.f32 %v1421, %v1407
        %v1470 = vmul.f32 %v1425, %v1408
        %v1471 = vadd.f32 %v1393, %v1467
        %v1472 = vadd.f32 %v1394, %v1468
        %v1473 = vadd.f32 %v1395, %v1469
        %v1474 = vadd.f32 %v1396, %v1470
        %v1475 = vmul.f32 %v1442, %v1401
        %v1476 = vmul.f32 %v1446, %v1402
        %v1477 = vmul.f32 %v1450, %v1403
        %v1478 = vmul.f32 %v1454, %v1404
        %v1479 = vadd.f32 %v1471, %v1475
        %v1480 = vadd.f32 %v1472, %v1476
        %v1481 = vadd.f32 %v1473, %v1477
        %v1482 = vadd.f32 %v1474, %v1478
        %s1483 = scalar_lea.vmem %s1139, 4 [#allocation2]
        %v1484 = vld [vmem:[%s1483] ss:$8 sm:$0xf]
        %s1485 = scalar_lea.vmem %s1141, 4 [#allocation5]
        %v1486 = vld [vmem:[%s1485] ss:$8 sm:$0xf]
        %v1487 = vld [vmem:[%s769] sm:$0xff]
        %v1488 = vld [vmem:[%s769 + $0x8] sm:$0xff]
        %v1489 = vld [vmem:[%s769 + $0x10] sm:$0xff]
        %v1490 = vld [vmem:[%s769 + $0x18] sm:$0xff]
        %v1491 = vld [vmem:[%s775] sm:$0xff]
        %v1492 = vld [vmem:[%s775 + $0x8] sm:$0xff]
        %v1493 = vld [vmem:[%s775 + $0x10] sm:$0xff]
        %v1494 = vld [vmem:[%s775 + $0x18] sm:$0xff]
        %v1496 = vlaneseq
        %v1497 = vshrl.u32 %v1496, 7
        %v1498 = vsub.s32 0, %v1497
        %v1499 = vrot.slane %v1484, %v1498
        %v1500 = vlaneseq
        %v1501 = vshrl.u32 %v1500, 7
        %v1502 = vsub.s32 1, %v1501
        %v1503 = vrot.slane %v1484, %v1502
        %v1504 = vlaneseq
        %v1505 = vshrl.u32 %v1504, 7
        %v1506 = vsub.s32 2, %v1505
        %v1507 = vrot.slane %v1484, %v1506
        %v1508 = vlaneseq
        %v1509 = vshrl.u32 %v1508, 7
        %v1510 = vsub.s32 3, %v1509
        %v1511 = vrot.slane %v1484, %v1510
        %v1516 = vmul.f32 %v1499, %v1487
        %v1517 = vmul.f32 %v1503, %v1488
        %v1518 = vmul.f32 %v1507, %v1489
        %v1519 = vmul.f32 %v1511, %v1490
        %v1520 = vadd.f32 %v1463, %v1516
        %v1521 = vadd.f32 %v1464, %v1517
        %v1522 = vadd.f32 %v1465, %v1518
        %v1523 = vadd.f32 %v1466, %v1519
        %v1525 = vlaneseq
        %v1526 = vshrl.u32 %v1525, 7
        %v1527 = vsub.s32 0, %v1526
        %v1528 = vrot.slane %v1486, %v1527
        %v1529 = vlaneseq
        %v1530 = vshrl.u32 %v1529, 7
        %v1531 = vsub.s32 1, %v1530
        %v1532 = vrot.slane %v1486, %v1531
        %v1533 = vlaneseq
        %v1534 = vshrl.u32 %v1533, 7
        %v1535 = vsub.s32 2, %v1534
        %v1536 = vrot.slane %v1486, %v1535
        %v1537 = vlaneseq
        %v1538 = vshrl.u32 %v1537, 7
        %v1539 = vsub.s32 3, %v1538
        %v1540 = vrot.slane %v1486, %v1539
        %v1545 = vmul.f32 %v1528, %v1491
        %v1546 = vmul.f32 %v1532, %v1492
        %v1547 = vmul.f32 %v1536, %v1493
        %v1548 = vmul.f32 %v1540, %v1494
        %v1549 = vsub.f32 %v1520, %v1545
        %v1550 = vsub.f32 %v1521, %v1546
        %v1551 = vsub.f32 %v1522, %v1547
        %v1552 = vsub.f32 %v1523, %v1548
        %v1553 = vmul.f32 %v1499, %v1491
        %v1554 = vmul.f32 %v1503, %v1492
        %v1555 = vmul.f32 %v1507, %v1493
        %v1556 = vmul.f32 %v1511, %v1494
        %v1557 = vadd.f32 %v1479, %v1553
        %v1558 = vadd.f32 %v1480, %v1554
        %v1559 = vadd.f32 %v1481, %v1555
        %v1560 = vadd.f32 %v1482, %v1556
        %v1561 = vmul.f32 %v1528, %v1487
        %v1562 = vmul.f32 %v1532, %v1488
        %v1563 = vmul.f32 %v1536, %v1489
        %v1564 = vmul.f32 %v1540, %v1490
        %v1565 = vadd.f32 %v1557, %v1561
        %v1566 = vadd.f32 %v1558, %v1562
        %v1567 = vadd.f32 %v1559, %v1563
        %v1568 = vadd.f32 %v1560, %v1564
        %s1569 = scalar_lea.vmem %s1139, 5 [#allocation2]
        %v1570 = vld [vmem:[%s1569] ss:$8 sm:$0xf]
        %s1571 = scalar_lea.vmem %s1141, 5 [#allocation5]
        %v1572 = vld [vmem:[%s1571] ss:$8 sm:$0xf]
        %v1573 = vld [vmem:[%s860] sm:$0xff]
        %v1574 = vld [vmem:[%s860 + $0x8] sm:$0xff]
        %v1575 = vld [vmem:[%s860 + $0x10] sm:$0xff]
        %v1576 = vld [vmem:[%s860 + $0x18] sm:$0xff]
        %v1577 = vld [vmem:[%s866] sm:$0xff]
        %v1578 = vld [vmem:[%s866 + $0x8] sm:$0xff]
        %v1579 = vld [vmem:[%s866 + $0x10] sm:$0xff]
        %v1580 = vld [vmem:[%s866 + $0x18] sm:$0xff]
        %v1582 = vlaneseq
        %v1583 = vshrl.u32 %v1582, 7
        %v1584 = vsub.s32 0, %v1583
        %v1585 = vrot.slane %v1570, %v1584
        %v1586 = vlaneseq
        %v1587 = vshrl.u32 %v1586, 7
        %v1588 = vsub.s32 1, %v1587
        %v1589 = vrot.slane %v1570, %v1588
        %v1590 = vlaneseq
        %v1591 = vshrl.u32 %v1590, 7
        %v1592 = vsub.s32 2, %v1591
        %v1593 = vrot.slane %v1570, %v1592
        %v1594 = vlaneseq
        %v1595 = vshrl.u32 %v1594, 7
        %v1596 = vsub.s32 3, %v1595
        %v1597 = vrot.slane %v1570, %v1596
        %v1602 = vmul.f32 %v1585, %v1573
        %v1603 = vmul.f32 %v1589, %v1574
        %v1604 = vmul.f32 %v1593, %v1575
        %v1605 = vmul.f32 %v1597, %v1576
        %v1606 = vadd.f32 %v1549, %v1602
        %v1607 = vadd.f32 %v1550, %v1603
        %v1608 = vadd.f32 %v1551, %v1604
        %v1609 = vadd.f32 %v1552, %v1605
        %v1611 = vlaneseq
        %v1612 = vshrl.u32 %v1611, 7
        %v1613 = vsub.s32 0, %v1612
        %v1614 = vrot.slane %v1572, %v1613
        %v1615 = vlaneseq
        %v1616 = vshrl.u32 %v1615, 7
        %v1617 = vsub.s32 1, %v1616
        %v1618 = vrot.slane %v1572, %v1617
        %v1619 = vlaneseq
        %v1620 = vshrl.u32 %v1619, 7
        %v1621 = vsub.s32 2, %v1620
        %v1622 = vrot.slane %v1572, %v1621
        %v1623 = vlaneseq
        %v1624 = vshrl.u32 %v1623, 7
        %v1625 = vsub.s32 3, %v1624
        %v1626 = vrot.slane %v1572, %v1625
        %v1631 = vmul.f32 %v1614, %v1577
        %v1632 = vmul.f32 %v1618, %v1578
        %v1633 = vmul.f32 %v1622, %v1579
        %v1634 = vmul.f32 %v1626, %v1580
        %v1635 = vsub.f32 %v1606, %v1631
        %v1636 = vsub.f32 %v1607, %v1632
        %v1637 = vsub.f32 %v1608, %v1633
        %v1638 = vsub.f32 %v1609, %v1634
        %v1639 = vmul.f32 %v1585, %v1577
        %v1640 = vmul.f32 %v1589, %v1578
        %v1641 = vmul.f32 %v1593, %v1579
        %v1642 = vmul.f32 %v1597, %v1580
        %v1643 = vadd.f32 %v1565, %v1639
        %v1644 = vadd.f32 %v1566, %v1640
        %v1645 = vadd.f32 %v1567, %v1641
        %v1646 = vadd.f32 %v1568, %v1642
        %v1647 = vmul.f32 %v1614, %v1573
        %v1648 = vmul.f32 %v1618, %v1574
        %v1649 = vmul.f32 %v1622, %v1575
        %v1650 = vmul.f32 %v1626, %v1576
        %v1651 = vadd.f32 %v1643, %v1647
        %v1652 = vadd.f32 %v1644, %v1648
        %v1653 = vadd.f32 %v1645, %v1649
        %v1654 = vadd.f32 %v1646, %v1650
        %s1655 = scalar_lea.vmem %s1139, 6 [#allocation2]
        %v1656 = vld [vmem:[%s1655] ss:$8 sm:$0xf]
        %s1657 = scalar_lea.vmem %s1141, 6 [#allocation5]
        %v1658 = vld [vmem:[%s1657] ss:$8 sm:$0xf]
        %v1659 = vld [vmem:[%s951] sm:$0xff]
        %v1660 = vld [vmem:[%s951 + $0x8] sm:$0xff]
        %v1661 = vld [vmem:[%s951 + $0x10] sm:$0xff]
        %v1662 = vld [vmem:[%s951 + $0x18] sm:$0xff]
        %v1663 = vld [vmem:[%s957] sm:$0xff]
        %v1664 = vld [vmem:[%s957 + $0x8] sm:$0xff]
        %v1665 = vld [vmem:[%s957 + $0x10] sm:$0xff]
        %v1666 = vld [vmem:[%s957 + $0x18] sm:$0xff]
        %v1668 = vlaneseq
        %v1669 = vshrl.u32 %v1668, 7
        %v1670 = vsub.s32 0, %v1669
        %v1671 = vrot.slane %v1656, %v1670
        %v1672 = vlaneseq
        %v1673 = vshrl.u32 %v1672, 7
        %v1674 = vsub.s32 1, %v1673
        %v1675 = vrot.slane %v1656, %v1674
        %v1676 = vlaneseq
        %v1677 = vshrl.u32 %v1676, 7
        %v1678 = vsub.s32 2, %v1677
        %v1679 = vrot.slane %v1656, %v1678
        %v1680 = vlaneseq
        %v1681 = vshrl.u32 %v1680, 7
        %v1682 = vsub.s32 3, %v1681
        %v1683 = vrot.slane %v1656, %v1682
        %v1688 = vmul.f32 %v1671, %v1659
        %v1689 = vmul.f32 %v1675, %v1660
        %v1690 = vmul.f32 %v1679, %v1661
        %v1691 = vmul.f32 %v1683, %v1662
        %v1692 = vadd.f32 %v1635, %v1688
        %v1693 = vadd.f32 %v1636, %v1689
        %v1694 = vadd.f32 %v1637, %v1690
        %v1695 = vadd.f32 %v1638, %v1691
        %v1697 = vlaneseq
        %v1698 = vshrl.u32 %v1697, 7
        %v1699 = vsub.s32 0, %v1698
        %v1700 = vrot.slane %v1658, %v1699
        %v1701 = vlaneseq
        %v1702 = vshrl.u32 %v1701, 7
        %v1703 = vsub.s32 1, %v1702
        %v1704 = vrot.slane %v1658, %v1703
        %v1705 = vlaneseq
        %v1706 = vshrl.u32 %v1705, 7
        %v1707 = vsub.s32 2, %v1706
        %v1708 = vrot.slane %v1658, %v1707
        %v1709 = vlaneseq
        %v1710 = vshrl.u32 %v1709, 7
        %v1711 = vsub.s32 3, %v1710
        %v1712 = vrot.slane %v1658, %v1711
        %v1717 = vmul.f32 %v1700, %v1663
        %v1718 = vmul.f32 %v1704, %v1664
        %v1719 = vmul.f32 %v1708, %v1665
        %v1720 = vmul.f32 %v1712, %v1666
        %v1721 = vsub.f32 %v1692, %v1717
        %v1722 = vsub.f32 %v1693, %v1718
        %v1723 = vsub.f32 %v1694, %v1719
        %v1724 = vsub.f32 %v1695, %v1720
        %v1725 = vmul.f32 %v1671, %v1663
        %v1726 = vmul.f32 %v1675, %v1664
        %v1727 = vmul.f32 %v1679, %v1665
        %v1728 = vmul.f32 %v1683, %v1666
        %v1729 = vadd.f32 %v1651, %v1725
        %v1730 = vadd.f32 %v1652, %v1726
        %v1731 = vadd.f32 %v1653, %v1727
        %v1732 = vadd.f32 %v1654, %v1728
        %v1733 = vmul.f32 %v1700, %v1659
        %v1734 = vmul.f32 %v1704, %v1660
        %v1735 = vmul.f32 %v1708, %v1661
        %v1736 = vmul.f32 %v1712, %v1662
        %v1737 = vadd.f32 %v1729, %v1733
        %v1738 = vadd.f32 %v1730, %v1734
        %v1739 = vadd.f32 %v1731, %v1735
        %v1740 = vadd.f32 %v1732, %v1736
        %s1741 = scalar_lea.vmem %s1139, 7 [#allocation2]
        %v1742 = vld [vmem:[%s1741] ss:$8 sm:$0xf]
        %s1743 = scalar_lea.vmem %s1141, 7 [#allocation5]
        %v1744 = vld [vmem:[%s1743] ss:$8 sm:$0xf]
        %v1745 = vld [vmem:[%s1042] sm:$0xff]
        %v1746 = vld [vmem:[%s1042 + $0x8] sm:$0xff]
        %v1747 = vld [vmem:[%s1042 + $0x10] sm:$0xff]
        %v1748 = vld [vmem:[%s1042 + $0x18] sm:$0xff]
        %v1749 = vld [vmem:[%s1048] sm:$0xff]
        %v1750 = vld [vmem:[%s1048 + $0x8] sm:$0xff]
        %v1751 = vld [vmem:[%s1048 + $0x10] sm:$0xff]
        %v1752 = vld [vmem:[%s1048 + $0x18] sm:$0xff]
        %v1754 = vlaneseq
        %v1755 = vshrl.u32 %v1754, 7
        %v1756 = vsub.s32 0, %v1755
        %v1757 = vrot.slane %v1742, %v1756
        %v1758 = vlaneseq
        %v1759 = vshrl.u32 %v1758, 7
        %v1760 = vsub.s32 1, %v1759
        %v1761 = vrot.slane %v1742, %v1760
        %v1762 = vlaneseq
        %v1763 = vshrl.u32 %v1762, 7
        %v1764 = vsub.s32 2, %v1763
        %v1765 = vrot.slane %v1742, %v1764
        %v1766 = vlaneseq
        %v1767 = vshrl.u32 %v1766, 7
        %v1768 = vsub.s32 3, %v1767
        %v1769 = vrot.slane %v1742, %v1768
        %v1774 = vmul.f32 %v1757, %v1745
        %v1775 = vmul.f32 %v1761, %v1746
        %v1776 = vmul.f32 %v1765, %v1747
        %v1777 = vmul.f32 %v1769, %v1748
        %v1778 = vadd.f32 %v1721, %v1774
        %v1779 = vadd.f32 %v1722, %v1775
        %v1780 = vadd.f32 %v1723, %v1776
        %v1781 = vadd.f32 %v1724, %v1777
        %v1783 = vlaneseq
        %v1784 = vshrl.u32 %v1783, 7
        %v1785 = vsub.s32 0, %v1784
        %v1786 = vrot.slane %v1744, %v1785
        %v1787 = vlaneseq
        %v1788 = vshrl.u32 %v1787, 7
        %v1789 = vsub.s32 1, %v1788
        %v1790 = vrot.slane %v1744, %v1789
        %v1791 = vlaneseq
        %v1792 = vshrl.u32 %v1791, 7
        %v1793 = vsub.s32 2, %v1792
        %v1794 = vrot.slane %v1744, %v1793
        %v1795 = vlaneseq
        %v1796 = vshrl.u32 %v1795, 7
        %v1797 = vsub.s32 3, %v1796
        %v1798 = vrot.slane %v1744, %v1797
        %v1803 = vmul.f32 %v1786, %v1749
        %v1804 = vmul.f32 %v1790, %v1750
        %v1805 = vmul.f32 %v1794, %v1751
        %v1806 = vmul.f32 %v1798, %v1752
        %v1807 = vsub.f32 %v1778, %v1803
        %v1808 = vsub.f32 %v1779, %v1804
        %v1809 = vsub.f32 %v1780, %v1805
        %v1810 = vsub.f32 %v1781, %v1806
        %v1811 = vmul.f32 %v1757, %v1749
        %v1812 = vmul.f32 %v1761, %v1750
        %v1813 = vmul.f32 %v1765, %v1751
        %v1814 = vmul.f32 %v1769, %v1752
        %v1815 = vadd.f32 %v1737, %v1811
        %v1816 = vadd.f32 %v1738, %v1812
        %v1817 = vadd.f32 %v1739, %v1813
        %v1818 = vadd.f32 %v1740, %v1814
        %v1819 = vmul.f32 %v1786, %v1745
        %v1820 = vmul.f32 %v1790, %v1746
        %v1821 = vmul.f32 %v1794, %v1747
        %v1822 = vmul.f32 %v1798, %v1748
        %v1823 = vadd.f32 %v1815, %v1819
        %v1824 = vadd.f32 %v1816, %v1820
        %v1825 = vadd.f32 %v1817, %v1821
        %v1826 = vadd.f32 %v1818, %v1822
        %s1827 = smul.addr %s494, 8
        %s1828 = scalar_lea.vmem %s387, %s1827 [#allocation10]
        %1829 = vst [vmem:[%s1828] sm:$0xff] %v1807
        %1830 = vst [vmem:[%s1828 + $0x8] sm:$0xff] %v1808
        %1831 = vst [vmem:[%s1828 + $0x10] sm:$0xff] %v1809
        %1832 = vst [vmem:[%s1828 + $0x18] sm:$0xff] %v1810
        %s1833 = smul.addr %s494, 8
        %s1834 = scalar_lea.vmem %s394, %s1833 [#allocation11]
        %1835 = vst [vmem:[%s1834] sm:$0xff] %v1823
        %1836 = vst [vmem:[%s1834 + $0x8] sm:$0xff] %v1824
        %1837 = vst [vmem:[%s1834 + $0x10] sm:$0xff] %v1825
        %1838 = vst [vmem:[%s1834 + $0x18] sm:$0xff] %v1826
        %s1839 = scalar_lea.vmem %s321, 64 [#allocation2]
        %v1840 = vld [vmem:[%s1839] ss:$8 sm:$0xf]
        %s1841 = scalar_lea.vmem %s330, 64 [#allocation5]
        %v1842 = vld [vmem:[%s1841] ss:$8 sm:$0xf]
        %v1843 = vld [vmem:[%s405] sm:$0xff]
        %v1844 = vld [vmem:[%s405 + $0x8] sm:$0xff]
        %v1845 = vld [vmem:[%s405 + $0x10] sm:$0xff]
        %v1846 = vld [vmem:[%s405 + $0x18] sm:$0xff]
        %v1847 = vld [vmem:[%s411] sm:$0xff]
        %v1848 = vld [vmem:[%s411 + $0x8] sm:$0xff]
        %v1849 = vld [vmem:[%s411 + $0x10] sm:$0xff]
        %v1850 = vld [vmem:[%s411 + $0x18] sm:$0xff]
        %v1852 = vlaneseq
        %v1853 = vshrl.u32 %v1852, 7
        %v1854 = vsub.s32 0, %v1853
        %v1855 = vrot.slane %v1840, %v1854
        %v1856 = vlaneseq
        %v1857 = vshrl.u32 %v1856, 7
        %v1858 = vsub.s32 1, %v1857
        %v1859 = vrot.slane %v1840, %v1858
        %v1860 = vlaneseq
        %v1861 = vshrl.u32 %v1860, 7
        %v1862 = vsub.s32 2, %v1861
        %v1863 = vrot.slane %v1840, %v1862
        %v1864 = vlaneseq
        %v1865 = vshrl.u32 %v1864, 7
        %v1866 = vsub.s32 3, %v1865
        %v1867 = vrot.slane %v1840, %v1866
        %v1872 = vmul.f32 %v1855, %v1843
        %v1873 = vmul.f32 %v1859, %v1844
        %v1874 = vmul.f32 %v1863, %v1845
        %v1875 = vmul.f32 %v1867, %v1846
        %v1876 = vadd.f32 %v1872, 0.0
        %v1877 = vadd.f32 %v1873, 0.0
        %v1878 = vadd.f32 %v1874, 0.0
        %v1879 = vadd.f32 %v1875, 0.0
        %v1881 = vlaneseq
        %v1882 = vshrl.u32 %v1881, 7
        %v1883 = vsub.s32 0, %v1882
        %v1884 = vrot.slane %v1842, %v1883
        %v1885 = vlaneseq
        %v1886 = vshrl.u32 %v1885, 7
        %v1887 = vsub.s32 1, %v1886
        %v1888 = vrot.slane %v1842, %v1887
        %v1889 = vlaneseq
        %v1890 = vshrl.u32 %v1889, 7
        %v1891 = vsub.s32 2, %v1890
        %v1892 = vrot.slane %v1842, %v1891
        %v1893 = vlaneseq
        %v1894 = vshrl.u32 %v1893, 7
        %v1895 = vsub.s32 3, %v1894
        %v1896 = vrot.slane %v1842, %v1895
        %v1901 = vmul.f32 %v1884, %v1847
        %v1902 = vmul.f32 %v1888, %v1848
        %v1903 = vmul.f32 %v1892, %v1849
        %v1904 = vmul.f32 %v1896, %v1850
        %v1905 = vsub.f32 %v1876, %v1901
        %v1906 = vsub.f32 %v1877, %v1902
        %v1907 = vsub.f32 %v1878, %v1903
        %v1908 = vsub.f32 %v1879, %v1904
        %v1909 = vmul.f32 %v1855, %v1847
        %v1910 = vmul.f32 %v1859, %v1848
        %v1911 = vmul.f32 %v1863, %v1849
        %v1912 = vmul.f32 %v1867, %v1850
        %v1913 = vadd.f32 %v1909, 0.0
        %v1914 = vadd.f32 %v1910, 0.0
        %v1915 = vadd.f32 %v1911, 0.0
        %v1916 = vadd.f32 %v1912, 0.0
        %v1917 = vmul.f32 %v1884, %v1843
        %v1918 = vmul.f32 %v1888, %v1844
        %v1919 = vmul.f32 %v1892, %v1845
        %v1920 = vmul.f32 %v1896, %v1846
        %v1921 = vadd.f32 %v1913, %v1917
        %v1922 = vadd.f32 %v1914, %v1918
        %v1923 = vadd.f32 %v1915, %v1919
        %v1924 = vadd.f32 %v1916, %v1920
        %s1925 = scalar_lea.vmem %s1839, 1 [#allocation2]
        %v1926 = vld [vmem:[%s1925] ss:$8 sm:$0xf]
        %s1927 = scalar_lea.vmem %s1841, 1 [#allocation5]
        %v1928 = vld [vmem:[%s1927] ss:$8 sm:$0xf]
        %v1929 = vld [vmem:[%s496] sm:$0xff]
        %v1930 = vld [vmem:[%s496 + $0x8] sm:$0xff]
        %v1931 = vld [vmem:[%s496 + $0x10] sm:$0xff]
        %v1932 = vld [vmem:[%s496 + $0x18] sm:$0xff]
        %v1933 = vld [vmem:[%s502] sm:$0xff]
        %v1934 = vld [vmem:[%s502 + $0x8] sm:$0xff]
        %v1935 = vld [vmem:[%s502 + $0x10] sm:$0xff]
        %v1936 = vld [vmem:[%s502 + $0x18] sm:$0xff]
        %v1938 = vlaneseq
        %v1939 = vshrl.u32 %v1938, 7
        %v1940 = vsub.s32 0, %v1939
        %v1941 = vrot.slane %v1926, %v1940
        %v1942 = vlaneseq
        %v1943 = vshrl.u32 %v1942, 7
        %v1944 = vsub.s32 1, %v1943
        %v1945 = vrot.slane %v1926, %v1944
        %v1946 = vlaneseq
        %v1947 = vshrl.u32 %v1946, 7
        %v1948 = vsub.s32 2, %v1947
        %v1949 = vrot.slane %v1926, %v1948
        %v1950 = vlaneseq
        %v1951 = vshrl.u32 %v1950, 7
        %v1952 = vsub.s32 3, %v1951
        %v1953 = vrot.slane %v1926, %v1952
        %v1958 = vmul.f32 %v1941, %v1929
        %v1959 = vmul.f32 %v1945, %v1930
        %v1960 = vmul.f32 %v1949, %v1931
        %v1961 = vmul.f32 %v1953, %v1932
        %v1962 = vadd.f32 %v1905, %v1958
        %v1963 = vadd.f32 %v1906, %v1959
        %v1964 = vadd.f32 %v1907, %v1960
        %v1965 = vadd.f32 %v1908, %v1961
        %v1967 = vlaneseq
        %v1968 = vshrl.u32 %v1967, 7
        %v1969 = vsub.s32 0, %v1968
        %v1970 = vrot.slane %v1928, %v1969
        %v1971 = vlaneseq
        %v1972 = vshrl.u32 %v1971, 7
        %v1973 = vsub.s32 1, %v1972
        %v1974 = vrot.slane %v1928, %v1973
        %v1975 = vlaneseq
        %v1976 = vshrl.u32 %v1975, 7
        %v1977 = vsub.s32 2, %v1976
        %v1978 = vrot.slane %v1928, %v1977
        %v1979 = vlaneseq
        %v1980 = vshrl.u32 %v1979, 7
        %v1981 = vsub.s32 3, %v1980
        %v1982 = vrot.slane %v1928, %v1981
        %v1987 = vmul.f32 %v1970, %v1933
        %v1988 = vmul.f32 %v1974, %v1934
        %v1989 = vmul.f32 %v1978, %v1935
        %v1990 = vmul.f32 %v1982, %v1936
        %v1991 = vsub.f32 %v1962, %v1987
        %v1992 = vsub.f32 %v1963, %v1988
        %v1993 = vsub.f32 %v1964, %v1989
        %v1994 = vsub.f32 %v1965, %v1990
        %v1995 = vmul.f32 %v1941, %v1933
        %v1996 = vmul.f32 %v1945, %v1934
        %v1997 = vmul.f32 %v1949, %v1935
        %v1998 = vmul.f32 %v1953, %v1936
        %v1999 = vadd.f32 %v1921, %v1995
        %v2000 = vadd.f32 %v1922, %v1996
        %v2001 = vadd.f32 %v1923, %v1997
        %v2002 = vadd.f32 %v1924, %v1998
        %v2003 = vmul.f32 %v1970, %v1929
        %v2004 = vmul.f32 %v1974, %v1930
        %v2005 = vmul.f32 %v1978, %v1931
        %v2006 = vmul.f32 %v1982, %v1932
        %v2007 = vadd.f32 %v1999, %v2003
        %v2008 = vadd.f32 %v2000, %v2004
        %v2009 = vadd.f32 %v2001, %v2005
        %v2010 = vadd.f32 %v2002, %v2006
        %s2011 = scalar_lea.vmem %s1839, 2 [#allocation2]
        %v2012 = vld [vmem:[%s2011] ss:$8 sm:$0xf]
        %s2013 = scalar_lea.vmem %s1841, 2 [#allocation5]
        %v2014 = vld [vmem:[%s2013] ss:$8 sm:$0xf]
        %v2015 = vld [vmem:[%s587] sm:$0xff]
        %v2016 = vld [vmem:[%s587 + $0x8] sm:$0xff]
        %v2017 = vld [vmem:[%s587 + $0x10] sm:$0xff]
        %v2018 = vld [vmem:[%s587 + $0x18] sm:$0xff]
        %v2019 = vld [vmem:[%s593] sm:$0xff]
        %v2020 = vld [vmem:[%s593 + $0x8] sm:$0xff]
        %v2021 = vld [vmem:[%s593 + $0x10] sm:$0xff]
        %v2022 = vld [vmem:[%s593 + $0x18] sm:$0xff]
        %v2024 = vlaneseq
        %v2025 = vshrl.u32 %v2024, 7
        %v2026 = vsub.s32 0, %v2025
        %v2027 = vrot.slane %v2012, %v2026
        %v2028 = vlaneseq
        %v2029 = vshrl.u32 %v2028, 7
        %v2030 = vsub.s32 1, %v2029
        %v2031 = vrot.slane %v2012, %v2030
        %v2032 = vlaneseq
        %v2033 = vshrl.u32 %v2032, 7
        %v2034 = vsub.s32 2, %v2033
        %v2035 = vrot.slane %v2012, %v2034
        %v2036 = vlaneseq
        %v2037 = vshrl.u32 %v2036, 7
        %v2038 = vsub.s32 3, %v2037
        %v2039 = vrot.slane %v2012, %v2038
        %v2044 = vmul.f32 %v2027, %v2015
        %v2045 = vmul.f32 %v2031, %v2016
        %v2046 = vmul.f32 %v2035, %v2017
        %v2047 = vmul.f32 %v2039, %v2018
        %v2048 = vadd.f32 %v1991, %v2044
        %v2049 = vadd.f32 %v1992, %v2045
        %v2050 = vadd.f32 %v1993, %v2046
        %v2051 = vadd.f32 %v1994, %v2047
        %v2053 = vlaneseq
        %v2054 = vshrl.u32 %v2053, 7
        %v2055 = vsub.s32 0, %v2054
        %v2056 = vrot.slane %v2014, %v2055
        %v2057 = vlaneseq
        %v2058 = vshrl.u32 %v2057, 7
        %v2059 = vsub.s32 1, %v2058
        %v2060 = vrot.slane %v2014, %v2059
        %v2061 = vlaneseq
        %v2062 = vshrl.u32 %v2061, 7
        %v2063 = vsub.s32 2, %v2062
        %v2064 = vrot.slane %v2014, %v2063
        %v2065 = vlaneseq
        %v2066 = vshrl.u32 %v2065, 7
        %v2067 = vsub.s32 3, %v2066
        %v2068 = vrot.slane %v2014, %v2067
        %v2073 = vmul.f32 %v2056, %v2019
        %v2074 = vmul.f32 %v2060, %v2020
        %v2075 = vmul.f32 %v2064, %v2021
        %v2076 = vmul.f32 %v2068, %v2022
        %v2077 = vsub.f32 %v2048, %v2073
        %v2078 = vsub.f32 %v2049, %v2074
        %v2079 = vsub.f32 %v2050, %v2075
        %v2080 = vsub.f32 %v2051, %v2076
        %v2081 = vmul.f32 %v2027, %v2019
        %v2082 = vmul.f32 %v2031, %v2020
        %v2083 = vmul.f32 %v2035, %v2021
        %v2084 = vmul.f32 %v2039, %v2022
        %v2085 = vadd.f32 %v2007, %v2081
        %v2086 = vadd.f32 %v2008, %v2082
        %v2087 = vadd.f32 %v2009, %v2083
        %v2088 = vadd.f32 %v2010, %v2084
        %v2089 = vmul.f32 %v2056, %v2015
        %v2090 = vmul.f32 %v2060, %v2016
        %v2091 = vmul.f32 %v2064, %v2017
        %v2092 = vmul.f32 %v2068, %v2018
        %v2093 = vadd.f32 %v2085, %v2089
        %v2094 = vadd.f32 %v2086, %v2090
        %v2095 = vadd.f32 %v2087, %v2091
        %v2096 = vadd.f32 %v2088, %v2092
        %s2097 = scalar_lea.vmem %s1839, 3 [#allocation2]
        %v2098 = vld [vmem:[%s2097] ss:$8 sm:$0xf]
        %s2099 = scalar_lea.vmem %s1841, 3 [#allocation5]
        %v2100 = vld [vmem:[%s2099] ss:$8 sm:$0xf]
        %v2101 = vld [vmem:[%s678] sm:$0xff]
        %v2102 = vld [vmem:[%s678 + $0x8] sm:$0xff]
        %v2103 = vld [vmem:[%s678 + $0x10] sm:$0xff]
        %v2104 = vld [vmem:[%s678 + $0x18] sm:$0xff]
        %v2105 = vld [vmem:[%s684] sm:$0xff]
        %v2106 = vld [vmem:[%s684 + $0x8] sm:$0xff]
        %v2107 = vld [vmem:[%s684 + $0x10] sm:$0xff]
        %v2108 = vld [vmem:[%s684 + $0x18] sm:$0xff]
        %v2110 = vlaneseq
        %v2111 = vshrl.u32 %v2110, 7
        %v2112 = vsub.s32 0, %v2111
        %v2113 = vrot.slane %v2098, %v2112
        %v2114 = vlaneseq
        %v2115 = vshrl.u32 %v2114, 7
        %v2116 = vsub.s32 1, %v2115
        %v2117 = vrot.slane %v2098, %v2116
        %v2118 = vlaneseq
        %v2119 = vshrl.u32 %v2118, 7
        %v2120 = vsub.s32 2, %v2119
        %v2121 = vrot.slane %v2098, %v2120
        %v2122 = vlaneseq
        %v2123 = vshrl.u32 %v2122, 7
        %v2124 = vsub.s32 3, %v2123
        %v2125 = vrot.slane %v2098, %v2124
        %v2130 = vmul.f32 %v2113, %v2101
        %v2131 = vmul.f32 %v2117, %v2102
        %v2132 = vmul.f32 %v2121, %v2103
        %v2133 = vmul.f32 %v2125, %v2104
        %v2134 = vadd.f32 %v2077, %v2130
        %v2135 = vadd.f32 %v2078, %v2131
        %v2136 = vadd.f32 %v2079, %v2132
        %v2137 = vadd.f32 %v2080, %v2133
        %v2139 = vlaneseq
        %v2140 = vshrl.u32 %v2139, 7
        %v2141 = vsub.s32 0, %v2140
        %v2142 = vrot.slane %v2100, %v2141
        %v2143 = vlaneseq
        %v2144 = vshrl.u32 %v2143, 7
        %v2145 = vsub.s32 1, %v2144
        %v2146 = vrot.slane %v2100, %v2145
        %v2147 = vlaneseq
        %v2148 = vshrl.u32 %v2147, 7
        %v2149 = vsub.s32 2, %v2148
        %v2150 = vrot.slane %v2100, %v2149
        %v2151 = vlaneseq
        %v2152 = vshrl.u32 %v2151, 7
        %v2153 = vsub.s32 3, %v2152
        %v2154 = vrot.slane %v2100, %v2153
        %v2159 = vmul.f32 %v2142, %v2105
        %v2160 = vmul.f32 %v2146, %v2106
        %v2161 = vmul.f32 %v2150, %v2107
        %v2162 = vmul.f32 %v2154, %v2108
        %v2163 = vsub.f32 %v2134, %v2159
        %v2164 = vsub.f32 %v2135, %v2160
        %v2165 = vsub.f32 %v2136, %v2161
        %v2166 = vsub.f32 %v2137, %v2162
        %v2167 = vmul.f32 %v2113, %v2105
        %v2168 = vmul.f32 %v2117, %v2106
        %v2169 = vmul.f32 %v2121, %v2107
        %v2170 = vmul.f32 %v2125, %v2108
        %v2171 = vadd.f32 %v2093, %v2167
        %v2172 = vadd.f32 %v2094, %v2168
        %v2173 = vadd.f32 %v2095, %v2169
        %v2174 = vadd.f32 %v2096, %v2170
        %v2175 = vmul.f32 %v2142, %v2101
        %v2176 = vmul.f32 %v2146, %v2102
        %v2177 = vmul.f32 %v2150, %v2103
        %v2178 = vmul.f32 %v2154, %v2104
        %v2179 = vadd.f32 %v2171, %v2175
        %v2180 = vadd.f32 %v2172, %v2176
        %v2181 = vadd.f32 %v2173, %v2177
        %v2182 = vadd.f32 %v2174, %v2178
        %s2183 = scalar_lea.vmem %s1839, 4 [#allocation2]
        %v2184 = vld [vmem:[%s2183] ss:$8 sm:$0xf]
        %s2185 = scalar_lea.vmem %s1841, 4 [#allocation5]
        %v2186 = vld [vmem:[%s2185] ss:$8 sm:$0xf]
        %v2187 = vld [vmem:[%s769] sm:$0xff]
        %v2188 = vld [vmem:[%s769 + $0x8] sm:$0xff]
        %v2189 = vld [vmem:[%s769 + $0x10] sm:$0xff]
        %v2190 = vld [vmem:[%s769 + $0x18] sm:$0xff]
        %v2191 = vld [vmem:[%s775] sm:$0xff]
        %v2192 = vld [vmem:[%s775 + $0x8] sm:$0xff]
        %v2193 = vld [vmem:[%s775 + $0x10] sm:$0xff]
        %v2194 = vld [vmem:[%s775 + $0x18] sm:$0xff]
        %v2196 = vlaneseq
        %v2197 = vshrl.u32 %v2196, 7
        %v2198 = vsub.s32 0, %v2197
        %v2199 = vrot.slane %v2184, %v2198
        %v2200 = vlaneseq
        %v2201 = vshrl.u32 %v2200, 7
        %v2202 = vsub.s32 1, %v2201
        %v2203 = vrot.slane %v2184, %v2202
        %v2204 = vlaneseq
        %v2205 = vshrl.u32 %v2204, 7
        %v2206 = vsub.s32 2, %v2205
        %v2207 = vrot.slane %v2184, %v2206
        %v2208 = vlaneseq
        %v2209 = vshrl.u32 %v2208, 7
        %v2210 = vsub.s32 3, %v2209
        %v2211 = vrot.slane %v2184, %v2210
        %v2216 = vmul.f32 %v2199, %v2187
        %v2217 = vmul.f32 %v2203, %v2188
        %v2218 = vmul.f32 %v2207, %v2189
        %v2219 = vmul.f32 %v2211, %v2190
        %v2220 = vadd.f32 %v2163, %v2216
        %v2221 = vadd.f32 %v2164, %v2217
        %v2222 = vadd.f32 %v2165, %v2218
        %v2223 = vadd.f32 %v2166, %v2219
        %v2225 = vlaneseq
        %v2226 = vshrl.u32 %v2225, 7
        %v2227 = vsub.s32 0, %v2226
        %v2228 = vrot.slane %v2186, %v2227
        %v2229 = vlaneseq
        %v2230 = vshrl.u32 %v2229, 7
        %v2231 = vsub.s32 1, %v2230
        %v2232 = vrot.slane %v2186, %v2231
        %v2233 = vlaneseq
        %v2234 = vshrl.u32 %v2233, 7
        %v2235 = vsub.s32 2, %v2234
        %v2236 = vrot.slane %v2186, %v2235
        %v2237 = vlaneseq
        %v2238 = vshrl.u32 %v2237, 7
        %v2239 = vsub.s32 3, %v2238
        %v2240 = vrot.slane %v2186, %v2239
        %v2245 = vmul.f32 %v2228, %v2191
        %v2246 = vmul.f32 %v2232, %v2192
        %v2247 = vmul.f32 %v2236, %v2193
        %v2248 = vmul.f32 %v2240, %v2194
        %v2249 = vsub.f32 %v2220, %v2245
        %v2250 = vsub.f32 %v2221, %v2246
        %v2251 = vsub.f32 %v2222, %v2247
        %v2252 = vsub.f32 %v2223, %v2248
        %v2253 = vmul.f32 %v2199, %v2191
        %v2254 = vmul.f32 %v2203, %v2192
        %v2255 = vmul.f32 %v2207, %v2193
        %v2256 = vmul.f32 %v2211, %v2194
        %v2257 = vadd.f32 %v2179, %v2253
        %v2258 = vadd.f32 %v2180, %v2254
        %v2259 = vadd.f32 %v2181, %v2255
        %v2260 = vadd.f32 %v2182, %v2256
        %v2261 = vmul.f32 %v2228, %v2187
        %v2262 = vmul.f32 %v2232, %v2188
        %v2263 = vmul.f32 %v2236, %v2189
        %v2264 = vmul.f32 %v2240, %v2190
        %v2265 = vadd.f32 %v2257, %v2261
        %v2266 = vadd.f32 %v2258, %v2262
        %v2267 = vadd.f32 %v2259, %v2263
        %v2268 = vadd.f32 %v2260, %v2264
        %s2269 = scalar_lea.vmem %s1839, 5 [#allocation2]
        %v2270 = vld [vmem:[%s2269] ss:$8 sm:$0xf]
        %s2271 = scalar_lea.vmem %s1841, 5 [#allocation5]
        %v2272 = vld [vmem:[%s2271] ss:$8 sm:$0xf]
        %v2273 = vld [vmem:[%s860] sm:$0xff]
        %v2274 = vld [vmem:[%s860 + $0x8] sm:$0xff]
        %v2275 = vld [vmem:[%s860 + $0x10] sm:$0xff]
        %v2276 = vld [vmem:[%s860 + $0x18] sm:$0xff]
        %v2277 = vld [vmem:[%s866] sm:$0xff]
        %v2278 = vld [vmem:[%s866 + $0x8] sm:$0xff]
        %v2279 = vld [vmem:[%s866 + $0x10] sm:$0xff]
        %v2280 = vld [vmem:[%s866 + $0x18] sm:$0xff]
        %v2282 = vlaneseq
        %v2283 = vshrl.u32 %v2282, 7
        %v2284 = vsub.s32 0, %v2283
        %v2285 = vrot.slane %v2270, %v2284
        %v2286 = vlaneseq
        %v2287 = vshrl.u32 %v2286, 7
        %v2288 = vsub.s32 1, %v2287
        %v2289 = vrot.slane %v2270, %v2288
        %v2290 = vlaneseq
        %v2291 = vshrl.u32 %v2290, 7
        %v2292 = vsub.s32 2, %v2291
        %v2293 = vrot.slane %v2270, %v2292
        %v2294 = vlaneseq
        %v2295 = vshrl.u32 %v2294, 7
        %v2296 = vsub.s32 3, %v2295
        %v2297 = vrot.slane %v2270, %v2296
        %v2302 = vmul.f32 %v2285, %v2273
        %v2303 = vmul.f32 %v2289, %v2274
        %v2304 = vmul.f32 %v2293, %v2275
        %v2305 = vmul.f32 %v2297, %v2276
        %v2306 = vadd.f32 %v2249, %v2302
        %v2307 = vadd.f32 %v2250, %v2303
        %v2308 = vadd.f32 %v2251, %v2304
        %v2309 = vadd.f32 %v2252, %v2305
        %v2311 = vlaneseq
        %v2312 = vshrl.u32 %v2311, 7
        %v2313 = vsub.s32 0, %v2312
        %v2314 = vrot.slane %v2272, %v2313
        %v2315 = vlaneseq
        %v2316 = vshrl.u32 %v2315, 7
        %v2317 = vsub.s32 1, %v2316
        %v2318 = vrot.slane %v2272, %v2317
        %v2319 = vlaneseq
        %v2320 = vshrl.u32 %v2319, 7
        %v2321 = vsub.s32 2, %v2320
        %v2322 = vrot.slane %v2272, %v2321
        %v2323 = vlaneseq
        %v2324 = vshrl.u32 %v2323, 7
        %v2325 = vsub.s32 3, %v2324
        %v2326 = vrot.slane %v2272, %v2325
        %v2331 = vmul.f32 %v2314, %v2277
        %v2332 = vmul.f32 %v2318, %v2278
        %v2333 = vmul.f32 %v2322, %v2279
        %v2334 = vmul.f32 %v2326, %v2280
        %v2335 = vsub.f32 %v2306, %v2331
        %v2336 = vsub.f32 %v2307, %v2332
        %v2337 = vsub.f32 %v2308, %v2333
        %v2338 = vsub.f32 %v2309, %v2334
        %v2339 = vmul.f32 %v2285, %v2277
        %v2340 = vmul.f32 %v2289, %v2278
        %v2341 = vmul.f32 %v2293, %v2279
        %v2342 = vmul.f32 %v2297, %v2280
        %v2343 = vadd.f32 %v2265, %v2339
        %v2344 = vadd.f32 %v2266, %v2340
        %v2345 = vadd.f32 %v2267, %v2341
        %v2346 = vadd.f32 %v2268, %v2342
        %v2347 = vmul.f32 %v2314, %v2273
        %v2348 = vmul.f32 %v2318, %v2274
        %v2349 = vmul.f32 %v2322, %v2275
        %v2350 = vmul.f32 %v2326, %v2276
        %v2351 = vadd.f32 %v2343, %v2347
        %v2352 = vadd.f32 %v2344, %v2348
        %v2353 = vadd.f32 %v2345, %v2349
        %v2354 = vadd.f32 %v2346, %v2350
        %s2355 = scalar_lea.vmem %s1839, 6 [#allocation2]
        %v2356 = vld [vmem:[%s2355] ss:$8 sm:$0xf]
        %s2357 = scalar_lea.vmem %s1841, 6 [#allocation5]
        %v2358 = vld [vmem:[%s2357] ss:$8 sm:$0xf]
        %v2359 = vld [vmem:[%s951] sm:$0xff]
        %v2360 = vld [vmem:[%s951 + $0x8] sm:$0xff]
        %v2361 = vld [vmem:[%s951 + $0x10] sm:$0xff]
        %v2362 = vld [vmem:[%s951 + $0x18] sm:$0xff]
        %v2363 = vld [vmem:[%s957] sm:$0xff]
        %v2364 = vld [vmem:[%s957 + $0x8] sm:$0xff]
        %v2365 = vld [vmem:[%s957 + $0x10] sm:$0xff]
        %v2366 = vld [vmem:[%s957 + $0x18] sm:$0xff]
        %v2368 = vlaneseq
        %v2369 = vshrl.u32 %v2368, 7
        %v2370 = vsub.s32 0, %v2369
        %v2371 = vrot.slane %v2356, %v2370
        %v2372 = vlaneseq
        %v2373 = vshrl.u32 %v2372, 7
        %v2374 = vsub.s32 1, %v2373
        %v2375 = vrot.slane %v2356, %v2374
        %v2376 = vlaneseq
        %v2377 = vshrl.u32 %v2376, 7
        %v2378 = vsub.s32 2, %v2377
        %v2379 = vrot.slane %v2356, %v2378
        %v2380 = vlaneseq
        %v2381 = vshrl.u32 %v2380, 7
        %v2382 = vsub.s32 3, %v2381
        %v2383 = vrot.slane %v2356, %v2382
        %v2388 = vmul.f32 %v2371, %v2359
        %v2389 = vmul.f32 %v2375, %v2360
        %v2390 = vmul.f32 %v2379, %v2361
        %v2391 = vmul.f32 %v2383, %v2362
        %v2392 = vadd.f32 %v2335, %v2388
        %v2393 = vadd.f32 %v2336, %v2389
        %v2394 = vadd.f32 %v2337, %v2390
        %v2395 = vadd.f32 %v2338, %v2391
        %v2397 = vlaneseq
        %v2398 = vshrl.u32 %v2397, 7
        %v2399 = vsub.s32 0, %v2398
        %v2400 = vrot.slane %v2358, %v2399
        %v2401 = vlaneseq
        %v2402 = vshrl.u32 %v2401, 7
        %v2403 = vsub.s32 1, %v2402
        %v2404 = vrot.slane %v2358, %v2403
        %v2405 = vlaneseq
        %v2406 = vshrl.u32 %v2405, 7
        %v2407 = vsub.s32 2, %v2406
        %v2408 = vrot.slane %v2358, %v2407
        %v2409 = vlaneseq
        %v2410 = vshrl.u32 %v2409, 7
        %v2411 = vsub.s32 3, %v2410
        %v2412 = vrot.slane %v2358, %v2411
        %v2417 = vmul.f32 %v2400, %v2363
        %v2418 = vmul.f32 %v2404, %v2364
        %v2419 = vmul.f32 %v2408, %v2365
        %v2420 = vmul.f32 %v2412, %v2366
        %v2421 = vsub.f32 %v2392, %v2417
        %v2422 = vsub.f32 %v2393, %v2418
        %v2423 = vsub.f32 %v2394, %v2419
        %v2424 = vsub.f32 %v2395, %v2420
        %v2425 = vmul.f32 %v2371, %v2363
        %v2426 = vmul.f32 %v2375, %v2364
        %v2427 = vmul.f32 %v2379, %v2365
        %v2428 = vmul.f32 %v2383, %v2366
        %v2429 = vadd.f32 %v2351, %v2425
        %v2430 = vadd.f32 %v2352, %v2426
        %v2431 = vadd.f32 %v2353, %v2427
        %v2432 = vadd.f32 %v2354, %v2428
        %v2433 = vmul.f32 %v2400, %v2359
        %v2434 = vmul.f32 %v2404, %v2360
        %v2435 = vmul.f32 %v2408, %v2361
        %v2436 = vmul.f32 %v2412, %v2362
        %v2437 = vadd.f32 %v2429, %v2433
        %v2438 = vadd.f32 %v2430, %v2434
        %v2439 = vadd.f32 %v2431, %v2435
        %v2440 = vadd.f32 %v2432, %v2436
        %s2441 = scalar_lea.vmem %s1839, 7 [#allocation2]
        %v2442 = vld [vmem:[%s2441] ss:$8 sm:$0xf]
        %s2443 = scalar_lea.vmem %s1841, 7 [#allocation5]
        %v2444 = vld [vmem:[%s2443] ss:$8 sm:$0xf]
        %v2445 = vld [vmem:[%s1042] sm:$0xff]
        %v2446 = vld [vmem:[%s1042 + $0x8] sm:$0xff]
        %v2447 = vld [vmem:[%s1042 + $0x10] sm:$0xff]
        %v2448 = vld [vmem:[%s1042 + $0x18] sm:$0xff]
        %v2449 = vld [vmem:[%s1048] sm:$0xff]
        %v2450 = vld [vmem:[%s1048 + $0x8] sm:$0xff]
        %v2451 = vld [vmem:[%s1048 + $0x10] sm:$0xff]
        %v2452 = vld [vmem:[%s1048 + $0x18] sm:$0xff]
        %v2454 = vlaneseq
        %v2455 = vshrl.u32 %v2454, 7
        %v2456 = vsub.s32 0, %v2455
        %v2457 = vrot.slane %v2442, %v2456
        %v2458 = vlaneseq
        %v2459 = vshrl.u32 %v2458, 7
        %v2460 = vsub.s32 1, %v2459
        %v2461 = vrot.slane %v2442, %v2460
        %v2462 = vlaneseq
        %v2463 = vshrl.u32 %v2462, 7
        %v2464 = vsub.s32 2, %v2463
        %v2465 = vrot.slane %v2442, %v2464
        %v2466 = vlaneseq
        %v2467 = vshrl.u32 %v2466, 7
        %v2468 = vsub.s32 3, %v2467
        %v2469 = vrot.slane %v2442, %v2468
        %v2474 = vmul.f32 %v2457, %v2445
        %v2475 = vmul.f32 %v2461, %v2446
        %v2476 = vmul.f32 %v2465, %v2447
        %v2477 = vmul.f32 %v2469, %v2448
        %v2478 = vadd.f32 %v2421, %v2474
        %v2479 = vadd.f32 %v2422, %v2475
        %v2480 = vadd.f32 %v2423, %v2476
        %v2481 = vadd.f32 %v2424, %v2477
        %v2483 = vlaneseq
        %v2484 = vshrl.u32 %v2483, 7
        %v2485 = vsub.s32 0, %v2484
        %v2486 = vrot.slane %v2444, %v2485
        %v2487 = vlaneseq
        %v2488 = vshrl.u32 %v2487, 7
        %v2489 = vsub.s32 1, %v2488
        %v2490 = vrot.slane %v2444, %v2489
        %v2491 = vlaneseq
        %v2492 = vshrl.u32 %v2491, 7
        %v2493 = vsub.s32 2, %v2492
        %v2494 = vrot.slane %v2444, %v2493
        %v2495 = vlaneseq
        %v2496 = vshrl.u32 %v2495, 7
        %v2497 = vsub.s32 3, %v2496
        %v2498 = vrot.slane %v2444, %v2497
        %v2503 = vmul.f32 %v2486, %v2449
        %v2504 = vmul.f32 %v2490, %v2450
        %v2505 = vmul.f32 %v2494, %v2451
        %v2506 = vmul.f32 %v2498, %v2452
        %v2507 = vsub.f32 %v2478, %v2503
        %v2508 = vsub.f32 %v2479, %v2504
        %v2509 = vsub.f32 %v2480, %v2505
        %v2510 = vsub.f32 %v2481, %v2506
        %v2511 = vmul.f32 %v2457, %v2449
        %v2512 = vmul.f32 %v2461, %v2450
        %v2513 = vmul.f32 %v2465, %v2451
        %v2514 = vmul.f32 %v2469, %v2452
        %v2515 = vadd.f32 %v2437, %v2511
        %v2516 = vadd.f32 %v2438, %v2512
        %v2517 = vadd.f32 %v2439, %v2513
        %v2518 = vadd.f32 %v2440, %v2514
        %v2519 = vmul.f32 %v2486, %v2445
        %v2520 = vmul.f32 %v2490, %v2446
        %v2521 = vmul.f32 %v2494, %v2447
        %v2522 = vmul.f32 %v2498, %v2448
        %v2523 = vadd.f32 %v2515, %v2519
        %v2524 = vadd.f32 %v2516, %v2520
        %v2525 = vadd.f32 %v2517, %v2521
        %v2526 = vadd.f32 %v2518, %v2522
        %s2527 = smul.addr %s585, 8
        %s2528 = scalar_lea.vmem %s387, %s2527 [#allocation10]
        %2529 = vst [vmem:[%s2528] sm:$0xff] %v2507
        %2530 = vst [vmem:[%s2528 + $0x8] sm:$0xff] %v2508
        %2531 = vst [vmem:[%s2528 + $0x10] sm:$0xff] %v2509
        %2532 = vst [vmem:[%s2528 + $0x18] sm:$0xff] %v2510
        %s2533 = smul.addr %s585, 8
        %s2534 = scalar_lea.vmem %s394, %s2533 [#allocation11]
        %2535 = vst [vmem:[%s2534] sm:$0xff] %v2523
        %2536 = vst [vmem:[%s2534 + $0x8] sm:$0xff] %v2524
        %2537 = vst [vmem:[%s2534 + $0x10] sm:$0xff] %v2525
        %2538 = vst [vmem:[%s2534 + $0x18] sm:$0xff] %v2526
        %s2539 = scalar_lea.vmem %s321, 96 [#allocation2]
        %v2540 = vld [vmem:[%s2539] ss:$8 sm:$0xf]
        %s2541 = scalar_lea.vmem %s330, 96 [#allocation5]
        %v2542 = vld [vmem:[%s2541] ss:$8 sm:$0xf]
        %v2543 = vld [vmem:[%s405] sm:$0xff]
        %v2544 = vld [vmem:[%s405 + $0x8] sm:$0xff]
        %v2545 = vld [vmem:[%s405 + $0x10] sm:$0xff]
        %v2546 = vld [vmem:[%s405 + $0x18] sm:$0xff]
        %v2547 = vld [vmem:[%s411] sm:$0xff]
        %v2548 = vld [vmem:[%s411 + $0x8] sm:$0xff]
        %v2549 = vld [vmem:[%s411 + $0x10] sm:$0xff]
        %v2550 = vld [vmem:[%s411 + $0x18] sm:$0xff]
        %v2552 = vlaneseq
        %v2553 = vshrl.u32 %v2552, 7
        %v2554 = vsub.s32 0, %v2553
        %v2555 = vrot.slane %v2540, %v2554
        %v2556 = vlaneseq
        %v2557 = vshrl.u32 %v2556, 7
        %v2558 = vsub.s32 1, %v2557
        %v2559 = vrot.slane %v2540, %v2558
        %v2560 = vlaneseq
        %v2561 = vshrl.u32 %v2560, 7
        %v2562 = vsub.s32 2, %v2561
        %v2563 = vrot.slane %v2540, %v2562
        %v2564 = vlaneseq
        %v2565 = vshrl.u32 %v2564, 7
        %v2566 = vsub.s32 3, %v2565
        %v2567 = vrot.slane %v2540, %v2566
        %v2572 = vmul.f32 %v2555, %v2543
        %v2573 = vmul.f32 %v2559, %v2544
        %v2574 = vmul.f32 %v2563, %v2545
        %v2575 = vmul.f32 %v2567, %v2546
        %v2576 = vadd.f32 %v2572, 0.0
        %v2577 = vadd.f32 %v2573, 0.0
        %v2578 = vadd.f32 %v2574, 0.0
        %v2579 = vadd.f32 %v2575, 0.0
        %v2581 = vlaneseq
        %v2582 = vshrl.u32 %v2581, 7
        %v2583 = vsub.s32 0, %v2582
        %v2584 = vrot.slane %v2542, %v2583
        %v2585 = vlaneseq
        %v2586 = vshrl.u32 %v2585, 7
        %v2587 = vsub.s32 1, %v2586
        %v2588 = vrot.slane %v2542, %v2587
        %v2589 = vlaneseq
        %v2590 = vshrl.u32 %v2589, 7
        %v2591 = vsub.s32 2, %v2590
        %v2592 = vrot.slane %v2542, %v2591
        %v2593 = vlaneseq
        %v2594 = vshrl.u32 %v2593, 7
        %v2595 = vsub.s32 3, %v2594
        %v2596 = vrot.slane %v2542, %v2595
        %v2601 = vmul.f32 %v2584, %v2547
        %v2602 = vmul.f32 %v2588, %v2548
        %v2603 = vmul.f32 %v2592, %v2549
        %v2604 = vmul.f32 %v2596, %v2550
        %v2605 = vsub.f32 %v2576, %v2601
        %v2606 = vsub.f32 %v2577, %v2602
        %v2607 = vsub.f32 %v2578, %v2603
        %v2608 = vsub.f32 %v2579, %v2604
        %v2609 = vmul.f32 %v2555, %v2547
        %v2610 = vmul.f32 %v2559, %v2548
        %v2611 = vmul.f32 %v2563, %v2549
        %v2612 = vmul.f32 %v2567, %v2550
        %v2613 = vadd.f32 %v2609, 0.0
        %v2614 = vadd.f32 %v2610, 0.0
        %v2615 = vadd.f32 %v2611, 0.0
        %v2616 = vadd.f32 %v2612, 0.0
        %v2617 = vmul.f32 %v2584, %v2543
        %v2618 = vmul.f32 %v2588, %v2544
        %v2619 = vmul.f32 %v2592, %v2545
        %v2620 = vmul.f32 %v2596, %v2546
        %v2621 = vadd.f32 %v2613, %v2617
        %v2622 = vadd.f32 %v2614, %v2618
        %v2623 = vadd.f32 %v2615, %v2619
        %v2624 = vadd.f32 %v2616, %v2620
        %s2625 = scalar_lea.vmem %s2539, 1 [#allocation2]
        %v2626 = vld [vmem:[%s2625] ss:$8 sm:$0xf]
        %s2627 = scalar_lea.vmem %s2541, 1 [#allocation5]
        %v2628 = vld [vmem:[%s2627] ss:$8 sm:$0xf]
        %v2629 = vld [vmem:[%s496] sm:$0xff]
        %v2630 = vld [vmem:[%s496 + $0x8] sm:$0xff]
        %v2631 = vld [vmem:[%s496 + $0x10] sm:$0xff]
        %v2632 = vld [vmem:[%s496 + $0x18] sm:$0xff]
        %v2633 = vld [vmem:[%s502] sm:$0xff]
        %v2634 = vld [vmem:[%s502 + $0x8] sm:$0xff]
        %v2635 = vld [vmem:[%s502 + $0x10] sm:$0xff]
        %v2636 = vld [vmem:[%s502 + $0x18] sm:$0xff]
        %v2638 = vlaneseq
        %v2639 = vshrl.u32 %v2638, 7
        %v2640 = vsub.s32 0, %v2639
        %v2641 = vrot.slane %v2626, %v2640
        %v2642 = vlaneseq
        %v2643 = vshrl.u32 %v2642, 7
        %v2644 = vsub.s32 1, %v2643
        %v2645 = vrot.slane %v2626, %v2644
        %v2646 = vlaneseq
        %v2647 = vshrl.u32 %v2646, 7
        %v2648 = vsub.s32 2, %v2647
        %v2649 = vrot.slane %v2626, %v2648
        %v2650 = vlaneseq
        %v2651 = vshrl.u32 %v2650, 7
        %v2652 = vsub.s32 3, %v2651
        %v2653 = vrot.slane %v2626, %v2652
        %v2658 = vmul.f32 %v2641, %v2629
        %v2659 = vmul.f32 %v2645, %v2630
        %v2660 = vmul.f32 %v2649, %v2631
        %v2661 = vmul.f32 %v2653, %v2632
        %v2662 = vadd.f32 %v2605, %v2658
        %v2663 = vadd.f32 %v2606, %v2659
        %v2664 = vadd.f32 %v2607, %v2660
        %v2665 = vadd.f32 %v2608, %v2661
        %v2667 = vlaneseq
        %v2668 = vshrl.u32 %v2667, 7
        %v2669 = vsub.s32 0, %v2668
        %v2670 = vrot.slane %v2628, %v2669
        %v2671 = vlaneseq
        %v2672 = vshrl.u32 %v2671, 7
        %v2673 = vsub.s32 1, %v2672
        %v2674 = vrot.slane %v2628, %v2673
        %v2675 = vlaneseq
        %v2676 = vshrl.u32 %v2675, 7
        %v2677 = vsub.s32 2, %v2676
        %v2678 = vrot.slane %v2628, %v2677
        %v2679 = vlaneseq
        %v2680 = vshrl.u32 %v2679, 7
        %v2681 = vsub.s32 3, %v2680
        %v2682 = vrot.slane %v2628, %v2681
        %v2687 = vmul.f32 %v2670, %v2633
        %v2688 = vmul.f32 %v2674, %v2634
        %v2689 = vmul.f32 %v2678, %v2635
        %v2690 = vmul.f32 %v2682, %v2636
        %v2691 = vsub.f32 %v2662, %v2687
        %v2692 = vsub.f32 %v2663, %v2688
        %v2693 = vsub.f32 %v2664, %v2689
        %v2694 = vsub.f32 %v2665, %v2690
        %v2695 = vmul.f32 %v2641, %v2633
        %v2696 = vmul.f32 %v2645, %v2634
        %v2697 = vmul.f32 %v2649, %v2635
        %v2698 = vmul.f32 %v2653, %v2636
        %v2699 = vadd.f32 %v2621, %v2695
        %v2700 = vadd.f32 %v2622, %v2696
        %v2701 = vadd.f32 %v2623, %v2697
        %v2702 = vadd.f32 %v2624, %v2698
        %v2703 = vmul.f32 %v2670, %v2629
        %v2704 = vmul.f32 %v2674, %v2630
        %v2705 = vmul.f32 %v2678, %v2631
        %v2706 = vmul.f32 %v2682, %v2632
        %v2707 = vadd.f32 %v2699, %v2703
        %v2708 = vadd.f32 %v2700, %v2704
        %v2709 = vadd.f32 %v2701, %v2705
        %v2710 = vadd.f32 %v2702, %v2706
        %s2711 = scalar_lea.vmem %s2539, 2 [#allocation2]
        %v2712 = vld [vmem:[%s2711] ss:$8 sm:$0xf]
        %s2713 = scalar_lea.vmem %s2541, 2 [#allocation5]
        %v2714 = vld [vmem:[%s2713] ss:$8 sm:$0xf]
        %v2715 = vld [vmem:[%s587] sm:$0xff]
        %v2716 = vld [vmem:[%s587 + $0x8] sm:$0xff]
        %v2717 = vld [vmem:[%s587 + $0x10] sm:$0xff]
        %v2718 = vld [vmem:[%s587 + $0x18] sm:$0xff]
        %v2719 = vld [vmem:[%s593] sm:$0xff]
        %v2720 = vld [vmem:[%s593 + $0x8] sm:$0xff]
        %v2721 = vld [vmem:[%s593 + $0x10] sm:$0xff]
        %v2722 = vld [vmem:[%s593 + $0x18] sm:$0xff]
        %v2724 = vlaneseq
        %v2725 = vshrl.u32 %v2724, 7
        %v2726 = vsub.s32 0, %v2725
        %v2727 = vrot.slane %v2712, %v2726
        %v2728 = vlaneseq
        %v2729 = vshrl.u32 %v2728, 7
        %v2730 = vsub.s32 1, %v2729
        %v2731 = vrot.slane %v2712, %v2730
        %v2732 = vlaneseq
        %v2733 = vshrl.u32 %v2732, 7
        %v2734 = vsub.s32 2, %v2733
        %v2735 = vrot.slane %v2712, %v2734
        %v2736 = vlaneseq
        %v2737 = vshrl.u32 %v2736, 7
        %v2738 = vsub.s32 3, %v2737
        %v2739 = vrot.slane %v2712, %v2738
        %v2744 = vmul.f32 %v2727, %v2715
        %v2745 = vmul.f32 %v2731, %v2716
        %v2746 = vmul.f32 %v2735, %v2717
        %v2747 = vmul.f32 %v2739, %v2718
        %v2748 = vadd.f32 %v2691, %v2744
        %v2749 = vadd.f32 %v2692, %v2745
        %v2750 = vadd.f32 %v2693, %v2746
        %v2751 = vadd.f32 %v2694, %v2747
        %v2753 = vlaneseq
        %v2754 = vshrl.u32 %v2753, 7
        %v2755 = vsub.s32 0, %v2754
        %v2756 = vrot.slane %v2714, %v2755
        %v2757 = vlaneseq
        %v2758 = vshrl.u32 %v2757, 7
        %v2759 = vsub.s32 1, %v2758
        %v2760 = vrot.slane %v2714, %v2759
        %v2761 = vlaneseq
        %v2762 = vshrl.u32 %v2761, 7
        %v2763 = vsub.s32 2, %v2762
        %v2764 = vrot.slane %v2714, %v2763
        %v2765 = vlaneseq
        %v2766 = vshrl.u32 %v2765, 7
        %v2767 = vsub.s32 3, %v2766
        %v2768 = vrot.slane %v2714, %v2767
        %v2773 = vmul.f32 %v2756, %v2719
        %v2774 = vmul.f32 %v2760, %v2720
        %v2775 = vmul.f32 %v2764, %v2721
        %v2776 = vmul.f32 %v2768, %v2722
        %v2777 = vsub.f32 %v2748, %v2773
        %v2778 = vsub.f32 %v2749, %v2774
        %v2779 = vsub.f32 %v2750, %v2775
        %v2780 = vsub.f32 %v2751, %v2776
        %v2781 = vmul.f32 %v2727, %v2719
        %v2782 = vmul.f32 %v2731, %v2720
        %v2783 = vmul.f32 %v2735, %v2721
        %v2784 = vmul.f32 %v2739, %v2722
        %v2785 = vadd.f32 %v2707, %v2781
        %v2786 = vadd.f32 %v2708, %v2782
        %v2787 = vadd.f32 %v2709, %v2783
        %v2788 = vadd.f32 %v2710, %v2784
        %v2789 = vmul.f32 %v2756, %v2715
        %v2790 = vmul.f32 %v2760, %v2716
        %v2791 = vmul.f32 %v2764, %v2717
        %v2792 = vmul.f32 %v2768, %v2718
        %v2793 = vadd.f32 %v2785, %v2789
        %v2794 = vadd.f32 %v2786, %v2790
        %v2795 = vadd.f32 %v2787, %v2791
        %v2796 = vadd.f32 %v2788, %v2792
        %s2797 = scalar_lea.vmem %s2539, 3 [#allocation2]
        %v2798 = vld [vmem:[%s2797] ss:$8 sm:$0xf]
        %s2799 = scalar_lea.vmem %s2541, 3 [#allocation5]
        %v2800 = vld [vmem:[%s2799] ss:$8 sm:$0xf]
        %v2801 = vld [vmem:[%s678] sm:$0xff]
        %v2802 = vld [vmem:[%s678 + $0x8] sm:$0xff]
        %v2803 = vld [vmem:[%s678 + $0x10] sm:$0xff]
        %v2804 = vld [vmem:[%s678 + $0x18] sm:$0xff]
        %v2805 = vld [vmem:[%s684] sm:$0xff]
        %v2806 = vld [vmem:[%s684 + $0x8] sm:$0xff]
        %v2807 = vld [vmem:[%s684 + $0x10] sm:$0xff]
        %v2808 = vld [vmem:[%s684 + $0x18] sm:$0xff]
        %v2810 = vlaneseq
        %v2811 = vshrl.u32 %v2810, 7
        %v2812 = vsub.s32 0, %v2811
        %v2813 = vrot.slane %v2798, %v2812
        %v2814 = vlaneseq
        %v2815 = vshrl.u32 %v2814, 7
        %v2816 = vsub.s32 1, %v2815
        %v2817 = vrot.slane %v2798, %v2816
        %v2818 = vlaneseq
        %v2819 = vshrl.u32 %v2818, 7
        %v2820 = vsub.s32 2, %v2819
        %v2821 = vrot.slane %v2798, %v2820
        %v2822 = vlaneseq
        %v2823 = vshrl.u32 %v2822, 7
        %v2824 = vsub.s32 3, %v2823
        %v2825 = vrot.slane %v2798, %v2824
        %v2830 = vmul.f32 %v2813, %v2801
        %v2831 = vmul.f32 %v2817, %v2802
        %v2832 = vmul.f32 %v2821, %v2803
        %v2833 = vmul.f32 %v2825, %v2804
        %v2834 = vadd.f32 %v2777, %v2830
        %v2835 = vadd.f32 %v2778, %v2831
        %v2836 = vadd.f32 %v2779, %v2832
        %v2837 = vadd.f32 %v2780, %v2833
        %v2839 = vlaneseq
        %v2840 = vshrl.u32 %v2839, 7
        %v2841 = vsub.s32 0, %v2840
        %v2842 = vrot.slane %v2800, %v2841
        %v2843 = vlaneseq
        %v2844 = vshrl.u32 %v2843, 7
        %v2845 = vsub.s32 1, %v2844
        %v2846 = vrot.slane %v2800, %v2845
        %v2847 = vlaneseq
        %v2848 = vshrl.u32 %v2847, 7
        %v2849 = vsub.s32 2, %v2848
        %v2850 = vrot.slane %v2800, %v2849
        %v2851 = vlaneseq
        %v2852 = vshrl.u32 %v2851, 7
        %v2853 = vsub.s32 3, %v2852
        %v2854 = vrot.slane %v2800, %v2853
        %v2859 = vmul.f32 %v2842, %v2805
        %v2860 = vmul.f32 %v2846, %v2806
        %v2861 = vmul.f32 %v2850, %v2807
        %v2862 = vmul.f32 %v2854, %v2808
        %v2863 = vsub.f32 %v2834, %v2859
        %v2864 = vsub.f32 %v2835, %v2860
        %v2865 = vsub.f32 %v2836, %v2861
        %v2866 = vsub.f32 %v2837, %v2862
        %v2867 = vmul.f32 %v2813, %v2805
        %v2868 = vmul.f32 %v2817, %v2806
        %v2869 = vmul.f32 %v2821, %v2807
        %v2870 = vmul.f32 %v2825, %v2808
        %v2871 = vadd.f32 %v2793, %v2867
        %v2872 = vadd.f32 %v2794, %v2868
        %v2873 = vadd.f32 %v2795, %v2869
        %v2874 = vadd.f32 %v2796, %v2870
        %v2875 = vmul.f32 %v2842, %v2801
        %v2876 = vmul.f32 %v2846, %v2802
        %v2877 = vmul.f32 %v2850, %v2803
        %v2878 = vmul.f32 %v2854, %v2804
        %v2879 = vadd.f32 %v2871, %v2875
        %v2880 = vadd.f32 %v2872, %v2876
        %v2881 = vadd.f32 %v2873, %v2877
        %v2882 = vadd.f32 %v2874, %v2878
        %s2883 = scalar_lea.vmem %s2539, 4 [#allocation2]
        %v2884 = vld [vmem:[%s2883] ss:$8 sm:$0xf]
        %s2885 = scalar_lea.vmem %s2541, 4 [#allocation5]
        %v2886 = vld [vmem:[%s2885] ss:$8 sm:$0xf]
        %v2887 = vld [vmem:[%s769] sm:$0xff]
        %v2888 = vld [vmem:[%s769 + $0x8] sm:$0xff]
        %v2889 = vld [vmem:[%s769 + $0x10] sm:$0xff]
        %v2890 = vld [vmem:[%s769 + $0x18] sm:$0xff]
        %v2891 = vld [vmem:[%s775] sm:$0xff]
        %v2892 = vld [vmem:[%s775 + $0x8] sm:$0xff]
        %v2893 = vld [vmem:[%s775 + $0x10] sm:$0xff]
        %v2894 = vld [vmem:[%s775 + $0x18] sm:$0xff]
        %v2896 = vlaneseq
        %v2897 = vshrl.u32 %v2896, 7
        %v2898 = vsub.s32 0, %v2897
        %v2899 = vrot.slane %v2884, %v2898
        %v2900 = vlaneseq
        %v2901 = vshrl.u32 %v2900, 7
        %v2902 = vsub.s32 1, %v2901
        %v2903 = vrot.slane %v2884, %v2902
        %v2904 = vlaneseq
        %v2905 = vshrl.u32 %v2904, 7
        %v2906 = vsub.s32 2, %v2905
        %v2907 = vrot.slane %v2884, %v2906
        %v2908 = vlaneseq
        %v2909 = vshrl.u32 %v2908, 7
        %v2910 = vsub.s32 3, %v2909
        %v2911 = vrot.slane %v2884, %v2910
        %v2916 = vmul.f32 %v2899, %v2887
        %v2917 = vmul.f32 %v2903, %v2888
        %v2918 = vmul.f32 %v2907, %v2889
        %v2919 = vmul.f32 %v2911, %v2890
        %v2920 = vadd.f32 %v2863, %v2916
        %v2921 = vadd.f32 %v2864, %v2917
        %v2922 = vadd.f32 %v2865, %v2918
        %v2923 = vadd.f32 %v2866, %v2919
        %v2925 = vlaneseq
        %v2926 = vshrl.u32 %v2925, 7
        %v2927 = vsub.s32 0, %v2926
        %v2928 = vrot.slane %v2886, %v2927
        %v2929 = vlaneseq
        %v2930 = vshrl.u32 %v2929, 7
        %v2931 = vsub.s32 1, %v2930
        %v2932 = vrot.slane %v2886, %v2931
        %v2933 = vlaneseq
        %v2934 = vshrl.u32 %v2933, 7
        %v2935 = vsub.s32 2, %v2934
        %v2936 = vrot.slane %v2886, %v2935
        %v2937 = vlaneseq
        %v2938 = vshrl.u32 %v2937, 7
        %v2939 = vsub.s32 3, %v2938
        %v2940 = vrot.slane %v2886, %v2939
        %v2945 = vmul.f32 %v2928, %v2891
        %v2946 = vmul.f32 %v2932, %v2892
        %v2947 = vmul.f32 %v2936, %v2893
        %v2948 = vmul.f32 %v2940, %v2894
        %v2949 = vsub.f32 %v2920, %v2945
        %v2950 = vsub.f32 %v2921, %v2946
        %v2951 = vsub.f32 %v2922, %v2947
        %v2952 = vsub.f32 %v2923, %v2948
        %v2953 = vmul.f32 %v2899, %v2891
        %v2954 = vmul.f32 %v2903, %v2892
        %v2955 = vmul.f32 %v2907, %v2893
        %v2956 = vmul.f32 %v2911, %v2894
        %v2957 = vadd.f32 %v2879, %v2953
        %v2958 = vadd.f32 %v2880, %v2954
        %v2959 = vadd.f32 %v2881, %v2955
        %v2960 = vadd.f32 %v2882, %v2956
        %v2961 = vmul.f32 %v2928, %v2887
        %v2962 = vmul.f32 %v2932, %v2888
        %v2963 = vmul.f32 %v2936, %v2889
        %v2964 = vmul.f32 %v2940, %v2890
        %v2965 = vadd.f32 %v2957, %v2961
        %v2966 = vadd.f32 %v2958, %v2962
        %v2967 = vadd.f32 %v2959, %v2963
        %v2968 = vadd.f32 %v2960, %v2964
        %s2969 = scalar_lea.vmem %s2539, 5 [#allocation2]
        %v2970 = vld [vmem:[%s2969] ss:$8 sm:$0xf]
        %s2971 = scalar_lea.vmem %s2541, 5 [#allocation5]
        %v2972 = vld [vmem:[%s2971] ss:$8 sm:$0xf]
        %v2973 = vld [vmem:[%s860] sm:$0xff]
        %v2974 = vld [vmem:[%s860 + $0x8] sm:$0xff]
        %v2975 = vld [vmem:[%s860 + $0x10] sm:$0xff]
        %v2976 = vld [vmem:[%s860 + $0x18] sm:$0xff]
        %v2977 = vld [vmem:[%s866] sm:$0xff]
        %v2978 = vld [vmem:[%s866 + $0x8] sm:$0xff]
        %v2979 = vld [vmem:[%s866 + $0x10] sm:$0xff]
        %v2980 = vld [vmem:[%s866 + $0x18] sm:$0xff]
        %v2982 = vlaneseq
        %v2983 = vshrl.u32 %v2982, 7
        %v2984 = vsub.s32 0, %v2983
        %v2985 = vrot.slane %v2970, %v2984
        %v2986 = vlaneseq
        %v2987 = vshrl.u32 %v2986, 7
        %v2988 = vsub.s32 1, %v2987
        %v2989 = vrot.slane %v2970, %v2988
        %v2990 = vlaneseq
        %v2991 = vshrl.u32 %v2990, 7
        %v2992 = vsub.s32 2, %v2991
        %v2993 = vrot.slane %v2970, %v2992
        %v2994 = vlaneseq
        %v2995 = vshrl.u32 %v2994, 7
        %v2996 = vsub.s32 3, %v2995
        %v2997 = vrot.slane %v2970, %v2996
        %v3002 = vmul.f32 %v2985, %v2973
        %v3003 = vmul.f32 %v2989, %v2974
        %v3004 = vmul.f32 %v2993, %v2975
        %v3005 = vmul.f32 %v2997, %v2976
        %v3006 = vadd.f32 %v2949, %v3002
        %v3007 = vadd.f32 %v2950, %v3003
        %v3008 = vadd.f32 %v2951, %v3004
        %v3009 = vadd.f32 %v2952, %v3005
        %v3011 = vlaneseq
        %v3012 = vshrl.u32 %v3011, 7
        %v3013 = vsub.s32 0, %v3012
        %v3014 = vrot.slane %v2972, %v3013
        %v3015 = vlaneseq
        %v3016 = vshrl.u32 %v3015, 7
        %v3017 = vsub.s32 1, %v3016
        %v3018 = vrot.slane %v2972, %v3017
        %v3019 = vlaneseq
        %v3020 = vshrl.u32 %v3019, 7
        %v3021 = vsub.s32 2, %v3020
        %v3022 = vrot.slane %v2972, %v3021
        %v3023 = vlaneseq
        %v3024 = vshrl.u32 %v3023, 7
        %v3025 = vsub.s32 3, %v3024
        %v3026 = vrot.slane %v2972, %v3025
        %v3031 = vmul.f32 %v3014, %v2977
        %v3032 = vmul.f32 %v3018, %v2978
        %v3033 = vmul.f32 %v3022, %v2979
        %v3034 = vmul.f32 %v3026, %v2980
        %v3035 = vsub.f32 %v3006, %v3031
        %v3036 = vsub.f32 %v3007, %v3032
        %v3037 = vsub.f32 %v3008, %v3033
        %v3038 = vsub.f32 %v3009, %v3034
        %v3039 = vmul.f32 %v2985, %v2977
        %v3040 = vmul.f32 %v2989, %v2978
        %v3041 = vmul.f32 %v2993, %v2979
        %v3042 = vmul.f32 %v2997, %v2980
        %v3043 = vadd.f32 %v2965, %v3039
        %v3044 = vadd.f32 %v2966, %v3040
        %v3045 = vadd.f32 %v2967, %v3041
        %v3046 = vadd.f32 %v2968, %v3042
        %v3047 = vmul.f32 %v3014, %v2973
        %v3048 = vmul.f32 %v3018, %v2974
        %v3049 = vmul.f32 %v3022, %v2975
        %v3050 = vmul.f32 %v3026, %v2976
        %v3051 = vadd.f32 %v3043, %v3047
        %v3052 = vadd.f32 %v3044, %v3048
        %v3053 = vadd.f32 %v3045, %v3049
        %v3054 = vadd.f32 %v3046, %v3050
        %s3055 = scalar_lea.vmem %s2539, 6 [#allocation2]
        %v3056 = vld [vmem:[%s3055] ss:$8 sm:$0xf]
        %s3057 = scalar_lea.vmem %s2541, 6 [#allocation5]
        %v3058 = vld [vmem:[%s3057] ss:$8 sm:$0xf]
        %v3059 = vld [vmem:[%s951] sm:$0xff]
        %v3060 = vld [vmem:[%s951 + $0x8] sm:$0xff]
        %v3061 = vld [vmem:[%s951 + $0x10] sm:$0xff]
        %v3062 = vld [vmem:[%s951 + $0x18] sm:$0xff]
        %v3063 = vld [vmem:[%s957] sm:$0xff]
        %v3064 = vld [vmem:[%s957 + $0x8] sm:$0xff]
        %v3065 = vld [vmem:[%s957 + $0x10] sm:$0xff]
        %v3066 = vld [vmem:[%s957 + $0x18] sm:$0xff]
        %v3068 = vlaneseq
        %v3069 = vshrl.u32 %v3068, 7
        %v3070 = vsub.s32 0, %v3069
        %v3071 = vrot.slane %v3056, %v3070
        %v3072 = vlaneseq
        %v3073 = vshrl.u32 %v3072, 7
        %v3074 = vsub.s32 1, %v3073
        %v3075 = vrot.slane %v3056, %v3074
        %v3076 = vlaneseq
        %v3077 = vshrl.u32 %v3076, 7
        %v3078 = vsub.s32 2, %v3077
        %v3079 = vrot.slane %v3056, %v3078
        %v3080 = vlaneseq
        %v3081 = vshrl.u32 %v3080, 7
        %v3082 = vsub.s32 3, %v3081
        %v3083 = vrot.slane %v3056, %v3082
        %v3088 = vmul.f32 %v3071, %v3059
        %v3089 = vmul.f32 %v3075, %v3060
        %v3090 = vmul.f32 %v3079, %v3061
        %v3091 = vmul.f32 %v3083, %v3062
        %v3092 = vadd.f32 %v3035, %v3088
        %v3093 = vadd.f32 %v3036, %v3089
        %v3094 = vadd.f32 %v3037, %v3090
        %v3095 = vadd.f32 %v3038, %v3091
        %v3097 = vlaneseq
        %v3098 = vshrl.u32 %v3097, 7
        %v3099 = vsub.s32 0, %v3098
        %v3100 = vrot.slane %v3058, %v3099
        %v3101 = vlaneseq
        %v3102 = vshrl.u32 %v3101, 7
        %v3103 = vsub.s32 1, %v3102
        %v3104 = vrot.slane %v3058, %v3103
        %v3105 = vlaneseq
        %v3106 = vshrl.u32 %v3105, 7
        %v3107 = vsub.s32 2, %v3106
        %v3108 = vrot.slane %v3058, %v3107
        %v3109 = vlaneseq
        %v3110 = vshrl.u32 %v3109, 7
        %v3111 = vsub.s32 3, %v3110
        %v3112 = vrot.slane %v3058, %v3111
        %v3117 = vmul.f32 %v3100, %v3063
        %v3118 = vmul.f32 %v3104, %v3064
        %v3119 = vmul.f32 %v3108, %v3065
        %v3120 = vmul.f32 %v3112, %v3066
        %v3121 = vsub.f32 %v3092, %v3117
        %v3122 = vsub.f32 %v3093, %v3118
        %v3123 = vsub.f32 %v3094, %v3119
        %v3124 = vsub.f32 %v3095, %v3120
        %v3125 = vmul.f32 %v3071, %v3063
        %v3126 = vmul.f32 %v3075, %v3064
        %v3127 = vmul.f32 %v3079, %v3065
        %v3128 = vmul.f32 %v3083, %v3066
        %v3129 = vadd.f32 %v3051, %v3125
        %v3130 = vadd.f32 %v3052, %v3126
        %v3131 = vadd.f32 %v3053, %v3127
        %v3132 = vadd.f32 %v3054, %v3128
        %v3133 = vmul.f32 %v3100, %v3059
        %v3134 = vmul.f32 %v3104, %v3060
        %v3135 = vmul.f32 %v3108, %v3061
        %v3136 = vmul.f32 %v3112, %v3062
        %v3137 = vadd.f32 %v3129, %v3133
        %v3138 = vadd.f32 %v3130, %v3134
        %v3139 = vadd.f32 %v3131, %v3135
        %v3140 = vadd.f32 %v3132, %v3136
        %s3141 = scalar_lea.vmem %s2539, 7 [#allocation2]
        %v3142 = vld [vmem:[%s3141] ss:$8 sm:$0xf]
        %s3143 = scalar_lea.vmem %s2541, 7 [#allocation5]
        %v3144 = vld [vmem:[%s3143] ss:$8 sm:$0xf]
        %v3145 = vld [vmem:[%s1042] sm:$0xff]
        %v3146 = vld [vmem:[%s1042 + $0x8] sm:$0xff]
        %v3147 = vld [vmem:[%s1042 + $0x10] sm:$0xff]
        %v3148 = vld [vmem:[%s1042 + $0x18] sm:$0xff]
        %v3149 = vld [vmem:[%s1048] sm:$0xff]
        %v3150 = vld [vmem:[%s1048 + $0x8] sm:$0xff]
        %v3151 = vld [vmem:[%s1048 + $0x10] sm:$0xff]
        %v3152 = vld [vmem:[%s1048 + $0x18] sm:$0xff]
        %v3154 = vlaneseq
        %v3155 = vshrl.u32 %v3154, 7
        %v3156 = vsub.s32 0, %v3155
        %v3157 = vrot.slane %v3142, %v3156
        %v3158 = vlaneseq
        %v3159 = vshrl.u32 %v3158, 7
        %v3160 = vsub.s32 1, %v3159
        %v3161 = vrot.slane %v3142, %v3160
        %v3162 = vlaneseq
        %v3163 = vshrl.u32 %v3162, 7
        %v3164 = vsub.s32 2, %v3163
        %v3165 = vrot.slane %v3142, %v3164
        %v3166 = vlaneseq
        %v3167 = vshrl.u32 %v3166, 7
        %v3168 = vsub.s32 3, %v3167
        %v3169 = vrot.slane %v3142, %v3168
        %v3174 = vmul.f32 %v3157, %v3145
        %v3175 = vmul.f32 %v3161, %v3146
        %v3176 = vmul.f32 %v3165, %v3147
        %v3177 = vmul.f32 %v3169, %v3148
        %v3178 = vadd.f32 %v3121, %v3174
        %v3179 = vadd.f32 %v3122, %v3175
        %v3180 = vadd.f32 %v3123, %v3176
        %v3181 = vadd.f32 %v3124, %v3177
        %v3183 = vlaneseq
        %v3184 = vshrl.u32 %v3183, 7
        %v3185 = vsub.s32 0, %v3184
        %v3186 = vrot.slane %v3144, %v3185
        %v3187 = vlaneseq
        %v3188 = vshrl.u32 %v3187, 7
        %v3189 = vsub.s32 1, %v3188
        %v3190 = vrot.slane %v3144, %v3189
        %v3191 = vlaneseq
        %v3192 = vshrl.u32 %v3191, 7
        %v3193 = vsub.s32 2, %v3192
        %v3194 = vrot.slane %v3144, %v3193
        %v3195 = vlaneseq
        %v3196 = vshrl.u32 %v3195, 7
        %v3197 = vsub.s32 3, %v3196
        %v3198 = vrot.slane %v3144, %v3197
        %v3203 = vmul.f32 %v3186, %v3149
        %v3204 = vmul.f32 %v3190, %v3150
        %v3205 = vmul.f32 %v3194, %v3151
        %v3206 = vmul.f32 %v3198, %v3152
        %v3207 = vsub.f32 %v3178, %v3203
        %v3208 = vsub.f32 %v3179, %v3204
        %v3209 = vsub.f32 %v3180, %v3205
        %v3210 = vsub.f32 %v3181, %v3206
        %v3211 = vmul.f32 %v3157, %v3149
        %v3212 = vmul.f32 %v3161, %v3150
        %v3213 = vmul.f32 %v3165, %v3151
        %v3214 = vmul.f32 %v3169, %v3152
        %v3215 = vadd.f32 %v3137, %v3211
        %v3216 = vadd.f32 %v3138, %v3212
        %v3217 = vadd.f32 %v3139, %v3213
        %v3218 = vadd.f32 %v3140, %v3214
        %v3219 = vmul.f32 %v3186, %v3145
        %v3220 = vmul.f32 %v3190, %v3146
        %v3221 = vmul.f32 %v3194, %v3147
        %v3222 = vmul.f32 %v3198, %v3148
        %v3223 = vadd.f32 %v3215, %v3219
        %v3224 = vadd.f32 %v3216, %v3220
        %v3225 = vadd.f32 %v3217, %v3221
        %v3226 = vadd.f32 %v3218, %v3222
        %s3227 = smul.addr %s676, 8
        %s3228 = scalar_lea.vmem %s387, %s3227 [#allocation10]
        %3229 = vst [vmem:[%s3228] sm:$0xff] %v3207
        %3230 = vst [vmem:[%s3228 + $0x8] sm:$0xff] %v3208
        %3231 = vst [vmem:[%s3228 + $0x10] sm:$0xff] %v3209
        %3232 = vst [vmem:[%s3228 + $0x18] sm:$0xff] %v3210
        %s3233 = smul.addr %s676, 8
        %s3234 = scalar_lea.vmem %s394, %s3233 [#allocation11]
        %3235 = vst [vmem:[%s3234] sm:$0xff] %v3223
        %3236 = vst [vmem:[%s3234 + $0x8] sm:$0xff] %v3224
        %3237 = vst [vmem:[%s3234 + $0x10] sm:$0xff] %v3225
        %3238 = vst [vmem:[%s3234 + $0x18] sm:$0xff] %v3226
        %s3239 = sand.u32 %s162, 1
        %s3240 = scalar_lea.sflag [#allocation4], %s3239
        %s3241 = sand.u32 %s162, 1
        %s3242 = smul.addr %s3241, 128
        %s3243 = scalar_lea.vmem [#allocation10], %s3242
        %s3244 = sand.u32 %s190, 1
        %s3245 = scalar_lea.sflag [#allocation12], %s3244
        %s3246 = sand.u32 %s190, 1
        %s3247 = smul.addr %s3246, 128
        %s3248 = scalar_lea.vmem [#allocation11], %s3247
        // Predicated region
        $region53: #{tpu_custom_call.1} parent=35 // pred_check
          %p3249 = pneg %p172
        $region54: #{tpu_custom_call.1} parent=35 // pred_check_branch
          %3251 = sbr.rel (%p3249) target = $region56
        $region55: #{tpu_custom_call.1} parent=35 // pred_region
          %s3252 = smul.u32 4, %s36
          %s3254 = ssub.s32 2048, 2048
          %3255 = vsyncadd %s3240, %s3254
          %s3256 = smul.addr %s37, 8
          %s3257 = sadd.s32 %s3252, %s3256
          %s3258 = smul.addr %s3257, 128
          %s3259 = scalar_lea.hbm %s4, %s3258
          %s3260 = sshll.u32 %s3243, 4
          %s3261 = int_to_ptr.vmem [resolvable:$true] %s3260
          %3266 = dma.vmem_to_hbm [thread:$0]  %s3261, 2048, %s3259, %s3240, 512, 1024, 32
        $region56: #{tpu_custom_call.1} parent=35 // pred_fallthru
          _
        // Predicated region
        $region57: #{tpu_custom_call.1} parent=35 // pred_check
          %p3267 = pneg %p200
        $region58: #{tpu_custom_call.1} parent=35 // pred_check_branch
          %3269 = sbr.rel (%p3267) target = $region60
        $region59: #{tpu_custom_call.1} parent=35 // pred_region
          %s3270 = smul.u32 4, %s36
          %s3272 = ssub.s32 2048, 2048
          %3273 = vsyncadd %s3245, %s3272
          %s3274 = smul.addr %s37, 8
          %s3275 = sadd.s32 %s3270, %s3274
          %s3276 = smul.addr %s3275, 128
          %s3277 = scalar_lea.hbm %s5, %s3276
          %s3278 = sshll.u32 %s3248, 4
          %s3279 = int_to_ptr.vmem [resolvable:$true] %s3278
          %3284 = dma.vmem_to_hbm [thread:$0]  %s3279, 2048, %s3277, %s3245, 512, 1024, 32
        $region60: #{tpu_custom_call.1} parent=35 // pred_fallthru
          _
      $region36: #{tpu_custom_call.1} parent=5 // pred_fallthru
        _
      %p3285 = scmp.le.s32.totalorder 2, %s27
      // Predicated region
      $region61: #{tpu_custom_call.1} parent=5 // pred_check
        %p3286 = pneg %p3285
      $region62: #{tpu_custom_call.1} parent=5 // pred_check_branch
        %3288 = sbr.rel (%p3286) target = $region64
      $region63: #{tpu_custom_call.1} parent=5 // pred_region
        %s3289 = ssub.s32 %s27, 2
        // Predicated region
        $region65: #{tpu_custom_call.1} parent=63 // pred_check
          %p3290 = pneg %p178
        $region66: #{tpu_custom_call.1} parent=63 // pred_check_branch
          %3292 = sbr.rel (%p3290) target = $region68
        $region67: #{tpu_custom_call.1} parent=63 // pred_region
          %s3293 = sand.u32 %s163, 1
          %s3294 = scalar_lea.sflag [#allocation4], %s3293
          %s3295 = sand.u32 %s163, 1
          %s3296 = smul.addr %s3295, 128
          %s3297 = scalar_lea.vmem [#allocation10], %s3296
          %3298 = dma.done %s3294, 2048
        $region68: #{tpu_custom_call.1} parent=63 // pred_fallthru
          _
        // Predicated region
        $region69: #{tpu_custom_call.1} parent=63 // pred_check
          %p3299 = pneg %p206
        $region70: #{tpu_custom_call.1} parent=63 // pred_check_branch
          %3301 = sbr.rel (%p3299) target = $region72
        $region71: #{tpu_custom_call.1} parent=63 // pred_region
          %s3302 = sand.u32 %s191, 1
          %s3303 = scalar_lea.sflag [#allocation12], %s3302
          %s3304 = sand.u32 %s191, 1
          %s3305 = smul.addr %s3304, 128
          %s3306 = scalar_lea.vmem [#allocation11], %s3305
          %3307 = dma.done %s3303, 2048
        $region72: #{tpu_custom_call.1} parent=63 // pred_fallthru
          _
      $region64: #{tpu_custom_call.1} parent=5 // pred_fallthru
        _
    $region6: #{tpu_custom_call.1} parent=1 // loop_footer
      %s31 = sadd.s32 1, %s27
    $region7: #{tpu_custom_call.1} parent=1 // loop_footer_branch
      %26 = sbr.rel target = $region3
    $region8: #{tpu_custom_call.1} parent=1 // loop_exit
      _
    %3308 = vsyncpa [#allocation3], 1
    %s3309 = scalar_lea.sflag [#allocation3], 1
    %3310 = vsyncpa %s3309, 1
    %3311 = vsyncpa [#allocation6], 1
    %s3312 = scalar_lea.sflag [#allocation6], 1
    %3313 = vsyncpa %s3312, 1
    %3314 = vsyncpa [#allocation9], 1
    %s3315 = scalar_lea.sflag [#allocation9], 1
    %3316 = vsyncpa %s3315, 1
    %3317 = vsyncpa [#allocation4], 1
    %s3318 = scalar_lea.sflag [#allocation4], 1
    %3319 = vsyncpa %s3318, 1
    %3320 = vsyncpa [#allocation12], 1
    %s3321 = scalar_lea.sflag [#allocation12], 1
    %3322 = vsyncpa %s3321, 1

</llo_original>
